<compile_context>
chip_gen: v7x
topology: tpu7x:2x2x1
jax: 0.10.0
libtpu: 0.0.40
codegen_flags: <defaults>
</compile_context>

<pallas_src>
import functools

import jax
import jax.numpy as jnp
import numpy as np
from jax.experimental import pallas as pl
from jax.experimental.pallas import tpu as pltpu


KSIZE = 5
STRIDE = 2
BN_EPS = 1e-5
TAPS = KSIZE * KSIZE
M2_PAD = 32          # conv2 output positions (25) padded to sublane-aligned 32
K1_PAD = 128         # conv1 contraction dim 3*25=75 padded to a full lane tile


def conv2d_size_out(size, kernel_size=KSIZE, stride=STRIDE):
    return (size - (kernel_size - 1) - 1) // stride + 1


# ----------------------------------------------------------------------------
# Fused kernel: one batch element per grid step, everything VMEM/vreg resident.
# ----------------------------------------------------------------------------
def _policy_net_kernel(cols1_ref, w1_ref, s1_ref, t1_ref,
                       sel2_ref, w2_ref, s2_ref, t2_ref,
                       rep3_ref, mask3_ref, w3_ref, s3_ref, t3_ref,
                       wh_ref, bh_ref, wf_ref, bf_ref,
                       o_ref):
    f32 = jnp.float32
    bf16 = jnp.bfloat16

    def affine_relu(acc, s_ref, t_ref):
        # folded (conv bias + eval-mode BN) per-channel affine, then ReLU (f32)
        return jnp.maximum(acc * s_ref[...] + t_ref[...], 0.0)

    # ---- conv1 + bn1 + relu: ONE GEMM over the pre-padded im2col block -----
    y1 = jnp.dot(cols1_ref[0], w1_ref[...], preferred_element_type=f32)
    y1 = affine_relu(y1, s1_ref, t1_ref).astype(bf16)            # [M1, 16]

    # ---- conv2 + bn2 + relu: ONE M-stacked selection GEMM + 25 tap GEMMs ---
    # sel2 is 0/1 so x2 holds exact copies of y1's bf16 rows.
    x2 = jnp.dot(sel2_ref[...], y1,
                 preferred_element_type=f32).astype(bf16)        # [25*32, 16]
    acc2 = None
    for t in range(TAPS):
        contrib = jnp.dot(x2[t * M2_PAD:(t + 1) * M2_PAD, :], w2_ref[t],
                          preferred_element_type=f32)
        acc2 = contrib if acc2 is None else acc2 + contrib       # [32, 32]
    y2 = affine_relu(acc2, s2_ref, t2_ref).astype(bf16)          # [32, 32]

    # ---- conv3 + bn3 + relu: single GEMM ------------------------------------
    # Lane-flatten y2 (row q -> lane group q) with a 0/1 replication matmul +
    # mask + sublane reduction (reshape-free; also zeroes the 7 padding rows),
    # then one [1, 800] x [800, 32] GEMM.
    y2_rep = jnp.dot(y2, rep3_ref[...], preferred_element_type=f32)  # [32, 800]
    flat = jnp.sum(y2_rep * mask3_ref[...], axis=0, keepdims=True)   # [1, 800]
    y3 = jnp.dot(flat.astype(bf16), w3_ref[...],
                 preferred_element_type=f32)                         # [1, 32]
    y3 = affine_relu(y3, s3_ref, t3_ref).astype(bf16)

    # ---- head Linear ---------------------------------------------------------
    feat = jnp.dot(y3, wh_ref[...],
                   preferred_element_type=f32) + bh_ref[...]     # [1, outputs]

    # ---- fc1 Linear + softmax(dim=1) ----------------------------------------
    logits = jnp.dot(feat.astype(bf16), wf_ref[...],
                     preferred_element_type=f32) + bf_ref[...]   # [1, actions]
    logits = logits - jnp.max(logits, axis=-1, keepdims=True)
    e = jnp.exp(logits)
    probs = e * pl.reciprocal(jnp.sum(e, axis=-1, keepdims=True), approx=False)
    o_ref[0] = probs.astype(o_ref.dtype)


def _const_spec(shape):
    nd = len(shape)

    def index_map(b):
        return (0,) * nd

    return pl.BlockSpec(tuple(shape), index_map)


def policy_net_pallas(folded, cols1):
    batch, m1, kpad = cols1.shape
    action_dim = folded["wf"].shape[1]
    consts = (folded["w1"], folded["s1"], folded["t1"],
              folded["sel2"], folded["w2"], folded["s2"], folded["t2"],
              folded["rep3"], folded["mask3"], folded["w3"],
              folded["s3"], folded["t3"],
              folded["wh"], folded["bh"], folded["wf"], folded["bf"])

    in_specs = [pl.BlockSpec((1, m1, kpad), lambda b: (b, 0, 0))]
    in_specs += [_const_spec(c.shape) for c in consts]
    out_spec = pl.BlockSpec((1, 1, action_dim), lambda b: (b, 0, 0))

    # Explicit VMEM budget: double-buffered inputs/output + headroom for the
    # in-kernel f32 temporaries.  Well under v7x's 64 MiB.
    in_bytes = sum(int(np.prod(a.shape)) * a.dtype.itemsize
                   for a in (cols1,) + consts)
    out_bytes = batch * action_dim * 4
    vmem_limit = int(min(4 * (in_bytes + out_bytes) + (16 << 20), 48 << 20))

    out = pl.pallas_call(
        _policy_net_kernel,
        out_shape=jax.ShapeDtypeStruct((batch, 1, action_dim), jnp.float32),
        grid=(batch,),
        in_specs=in_specs,
        out_specs=out_spec,
        compiler_params=pltpu.CompilerParams(
            dimension_semantics=("parallel",),
            vmem_limit_bytes=vmem_limit),
    )(cols1, *consts)
    return out[:, 0, :]


# ----------------------------------------------------------------------------
# Wrapper-side glue: gather-free im2col for conv1 (single concatenate, pad and
# bf16 cast fused, columns already in the (C, kh, kw) contraction order).
# ----------------------------------------------------------------------------
def build_cols1(x, k=KSIZE, s=STRIDE, k_pad=K1_PAD):
    """x: NCHW f32 [B, C, H, W] -> [B, Ho*Wo, k_pad] bf16 im2col block."""
    B, C, H, W = x.shape
    Ho = conv2d_size_out(H, k, s)
    Wo = conv2d_size_out(W, k, s)
    pieces = []
    for ci in range(C):
        for kh in range(k):
            for kw in range(k):
                sl = jax.lax.slice(
                    x, (0, ci, kh, kw),
                    (B, ci + 1, kh + s * (Ho - 1) + 1, kw + s * (Wo - 1) + 1),
                    (1, 1, s, s))                          # [B, 1, Ho, Wo]
                pieces.append(sl.reshape(B, Ho * Wo, 1))
    pad = k_pad - C * k * k
    if pad:
        pieces.append(jnp.zeros((B, Ho * Wo, pad), x.dtype))
    return jnp.concatenate(pieces, axis=-1).astype(jnp.bfloat16)


# ----------------------------------------------------------------------------
# One-time prep: constant 0/1 matrices, BN folding, weight transposes.
# ----------------------------------------------------------------------------
def build_sel_stacked(hi, wi, ho, wo, k=KSIZE, s=STRIDE, m_pad=M2_PAD):
    """Batch-independent, M-stacked 0/1 selection: row [t*m_pad + m] (tap
    t = kh*k + kw, output position m = oy*wo + ox, zero-padded to m_pad rows
    per tap) picks input row (s*oy+kh)*wi + (s*ox+kw)."""
    sel = np.zeros((k * k * m_pad, hi * wi), np.float32)
    for kh in range(k):
        for kw in range(k):
            t = kh * k + kw
            for oy in range(ho):
                for ox in range(wo):
                    sel[t * m_pad + oy * wo + ox,
                        (s * oy + kh) * wi + (s * ox + kw)] = 1.0
    return sel


def build_conv3_rep_mask(m2, c2, m_pad=M2_PAD):
    """rep [c2, m2*c2]: replicates y2's channels into every lane group.
    mask [m_pad, m2*c2]: keeps lane group q only for y2 row q (and zeroes the
    m_pad padding rows), so sum-over-rows yields the lane-flattened y2."""
    rep = np.zeros((c2, m2 * c2), np.float32)
    mask = np.zeros((m_pad, m2 * c2), np.float32)
    eye = np.eye(c2, dtype=np.float32)
    for q in range(m2):
        rep[:, q * c2:(q + 1) * c2] = eye
        mask[q, q * c2:(q + 1) * c2] = 1.0
    return rep, mask


def fold_params(p, h, w, eps=BN_EPS):
    """Fold conv bias + eval-mode BN into per-channel scale/shift, pre-transpose
    / pre-pad weights, and build the constant 0/1 matrices (all batch-free)."""
    bf16 = jnp.bfloat16
    h1, w1 = conv2d_size_out(h), conv2d_size_out(w)
    h2, w2 = conv2d_size_out(h1), conv2d_size_out(w1)
    h3, w3 = conv2d_size_out(h2), conv2d_size_out(w2)
    assert h3 == 1 and w3 == 1, "head flattening assumes 1x1 conv3 output"
    # TODO(synk): general (h3, w3) > 1 would need a (C, H, W)-ordered head fold.

    def bn_fold(g, beta, mean, var, conv_b):
        sc = g / jnp.sqrt(var + eps)
        sh = beta + (conv_b - mean) * sc
        return (sc.reshape(1, -1).astype(jnp.float32),
                sh.reshape(1, -1).astype(jnp.float32))

    kk = TAPS

    # conv1: single GEMM; pad contraction dim 3*25=75 -> 128 (exact).
    cout1, cin1 = p["conv1_w"].shape[0], p["conv1_w"].shape[1]
    k1 = cin1 * kk
    w1_mat = p["conv1_w"].reshape(cout1, k1).T
    w1_mat = jnp.pad(w1_mat, ((0, K1_PAD - k1), (0, 0))).astype(bf16)
    s1, t1 = bn_fold(p["bn1_g"], p["bn1_b"], p["bn1_m"], p["bn1_v"], p["conv1_b"])

    def tap_weights(wc):   # [Cout, Cin, k, k] -> [k*k, Cin, Cout], tap = kh*k+kw
        return jnp.transpose(wc, (2, 3, 1, 0)).reshape(
            kk, wc.shape[1], wc.shape[0]).astype(bf16)

    w2_taps = tap_weights(p["conv2_w"])
    s2, t2 = bn_fold(p["bn2_g"], p["bn2_b"], p["bn2_m"], p["bn2_v"], p["conv2_b"])

    c2 = p["conv3_w"].shape[1]
    # conv3 as a single GEMM: rows ordered (tap q = kh*k + kw, ci) to match the
    # lane-flattened y2 layout.
    w3_flat = jnp.transpose(p["conv3_w"], (2, 3, 1, 0)).reshape(
        kk * c2, p["conv3_w"].shape[0]).astype(bf16)             # [800, 32]
    s3, t3 = bn_fold(p["bn3_g"], p["bn3_b"], p["bn3_m"], p["bn3_v"], p["conv3_b"])

    wh = p["head_w"].T.astype(bf16)                      # [32, outputs]
    bh = p["head_b"].reshape(1, -1).astype(jnp.float32)
    wf = p["fc1_w"].T.astype(bf16)                       # [outputs, action_dim]
    bf = p["fc1_b"].reshape(1, -1).astype(jnp.float32)

    sel2 = jnp.asarray(build_sel_stacked(h1, w1, h2, w2), bf16)
    rep3_np, mask3_np = build_conv3_rep_mask(h2 * w2, c2)
    rep3 = jnp.asarray(rep3_np, bf16)
    mask3 = jnp.asarray(mask3_np, jnp.float32)

    return dict(w1=w1_mat, s1=s1, t1=t1,
                sel2=sel2, w2=w2_taps, s2=s2, t2=t2,
                rep3=rep3, mask3=mask3, w3=w3_flat, s3=s3, t3=t3,
                wh=wh, bh=bh, wf=wf, bf=bf)


def policy_net_forward(folded, x):
    """x: NCHW float32 [B, 3, H, W] -> action probabilities [B, action_dim]."""
    cols1 = build_cols1(x, k_pad=folded["w1"].shape[0])
    return policy_net_pallas(folded, cols1)


# ----------------------------------------------------------------------------
# Deterministic synthetic parameter init (matches the PyTorch module's shapes)
# ----------------------------------------------------------------------------
def init_params(key, h, w, outputs, action_dim):
    convw = conv2d_size_out(conv2d_size_out(conv2d_size_out(w)))
    convh = conv2d_size_out(conv2d_size_out(conv2d_size_out(h)))
    lin_in = convw * convh * 32

    keys = jax.random.split(key, 22)

    def nrm(k, shape, scl=0.1):
        return (scl * jax.random.normal(k, shape)).astype(jnp.float32)

    def pos(k, shape):
        return jax.random.uniform(k, shape, minval=0.5, maxval=1.5).astype(jnp.float32)

    return {
        "conv1_w": nrm(keys[0], (16, 3, 5, 5)), "conv1_b": nrm(keys[1], (16,)),
        "bn1_g": pos(keys[2], (16,)), "bn1_b": nrm(keys[3], (16,)),
        "bn1_m": nrm(keys[4], (16,)), "bn1_v": pos(keys[5], (16,)),
        "conv2_w": nrm(keys[6], (32, 16, 5, 5)), "conv2_b": nrm(keys[7], (32,)),
        "bn2_g": pos(keys[8], (32,)), "bn2_b": nrm(keys[9], (32,)),
        "bn2_m": nrm(keys[10], (32,)), "bn2_v": pos(keys[11], (32,)),
        "conv3_w": nrm(keys[12], (32, 32, 5, 5)), "conv3_b": nrm(keys[13], (32,)),
        "bn3_g": pos(keys[14], (32,)), "bn3_b": nrm(keys[15], (32,)),
        "bn3_m": nrm(keys[16], (32,)), "bn3_v": pos(keys[17], (32,)),
        "head_w": nrm(keys[18], (outputs, lin_in)), "head_b": nrm(keys[19], (outputs,)),
        "fc1_w": nrm(keys[20], (action_dim, outputs)), "fc1_b": nrm(keys[21], (action_dim,)),
    }


if __name__ == "__main__":
    BATCH, H, W = 2, 32, 32
    OUTPUTS, ACTION_DIM = 8, 4

    key = jax.random.PRNGKey(0)
    k_x, k_p = jax.random.split(key)
    x = jax.random.normal(k_x, (BATCH, 3, H, W), dtype=jnp.float32)
    params = init_params(k_p, H, W, OUTPUTS, ACTION_DIM)

    # One-time, batch-independent prep (weight transposes, BN folding, padding,
    # selection / replication / mask matrices).
    folded = fold_params(params, H, W)

    fwd = jax.jit(functools.partial(policy_net_forward, folded))
    probs = jax.block_until_ready(fwd(x))

    assert probs.shape == (BATCH, ACTION_DIM)
    assert bool(jnp.all(jnp.isfinite(probs)))
    # rows of a softmax must sum to ~1
    assert bool(jnp.all(jnp.abs(jnp.sum(probs, axis=1) - 1.0) < 1e-4))
    print("KERNEL_OK")
</pallas_src>

<mosaic_0001>
module attributes {stable_mosaic.version = 11 : i64} {
  func.func @_policy_net_kernel(%arg0: i32, %arg1: memref<1x196x128xbf16, #tpu.memory_space<vmem>>, %arg2: memref<128x16xbf16, #tpu.memory_space<vmem>>, %arg3: memref<1x16xf32, #tpu.memory_space<vmem>>, %arg4: memref<1x16xf32, #tpu.memory_space<vmem>>, %arg5: memref<800x196xbf16, #tpu.memory_space<vmem>>, %arg6: memref<25x16x32xbf16, #tpu.memory_space<vmem>>, %arg7: memref<1x32xf32, #tpu.memory_space<vmem>>, %arg8: memref<1x32xf32, #tpu.memory_space<vmem>>, %arg9: memref<32x800xbf16, #tpu.memory_space<vmem>>, %arg10: memref<32x800xf32, #tpu.memory_space<vmem>>, %arg11: memref<800x32xbf16, #tpu.memory_space<vmem>>, %arg12: memref<1x32xf32, #tpu.memory_space<vmem>>, %arg13: memref<1x32xf32, #tpu.memory_space<vmem>>, %arg14: memref<32x8xbf16, #tpu.memory_space<vmem>>, %arg15: memref<1x8xf32, #tpu.memory_space<vmem>>, %arg16: memref<8x4xbf16, #tpu.memory_space<vmem>>, %arg17: memref<1x4xf32, #tpu.memory_space<vmem>>, %arg18: memref<1x1x4xf32, #tpu.memory_space<vmem>>) attributes {dimension_semantics = [#tpu.dimension_semantics<parallel>], iteration_bounds = array<i64: 2>, scalar_prefetch = 0 : i64, scratch_operands = 0 : i64, tpu.core_type = #tpu.core_type<tc>, window_params = [{transform_indices = @transform_0, window_bounds = array<i64: 1, 196, 128>}, {pipeline_mode = #tpu.pipeline_mode<synchronous>, transform_indices = @transform_1, window_bounds = array<i64: 128, 16>}, {pipeline_mode = #tpu.pipeline_mode<synchronous>, transform_indices = @transform_2, window_bounds = array<i64: 1, 16>}, {pipeline_mode = #tpu.pipeline_mode<synchronous>, transform_indices = @transform_3, window_bounds = array<i64: 1, 16>}, {pipeline_mode = #tpu.pipeline_mode<synchronous>, transform_indices = @transform_4, window_bounds = array<i64: 800, 196>}, {pipeline_mode = #tpu.pipeline_mode<synchronous>, transform_indices = @transform_5, window_bounds = array<i64: 25, 16, 32>}, {pipeline_mode = #tpu.pipeline_mode<synchronous>, transform_indices = @transform_6, window_bounds = array<i64: 1, 32>}, {pipeline_mode = #tpu.pipeline_mode<synchronous>, transform_indices = @transform_7, window_bounds = array<i64: 1, 32>}, {pipeline_mode = #tpu.pipeline_mode<synchronous>, transform_indices = @transform_8, window_bounds = array<i64: 32, 800>}, {pipeline_mode = #tpu.pipeline_mode<synchronous>, transform_indices = @transform_9, window_bounds = array<i64: 32, 800>}, {pipeline_mode = #tpu.pipeline_mode<synchronous>, transform_indices = @transform_10, window_bounds = array<i64: 800, 32>}, {pipeline_mode = #tpu.pipeline_mode<synchronous>, transform_indices = @transform_11, window_bounds = array<i64: 1, 32>}, {pipeline_mode = #tpu.pipeline_mode<synchronous>, transform_indices = @transform_12, window_bounds = array<i64: 1, 32>}, {pipeline_mode = #tpu.pipeline_mode<synchronous>, transform_indices = @transform_13, window_bounds = array<i64: 32, 8>}, {pipeline_mode = #tpu.pipeline_mode<synchronous>, transform_indices = @transform_14, window_bounds = array<i64: 1, 8>}, {pipeline_mode = #tpu.pipeline_mode<synchronous>, transform_indices = @transform_15, window_bounds = array<i64: 8, 4>}, {pipeline_mode = #tpu.pipeline_mode<synchronous>, transform_indices = @transform_16, window_bounds = array<i64: 1, 4>}, {transform_indices = @transform_17, window_bounds = array<i64: 1, 1, 4>}]} {
    %c0 = arith.constant 0 : index
    %c0_0 = arith.constant 0 : index
    %c0_1 = arith.constant 0 : index
    %0 = vector.load %arg1[%c0, %c0_0, %c0_1] : memref<1x196x128xbf16, #tpu.memory_space<vmem>>, vector<1x196x128xbf16>
    %1 = vector.shape_cast %0 : vector<1x196x128xbf16> to vector<196x128xbf16>
    %c0_2 = arith.constant 0 : index
    %c0_3 = arith.constant 0 : index
    %2 = vector.load %arg2[%c0_2, %c0_3] : memref<128x16xbf16, #tpu.memory_space<vmem>>, vector<128x16xbf16>
    %cst = arith.constant dense<0.000000e+00> : vector<196x16xf32>
    %3 = tpu.matmul %1, %2, %cst {dimension_numbers = #tpu.dot_dimension_numbers<[1], [0], [0], [1], [0, 0, 1, 1], [], []>} : vector<196x128xbf16>, vector<128x16xbf16>, vector<196x16xf32> -> vector<196x16xf32>
    %c0_4 = arith.constant 0 : index
    %c0_5 = arith.constant 0 : index
    %4 = vector.load %arg3[%c0_4, %c0_5] : memref<1x16xf32, #tpu.memory_space<vmem>>, vector<1x16xf32>
    %5 = vector.broadcast %4 : vector<1x16xf32> to vector<196x16xf32>
    %6 = arith.mulf %3, %5 : vector<196x16xf32>
    %c0_6 = arith.constant 0 : index
    %c0_7 = arith.constant 0 : index
    %7 = vector.load %arg4[%c0_6, %c0_7] : memref<1x16xf32, #tpu.memory_space<vmem>>, vector<1x16xf32>
    %8 = vector.broadcast %7 : vector<1x16xf32> to vector<196x16xf32>
    %9 = arith.addf %6, %8 : vector<196x16xf32>
    %cst_8 = arith.constant 0.000000e+00 : f32
    %10 = vector.broadcast %cst_8 : f32 to vector<196x16xf32>
    %11 = arith.maximumf %9, %10 : vector<196x16xf32>
    %12 = arith.truncf %11 : vector<196x16xf32> to vector<196x16xbf16>
    %c0_9 = arith.constant 0 : index
    %c0_10 = arith.constant 0 : index
    %13 = vector.load %arg5[%c0_9, %c0_10] : memref<800x196xbf16, #tpu.memory_space<vmem>>, vector<800x196xbf16>
    %cst_11 = arith.constant dense<0.000000e+00> : vector<800x16xf32>
    %14 = tpu.matmul %13, %12, %cst_11 {dimension_numbers = #tpu.dot_dimension_numbers<[1], [0], [0], [1], [0, 0, 1, 1], [], []>} : vector<800x196xbf16>, vector<196x16xbf16>, vector<800x16xf32> -> vector<800x16xf32>
    %15 = arith.truncf %14 : vector<800x16xf32> to vector<800x16xbf16>
    %16 = vector.extract_strided_slice %15 {offsets = [0, 0], sizes = [32, 16], strides = [1, 1]} : vector<800x16xbf16> to vector<32x16xbf16>
    %c0_12 = arith.constant 0 : index
    %c0_13 = arith.constant 0 : index
    %c0_14 = arith.constant 0 : index
    %17 = vector.load %arg6[%c0_12, %c0_13, %c0_14] : memref<25x16x32xbf16, #tpu.memory_space<vmem>>, vector<1x16x32xbf16>
    %18 = vector.shape_cast %17 : vector<1x16x32xbf16> to vector<16x32xbf16>
    %cst_15 = arith.constant dense<0.000000e+00> : vector<32x32xf32>
    %19 = tpu.matmul %16, %18, %cst_15 {dimension_numbers = #tpu.dot_dimension_numbers<[1], [0], [0], [1], [0, 0, 1, 1], [], []>} : vector<32x16xbf16>, vector<16x32xbf16>, vector<32x32xf32> -> vector<32x32xf32>
    %20 = vector.extract_strided_slice %15 {offsets = [32, 0], sizes = [32, 16], strides = [1, 1]} : vector<800x16xbf16> to vector<32x16xbf16>
    %c1 = arith.constant 1 : index
    %c0_16 = arith.constant 0 : index
    %c0_17 = arith.constant 0 : index
    %21 = vector.load %arg6[%c1, %c0_16, %c0_17] : memref<25x16x32xbf16, #tpu.memory_space<vmem>>, vector<1x16x32xbf16>
    %22 = vector.shape_cast %21 : vector<1x16x32xbf16> to vector<16x32xbf16>
    %cst_18 = arith.constant dense<0.000000e+00> : vector<32x32xf32>
    %23 = tpu.matmul %20, %22, %cst_18 {dimension_numbers = #tpu.dot_dimension_numbers<[1], [0], [0], [1], [0, 0, 1, 1], [], []>} : vector<32x16xbf16>, vector<16x32xbf16>, vector<32x32xf32> -> vector<32x32xf32>
    %24 = arith.addf %19, %23 : vector<32x32xf32>
    %25 = vector.extract_strided_slice %15 {offsets = [64, 0], sizes = [32, 16], strides = [1, 1]} : vector<800x16xbf16> to vector<32x16xbf16>
    %c2 = arith.constant 2 : index
    %c0_19 = arith.constant 0 : index
    %c0_20 = arith.constant 0 : index
    %26 = vector.load %arg6[%c2, %c0_19, %c0_20] : memref<25x16x32xbf16, #tpu.memory_space<vmem>>, vector<1x16x32xbf16>
    %27 = vector.shape_cast %26 : vector<1x16x32xbf16> to vector<16x32xbf16>
    %cst_21 = arith.constant dense<0.000000e+00> : vector<32x32xf32>
    %28 = tpu.matmul %25, %27, %cst_21 {dimension_numbers = #tpu.dot_dimension_numbers<[1], [0], [0], [1], [0, 0, 1, 1], [], []>} : vector<32x16xbf16>, vector<16x32xbf16>, vector<32x32xf32> -> vector<32x32xf32>
    %29 = arith.addf %24, %28 : vector<32x32xf32>
    %30 = vector.extract_strided_slice %15 {offsets = [96, 0], sizes = [32, 16], strides = [1, 1]} : vector<800x16xbf16> to vector<32x16xbf16>
    %c3 = arith.constant 3 : index
    %c0_22 = arith.constant 0 : index
    %c0_23 = arith.constant 0 : index
    %31 = vector.load %arg6[%c3, %c0_22, %c0_23] : memref<25x16x32xbf16, #tpu.memory_space<vmem>>, vector<1x16x32xbf16>
    %32 = vector.shape_cast %31 : vector<1x16x32xbf16> to vector<16x32xbf16>
    %cst_24 = arith.constant dense<0.000000e+00> : vector<32x32xf32>
    %33 = tpu.matmul %30, %32, %cst_24 {dimension_numbers = #tpu.dot_dimension_numbers<[1], [0], [0], [1], [0, 0, 1, 1], [], []>} : vector<32x16xbf16>, vector<16x32xbf16>, vector<32x32xf32> -> vector<32x32xf32>
    %34 = arith.addf %29, %33 : vector<32x32xf32>
    %35 = vector.extract_strided_slice %15 {offsets = [128, 0], sizes = [32, 16], strides = [1, 1]} : vector<800x16xbf16> to vector<32x16xbf16>
    %c4 = arith.constant 4 : index
    %c0_25 = arith.constant 0 : index
    %c0_26 = arith.constant 0 : index
    %36 = vector.load %arg6[%c4, %c0_25, %c0_26] : memref<25x16x32xbf16, #tpu.memory_space<vmem>>, vector<1x16x32xbf16>
    %37 = vector.shape_cast %36 : vector<1x16x32xbf16> to vector<16x32xbf16>
    %cst_27 = arith.constant dense<0.000000e+00> : vector<32x32xf32>
    %38 = tpu.matmul %35, %37, %cst_27 {dimension_numbers = #tpu.dot_dimension_numbers<[1], [0], [0], [1], [0, 0, 1, 1], [], []>} : vector<32x16xbf16>, vector<16x32xbf16>, vector<32x32xf32> -> vector<32x32xf32>
    %39 = arith.addf %34, %38 : vector<32x32xf32>
    %40 = vector.extract_strided_slice %15 {offsets = [160, 0], sizes = [32, 16], strides = [1, 1]} : vector<800x16xbf16> to vector<32x16xbf16>
    %c5 = arith.constant 5 : index
    %c0_28 = arith.constant 0 : index
    %c0_29 = arith.constant 0 : index
    %41 = vector.load %arg6[%c5, %c0_28, %c0_29] : memref<25x16x32xbf16, #tpu.memory_space<vmem>>, vector<1x16x32xbf16>
    %42 = vector.shape_cast %41 : vector<1x16x32xbf16> to vector<16x32xbf16>
    %cst_30 = arith.constant dense<0.000000e+00> : vector<32x32xf32>
    %43 = tpu.matmul %40, %42, %cst_30 {dimension_numbers = #tpu.dot_dimension_numbers<[1], [0], [0], [1], [0, 0, 1, 1], [], []>} : vector<32x16xbf16>, vector<16x32xbf16>, vector<32x32xf32> -> vector<32x32xf32>
    %44 = arith.addf %39, %43 : vector<32x32xf32>
    %45 = vector.extract_strided_slice %15 {offsets = [192, 0], sizes = [32, 16], strides = [1, 1]} : vector<800x16xbf16> to vector<32x16xbf16>
    %c6 = arith.constant 6 : index
    %c0_31 = arith.constant 0 : index
    %c0_32 = arith.constant 0 : index
    %46 = vector.load %arg6[%c6, %c0_31, %c0_32] : memref<25x16x32xbf16, #tpu.memory_space<vmem>>, vector<1x16x32xbf16>
    %47 = vector.shape_cast %46 : vector<1x16x32xbf16> to vector<16x32xbf16>
    %cst_33 = arith.constant dense<0.000000e+00> : vector<32x32xf32>
    %48 = tpu.matmul %45, %47, %cst_33 {dimension_numbers = #tpu.dot_dimension_numbers<[1], [0], [0], [1], [0, 0, 1, 1], [], []>} : vector<32x16xbf16>, vector<16x32xbf16>, vector<32x32xf32> -> vector<32x32xf32>
    %49 = arith.addf %44, %48 : vector<32x32xf32>
    %50 = vector.extract_strided_slice %15 {offsets = [224, 0], sizes = [32, 16], strides = [1, 1]} : vector<800x16xbf16> to vector<32x16xbf16>
    %c7 = arith.constant 7 : index
    %c0_34 = arith.constant 0 : index
    %c0_35 = arith.constant 0 : index
    %51 = vector.load %arg6[%c7, %c0_34, %c0_35] : memref<25x16x32xbf16, #tpu.memory_space<vmem>>, vector<1x16x32xbf16>
    %52 = vector.shape_cast %51 : vector<1x16x32xbf16> to vector<16x32xbf16>
    %cst_36 = arith.constant dense<0.000000e+00> : vector<32x32xf32>
    %53 = tpu.matmul %50, %52, %cst_36 {dimension_numbers = #tpu.dot_dimension_numbers<[1], [0], [0], [1], [0, 0, 1, 1], [], []>} : vector<32x16xbf16>, vector<16x32xbf16>, vector<32x32xf32> -> vector<32x32xf32>
    %54 = arith.addf %49, %53 : vector<32x32xf32>
    %55 = vector.extract_strided_slice %15 {offsets = [256, 0], sizes = [32, 16], strides = [1, 1]} : vector<800x16xbf16> to vector<32x16xbf16>
    %c8 = arith.constant 8 : index
    %c0_37 = arith.constant 0 : index
    %c0_38 = arith.constant 0 : index
    %56 = vector.load %arg6[%c8, %c0_37, %c0_38] : memref<25x16x32xbf16, #tpu.memory_space<vmem>>, vector<1x16x32xbf16>
    %57 = vector.shape_cast %56 : vector<1x16x32xbf16> to vector<16x32xbf16>
    %cst_39 = arith.constant dense<0.000000e+00> : vector<32x32xf32>
    %58 = tpu.matmul %55, %57, %cst_39 {dimension_numbers = #tpu.dot_dimension_numbers<[1], [0], [0], [1], [0, 0, 1, 1], [], []>} : vector<32x16xbf16>, vector<16x32xbf16>, vector<32x32xf32> -> vector<32x32xf32>
    %59 = arith.addf %54, %58 : vector<32x32xf32>
    %60 = vector.extract_strided_slice %15 {offsets = [288, 0], sizes = [32, 16], strides = [1, 1]} : vector<800x16xbf16> to vector<32x16xbf16>
    %c9 = arith.constant 9 : index
    %c0_40 = arith.constant 0 : index
    %c0_41 = arith.constant 0 : index
    %61 = vector.load %arg6[%c9, %c0_40, %c0_41] : memref<25x16x32xbf16, #tpu.memory_space<vmem>>, vector<1x16x32xbf16>
    %62 = vector.shape_cast %61 : vector<1x16x32xbf16> to vector<16x32xbf16>
    %cst_42 = arith.constant dense<0.000000e+00> : vector<32x32xf32>
    %63 = tpu.matmul %60, %62, %cst_42 {dimension_numbers = #tpu.dot_dimension_numbers<[1], [0], [0], [1], [0, 0, 1, 1], [], []>} : vector<32x16xbf16>, vector<16x32xbf16>, vector<32x32xf32> -> vector<32x32xf32>
    %64 = arith.addf %59, %63 : vector<32x32xf32>
    %65 = vector.extract_strided_slice %15 {offsets = [320, 0], sizes = [32, 16], strides = [1, 1]} : vector<800x16xbf16> to vector<32x16xbf16>
    %c10 = arith.constant 10 : index
    %c0_43 = arith.constant 0 : index
    %c0_44 = arith.constant 0 : index
    %66 = vector.load %arg6[%c10, %c0_43, %c0_44] : memref<25x16x32xbf16, #tpu.memory_space<vmem>>, vector<1x16x32xbf16>
    %67 = vector.shape_cast %66 : vector<1x16x32xbf16> to vector<16x32xbf16>
    %cst_45 = arith.constant dense<0.000000e+00> : vector<32x32xf32>
    %68 = tpu.matmul %65, %67, %cst_45 {dimension_numbers = #tpu.dot_dimension_numbers<[1], [0], [0], [1], [0, 0, 1, 1], [], []>} : vector<32x16xbf16>, vector<16x32xbf16>, vector<32x32xf32> -> vector<32x32xf32>
    %69 = arith.addf %64, %68 : vector<32x32xf32>
    %70 = vector.extract_strided_slice %15 {offsets = [352, 0], sizes = [32, 16], strides = [1, 1]} : vector<800x16xbf16> to vector<32x16xbf16>
    %c11 = arith.constant 11 : index
    %c0_46 = arith.constant 0 : index
    %c0_47 = arith.constant 0 : index
    %71 = vector.load %arg6[%c11, %c0_46, %c0_47] : memref<25x16x32xbf16, #tpu.memory_space<vmem>>, vector<1x16x32xbf16>
    %72 = vector.shape_cast %71 : vector<1x16x32xbf16> to vector<16x32xbf16>
    %cst_48 = arith.constant dense<0.000000e+00> : vector<32x32xf32>
    %73 = tpu.matmul %70, %72, %cst_48 {dimension_numbers = #tpu.dot_dimension_numbers<[1], [0], [0], [1], [0, 0, 1, 1], [], []>} : vector<32x16xbf16>, vector<16x32xbf16>, vector<32x32xf32> -> vector<32x32xf32>
    %74 = arith.addf %69, %73 : vector<32x32xf32>
    %75 = vector.extract_strided_slice %15 {offsets = [384, 0], sizes = [32, 16], strides = [1, 1]} : vector<800x16xbf16> to vector<32x16xbf16>
    %c12 = arith.constant 12 : index
    %c0_49 = arith.constant 0 : index
    %c0_50 = arith.constant 0 : index
    %76 = vector.load %arg6[%c12, %c0_49, %c0_50] : memref<25x16x32xbf16, #tpu.memory_space<vmem>>, vector<1x16x32xbf16>
    %77 = vector.shape_cast %76 : vector<1x16x32xbf16> to vector<16x32xbf16>
    %cst_51 = arith.constant dense<0.000000e+00> : vector<32x32xf32>
    %78 = tpu.matmul %75, %77, %cst_51 {dimension_numbers = #tpu.dot_dimension_numbers<[1], [0], [0], [1], [0, 0, 1, 1], [], []>} : vector<32x16xbf16>, vector<16x32xbf16>, vector<32x32xf32> -> vector<32x32xf32>
    %79 = arith.addf %74, %78 : vector<32x32xf32>
    %80 = vector.extract_strided_slice %15 {offsets = [416, 0], sizes = [32, 16], strides = [1, 1]} : vector<800x16xbf16> to vector<32x16xbf16>
    %c13 = arith.constant 13 : index
    %c0_52 = arith.constant 0 : index
    %c0_53 = arith.constant 0 : index
    %81 = vector.load %arg6[%c13, %c0_52, %c0_53] : memref<25x16x32xbf16, #tpu.memory_space<vmem>>, vector<1x16x32xbf16>
    %82 = vector.shape_cast %81 : vector<1x16x32xbf16> to vector<16x32xbf16>
    %cst_54 = arith.constant dense<0.000000e+00> : vector<32x32xf32>
    %83 = tpu.matmul %80, %82, %cst_54 {dimension_numbers = #tpu.dot_dimension_numbers<[1], [0], [0], [1], [0, 0, 1, 1], [], []>} : vector<32x16xbf16>, vector<16x32xbf16>, vector<32x32xf32> -> vector<32x32xf32>
    %84 = arith.addf %79, %83 : vector<32x32xf32>
    %85 = vector.extract_strided_slice %15 {offsets = [448, 0], sizes = [32, 16], strides = [1, 1]} : vector<800x16xbf16> to vector<32x16xbf16>
    %c14 = arith.constant 14 : index
    %c0_55 = arith.constant 0 : index
    %c0_56 = arith.constant 0 : index
    %86 = vector.load %arg6[%c14, %c0_55, %c0_56] : memref<25x16x32xbf16, #tpu.memory_space<vmem>>, vector<1x16x32xbf16>
    %87 = vector.shape_cast %86 : vector<1x16x32xbf16> to vector<16x32xbf16>
    %cst_57 = arith.constant dense<0.000000e+00> : vector<32x32xf32>
    %88 = tpu.matmul %85, %87, %cst_57 {dimension_numbers = #tpu.dot_dimension_numbers<[1], [0], [0], [1], [0, 0, 1, 1], [], []>} : vector<32x16xbf16>, vector<16x32xbf16>, vector<32x32xf32> -> vector<32x32xf32>
    %89 = arith.addf %84, %88 : vector<32x32xf32>
    %90 = vector.extract_strided_slice %15 {offsets = [480, 0], sizes = [32, 16], strides = [1, 1]} : vector<800x16xbf16> to vector<32x16xbf16>
    %c15 = arith.constant 15 : index
    %c0_58 = arith.constant 0 : index
    %c0_59 = arith.constant 0 : index
    %91 = vector.load %arg6[%c15, %c0_58, %c0_59] : memref<25x16x32xbf16, #tpu.memory_space<vmem>>, vector<1x16x32xbf16>
    %92 = vector.shape_cast %91 : vector<1x16x32xbf16> to vector<16x32xbf16>
    %cst_60 = arith.constant dense<0.000000e+00> : vector<32x32xf32>
    %93 = tpu.matmul %90, %92, %cst_60 {dimension_numbers = #tpu.dot_dimension_numbers<[1], [0], [0], [1], [0, 0, 1, 1], [], []>} : vector<32x16xbf16>, vector<16x32xbf16>, vector<32x32xf32> -> vector<32x32xf32>
    %94 = arith.addf %89, %93 : vector<32x32xf32>
    %95 = vector.extract_strided_slice %15 {offsets = [512, 0], sizes = [32, 16], strides = [1, 1]} : vector<800x16xbf16> to vector<32x16xbf16>
    %c16 = arith.constant 16 : index
    %c0_61 = arith.constant 0 : index
    %c0_62 = arith.constant 0 : index
    %96 = vector.load %arg6[%c16, %c0_61, %c0_62] : memref<25x16x32xbf16, #tpu.memory_space<vmem>>, vector<1x16x32xbf16>
    %97 = vector.shape_cast %96 : vector<1x16x32xbf16> to vector<16x32xbf16>
    %cst_63 = arith.constant dense<0.000000e+00> : vector<32x32xf32>
    %98 = tpu.matmul %95, %97, %cst_63 {dimension_numbers = #tpu.dot_dimension_numbers<[1], [0], [0], [1], [0, 0, 1, 1], [], []>} : vector<32x16xbf16>, vector<16x32xbf16>, vector<32x32xf32> -> vector<32x32xf32>
    %99 = arith.addf %94, %98 : vector<32x32xf32>
    %100 = vector.extract_strided_slice %15 {offsets = [544, 0], sizes = [32, 16], strides = [1, 1]} : vector<800x16xbf16> to vector<32x16xbf16>
    %c17 = arith.constant 17 : index
    %c0_64 = arith.constant 0 : index
    %c0_65 = arith.constant 0 : index
    %101 = vector.load %arg6[%c17, %c0_64, %c0_65] : memref<25x16x32xbf16, #tpu.memory_space<vmem>>, vector<1x16x32xbf16>
    %102 = vector.shape_cast %101 : vector<1x16x32xbf16> to vector<16x32xbf16>
    %cst_66 = arith.constant dense<0.000000e+00> : vector<32x32xf32>
    %103 = tpu.matmul %100, %102, %cst_66 {dimension_numbers = #tpu.dot_dimension_numbers<[1], [0], [0], [1], [0, 0, 1, 1], [], []>} : vector<32x16xbf16>, vector<16x32xbf16>, vector<32x32xf32> -> vector<32x32xf32>
    %104 = arith.addf %99, %103 : vector<32x32xf32>
    %105 = vector.extract_strided_slice %15 {offsets = [576, 0], sizes = [32, 16], strides = [1, 1]} : vector<800x16xbf16> to vector<32x16xbf16>
    %c18 = arith.constant 18 : index
    %c0_67 = arith.constant 0 : index
    %c0_68 = arith.constant 0 : index
    %106 = vector.load %arg6[%c18, %c0_67, %c0_68] : memref<25x16x32xbf16, #tpu.memory_space<vmem>>, vector<1x16x32xbf16>
    %107 = vector.shape_cast %106 : vector<1x16x32xbf16> to vector<16x32xbf16>
    %cst_69 = arith.constant dense<0.000000e+00> : vector<32x32xf32>
    %108 = tpu.matmul %105, %107, %cst_69 {dimension_numbers = #tpu.dot_dimension_numbers<[1], [0], [0], [1], [0, 0, 1, 1], [], []>} : vector<32x16xbf16>, vector<16x32xbf16>, vector<32x32xf32> -> vector<32x32xf32>
    %109 = arith.addf %104, %108 : vector<32x32xf32>
    %110 = vector.extract_strided_slice %15 {offsets = [608, 0], sizes = [32, 16], strides = [1, 1]} : vector<800x16xbf16> to vector<32x16xbf16>
    %c19 = arith.constant 19 : index
    %c0_70 = arith.constant 0 : index
    %c0_71 = arith.constant 0 : index
    %111 = vector.load %arg6[%c19, %c0_70, %c0_71] : memref<25x16x32xbf16, #tpu.memory_space<vmem>>, vector<1x16x32xbf16>
    %112 = vector.shape_cast %111 : vector<1x16x32xbf16> to vector<16x32xbf16>
    %cst_72 = arith.constant dense<0.000000e+00> : vector<32x32xf32>
    %113 = tpu.matmul %110, %112, %cst_72 {dimension_numbers = #tpu.dot_dimension_numbers<[1], [0], [0], [1], [0, 0, 1, 1], [], []>} : vector<32x16xbf16>, vector<16x32xbf16>, vector<32x32xf32> -> vector<32x32xf32>
    %114 = arith.addf %109, %113 : vector<32x32xf32>
    %115 = vector.extract_strided_slice %15 {offsets = [640, 0], sizes = [32, 16], strides = [1, 1]} : vector<800x16xbf16> to vector<32x16xbf16>
    %c20 = arith.constant 20 : index
    %c0_73 = arith.constant 0 : index
    %c0_74 = arith.constant 0 : index
    %116 = vector.load %arg6[%c20, %c0_73, %c0_74] : memref<25x16x32xbf16, #tpu.memory_space<vmem>>, vector<1x16x32xbf16>
    %117 = vector.shape_cast %116 : vector<1x16x32xbf16> to vector<16x32xbf16>
    %cst_75 = arith.constant dense<0.000000e+00> : vector<32x32xf32>
    %118 = tpu.matmul %115, %117, %cst_75 {dimension_numbers = #tpu.dot_dimension_numbers<[1], [0], [0], [1], [0, 0, 1, 1], [], []>} : vector<32x16xbf16>, vector<16x32xbf16>, vector<32x32xf32> -> vector<32x32xf32>
    %119 = arith.addf %114, %118 : vector<32x32xf32>
    %120 = vector.extract_strided_slice %15 {offsets = [672, 0], sizes = [32, 16], strides = [1, 1]} : vector<800x16xbf16> to vector<32x16xbf16>
    %c21 = arith.constant 21 : index
    %c0_76 = arith.constant 0 : index
    %c0_77 = arith.constant 0 : index
    %121 = vector.load %arg6[%c21, %c0_76, %c0_77] : memref<25x16x32xbf16, #tpu.memory_space<vmem>>, vector<1x16x32xbf16>
    %122 = vector.shape_cast %121 : vector<1x16x32xbf16> to vector<16x32xbf16>
    %cst_78 = arith.constant dense<0.000000e+00> : vector<32x32xf32>
    %123 = tpu.matmul %120, %122, %cst_78 {dimension_numbers = #tpu.dot_dimension_numbers<[1], [0], [0], [1], [0, 0, 1, 1], [], []>} : vector<32x16xbf16>, vector<16x32xbf16>, vector<32x32xf32> -> vector<32x32xf32>
    %124 = arith.addf %119, %123 : vector<32x32xf32>
    %125 = vector.extract_strided_slice %15 {offsets = [704, 0], sizes = [32, 16], strides = [1, 1]} : vector<800x16xbf16> to vector<32x16xbf16>
    %c22 = arith.constant 22 : index
    %c0_79 = arith.constant 0 : index
    %c0_80 = arith.constant 0 : index
    %126 = vector.load %arg6[%c22, %c0_79, %c0_80] : memref<25x16x32xbf16, #tpu.memory_space<vmem>>, vector<1x16x32xbf16>
    %127 = vector.shape_cast %126 : vector<1x16x32xbf16> to vector<16x32xbf16>
    %cst_81 = arith.constant dense<0.000000e+00> : vector<32x32xf32>
    %128 = tpu.matmul %125, %127, %cst_81 {dimension_numbers = #tpu.dot_dimension_numbers<[1], [0], [0], [1], [0, 0, 1, 1], [], []>} : vector<32x16xbf16>, vector<16x32xbf16>, vector<32x32xf32> -> vector<32x32xf32>
    %129 = arith.addf %124, %128 : vector<32x32xf32>
    %130 = vector.extract_strided_slice %15 {offsets = [736, 0], sizes = [32, 16], strides = [1, 1]} : vector<800x16xbf16> to vector<32x16xbf16>
    %c23 = arith.constant 23 : index
    %c0_82 = arith.constant 0 : index
    %c0_83 = arith.constant 0 : index
    %131 = vector.load %arg6[%c23, %c0_82, %c0_83] : memref<25x16x32xbf16, #tpu.memory_space<vmem>>, vector<1x16x32xbf16>
    %132 = vector.shape_cast %131 : vector<1x16x32xbf16> to vector<16x32xbf16>
    %cst_84 = arith.constant dense<0.000000e+00> : vector<32x32xf32>
    %133 = tpu.matmul %130, %132, %cst_84 {dimension_numbers = #tpu.dot_dimension_numbers<[1], [0], [0], [1], [0, 0, 1, 1], [], []>} : vector<32x16xbf16>, vector<16x32xbf16>, vector<32x32xf32> -> vector<32x32xf32>
    %134 = arith.addf %129, %133 : vector<32x32xf32>
    %135 = vector.extract_strided_slice %15 {offsets = [768, 0], sizes = [32, 16], strides = [1, 1]} : vector<800x16xbf16> to vector<32x16xbf16>
    %c24 = arith.constant 24 : index
    %c0_85 = arith.constant 0 : index
    %c0_86 = arith.constant 0 : index
    %136 = vector.load %arg6[%c24, %c0_85, %c0_86] : memref<25x16x32xbf16, #tpu.memory_space<vmem>>, vector<1x16x32xbf16>
    %137 = vector.shape_cast %136 : vector<1x16x32xbf16> to vector<16x32xbf16>
    %cst_87 = arith.constant dense<0.000000e+00> : vector<32x32xf32>
    %138 = tpu.matmul %135, %137, %cst_87 {dimension_numbers = #tpu.dot_dimension_numbers<[1], [0], [0], [1], [0, 0, 1, 1], [], []>} : vector<32x16xbf16>, vector<16x32xbf16>, vector<32x32xf32> -> vector<32x32xf32>
    %139 = arith.addf %134, %138 : vector<32x32xf32>
    %c0_88 = arith.constant 0 : index
    %c0_89 = arith.constant 0 : index
    %140 = vector.load %arg7[%c0_88, %c0_89] : memref<1x32xf32, #tpu.memory_space<vmem>>, vector<1x32xf32>
    %141 = vector.broadcast %140 : vector<1x32xf32> to vector<32x32xf32>
    %142 = arith.mulf %139, %141 : vector<32x32xf32>
    %c0_90 = arith.constant 0 : index
    %c0_91 = arith.constant 0 : index
    %143 = vector.load %arg8[%c0_90, %c0_91] : memref<1x32xf32, #tpu.memory_space<vmem>>, vector<1x32xf32>
    %144 = vector.broadcast %143 : vector<1x32xf32> to vector<32x32xf32>
    %145 = arith.addf %142, %144 : vector<32x32xf32>
    %cst_92 = arith.constant 0.000000e+00 : f32
    %146 = vector.broadcast %cst_92 : f32 to vector<32x32xf32>
    %147 = arith.maximumf %145, %146 : vector<32x32xf32>
    %148 = arith.truncf %147 : vector<32x32xf32> to vector<32x32xbf16>
    %c0_93 = arith.constant 0 : index
    %c0_94 = arith.constant 0 : index
    %149 = vector.load %arg9[%c0_93, %c0_94] : memref<32x800xbf16, #tpu.memory_space<vmem>>, vector<32x800xbf16>
    %cst_95 = arith.constant dense<0.000000e+00> : vector<32x800xf32>
    %150 = tpu.matmul %148, %149, %cst_95 {dimension_numbers = #tpu.dot_dimension_numbers<[1], [0], [0], [1], [0, 0, 1, 1], [], []>} : vector<32x32xbf16>, vector<32x800xbf16>, vector<32x800xf32> -> vector<32x800xf32>
    %c0_96 = arith.constant 0 : index
    %c0_97 = arith.constant 0 : index
    %151 = vector.load %arg10[%c0_96, %c0_97] : memref<32x800xf32, #tpu.memory_space<vmem>>, vector<32x800xf32>
    %152 = arith.mulf %150, %151 : vector<32x800xf32>
    %cst_98 = arith.constant dense<0.000000e+00> : vector<800xf32>
    %153 = vector.multi_reduction <add>, %152, %cst_98 [0] : vector<32x800xf32> to vector<800xf32>
    %154 = vector.shape_cast %153 : vector<800xf32> to vector<1x800xf32>
    %155 = arith.truncf %154 : vector<1x800xf32> to vector<1x800xbf16>
    %c0_99 = arith.constant 0 : index
    %c0_100 = arith.constant 0 : index
    %156 = vector.load %arg11[%c0_99, %c0_100] : memref<800x32xbf16, #tpu.memory_space<vmem>>, vector<800x32xbf16>
    %cst_101 = arith.constant dense<0.000000e+00> : vector<1x32xf32>
    %157 = tpu.matmul %155, %156, %cst_101 {dimension_numbers = #tpu.dot_dimension_numbers<[1], [0], [0], [1], [0, 0, 1, 1], [], []>} : vector<1x800xbf16>, vector<800x32xbf16>, vector<1x32xf32> -> vector<1x32xf32>
    %c0_102 = arith.constant 0 : index
    %c0_103 = arith.constant 0 : index
    %158 = vector.load %arg12[%c0_102, %c0_103] : memref<1x32xf32, #tpu.memory_space<vmem>>, vector<1x32xf32>
    %159 = arith.mulf %157, %158 : vector<1x32xf32>
    %c0_104 = arith.constant 0 : index
    %c0_105 = arith.constant 0 : index
    %160 = vector.load %arg13[%c0_104, %c0_105] : memref<1x32xf32, #tpu.memory_space<vmem>>, vector<1x32xf32>
    %161 = arith.addf %159, %160 : vector<1x32xf32>
    %cst_106 = arith.constant 0.000000e+00 : f32
    %162 = vector.broadcast %cst_106 : f32 to vector<1x32xf32>
    %163 = arith.maximumf %161, %162 : vector<1x32xf32>
    %164 = arith.truncf %163 : vector<1x32xf32> to vector<1x32xbf16>
    %c0_107 = arith.constant 0 : index
    %c0_108 = arith.constant 0 : index
    %165 = vector.load %arg14[%c0_107, %c0_108] : memref<32x8xbf16, #tpu.memory_space<vmem>>, vector<32x8xbf16>
    %cst_109 = arith.constant dense<0.000000e+00> : vector<1x8xf32>
    %166 = tpu.matmul %164, %165, %cst_109 {dimension_numbers = #tpu.dot_dimension_numbers<[1], [0], [0], [1], [0, 0, 1, 1], [], []>} : vector<1x32xbf16>, vector<32x8xbf16>, vector<1x8xf32> -> vector<1x8xf32>
    %c0_110 = arith.constant 0 : index
    %c0_111 = arith.constant 0 : index
    %167 = vector.load %arg15[%c0_110, %c0_111] : memref<1x8xf32, #tpu.memory_space<vmem>>, vector<1x8xf32>
    %168 = arith.addf %166, %167 : vector<1x8xf32>
    %169 = arith.truncf %168 : vector<1x8xf32> to vector<1x8xbf16>
    %c0_112 = arith.constant 0 : index
    %c0_113 = arith.constant 0 : index
    %170 = vector.load %arg16[%c0_112, %c0_113] : memref<8x4xbf16, #tpu.memory_space<vmem>>, vector<8x4xbf16>
    %cst_114 = arith.constant dense<0.000000e+00> : vector<1x4xf32>
    %171 = tpu.matmul %169, %170, %cst_114 {dimension_numbers = #tpu.dot_dimension_numbers<[1], [0], [0], [1], [0, 0, 1, 1], [], []>} : vector<1x8xbf16>, vector<8x4xbf16>, vector<1x4xf32> -> vector<1x4xf32>
    %c0_115 = arith.constant 0 : index
    %c0_116 = arith.constant 0 : index
    %172 = vector.load %arg17[%c0_115, %c0_116] : memref<1x4xf32, #tpu.memory_space<vmem>>, vector<1x4xf32>
    %173 = arith.addf %171, %172 : vector<1x4xf32>
    %cst_117 = arith.constant dense<0xFF800000> : vector<1xf32>
    %174 = vector.multi_reduction <maximumf>, %173, %cst_117 [1] : vector<1x4xf32> to vector<1xf32>
    %175 = vector.shape_cast %174 : vector<1xf32> to vector<1x1xf32>
    %176 = vector.broadcast %175 : vector<1x1xf32> to vector<1x4xf32>
    %177 = arith.subf %173, %176 : vector<1x4xf32>
    %178 = math.exp %177 : vector<1x4xf32>
    %cst_118 = arith.constant dense<0.000000e+00> : vector<1xf32>
    %179 = vector.multi_reduction <add>, %178, %cst_118 [1] : vector<1x4xf32> to vector<1xf32>
    %180 = vector.shape_cast %179 : vector<1xf32> to vector<1x1xf32>
    %181 = tpu.reciprocal %180 : vector<1x1xf32> -> vector<1x1xf32>
    %182 = vector.broadcast %181 : vector<1x1xf32> to vector<1x4xf32>
    %183 = arith.mulf %178, %182 : vector<1x4xf32>
    %c0_119 = arith.constant 0 : index
    %c0_120 = arith.constant 0 : index
    %c0_121 = arith.constant 0 : index
    %184 = vector.load %arg18[%c0_119, %c0_120, %c0_121] : memref<1x1x4xf32, #tpu.memory_space<vmem>>, vector<1x1x4xf32>
    %185 = vector.shape_cast %184 : vector<1x1x4xf32> to vector<1x4xf32>
    %186 = vector.shape_cast %183 : vector<1x4xf32> to vector<1x1x4xf32>
    tpu.vector_store %arg18[%c0_119, %c0_120, %c0_121], %186 {strides = array<i32>} : memref<1x1x4xf32, #tpu.memory_space<vmem>>, vector<1x1x4xf32>,
    return
  }
  func.func @transform_0(%arg0: i32) -> (i32, i32, i32) {
    %c0_i32 = arith.constant 0 : i32
    %c0_i32_0 = arith.constant 0 : i32
    %c0_i32_1 = arith.constant 0 : i32
    return %arg0, %c0_i32, %c0_i32_0 : i32, i32, i32
  }
  func.func @transform_1(%arg0: i32) -> (i32, i32) {
    %c0_i32 = arith.constant 0 : i32
    %c0_i32_0 = arith.constant 0 : i32
    %c0_i32_1 = arith.constant 0 : i32
    return %c0_i32, %c0_i32_0 : i32, i32
  }
  func.func @transform_2(%arg0: i32) -> (i32, i32) {
    %c0_i32 = arith.constant 0 : i32
    %c0_i32_0 = arith.constant 0 : i32
    %c0_i32_1 = arith.constant 0 : i32
    return %c0_i32, %c0_i32_0 : i32, i32
  }
  func.func @transform_3(%arg0: i32) -> (i32, i32) {
    %c0_i32 = arith.constant 0 : i32
    %c0_i32_0 = arith.constant 0 : i32
    %c0_i32_1 = arith.constant 0 : i32
    return %c0_i32, %c0_i32_0 : i32, i32
  }
  func.func @transform_4(%arg0: i32) -> (i32, i32) {
    %c0_i32 = arith.constant 0 : i32
    %c0_i32_0 = arith.constant 0 : i32
    %c0_i32_1 = arith.constant 0 : i32
    return %c0_i32, %c0_i32_0 : i32, i32
  }
  func.func @transform_5(%arg0: i32) -> (i32, i32, i32) {
    %c0_i32 = arith.constant 0 : i32
    %c0_i32_0 = arith.constant 0 : i32
    %c0_i32_1 = arith.constant 0 : i32
    %c0_i32_2 = arith.constant 0 : i32
    return %c0_i32, %c0_i32_0, %c0_i32_1 : i32, i32, i32
  }
  func.func @transform_6(%arg0: i32) -> (i32, i32) {
    %c0_i32 = arith.constant 0 : i32
    %c0_i32_0 = arith.constant 0 : i32
    %c0_i32_1 = arith.constant 0 : i32
    return %c0_i32, %c0_i32_0 : i32, i32
  }
  func.func @transform_7(%arg0: i32) -> (i32, i32) {
    %c0_i32 = arith.constant 0 : i32
    %c0_i32_0 = arith.constant 0 : i32
    %c0_i32_1 = arith.constant 0 : i32
    return %c0_i32, %c0_i32_0 : i32, i32
  }
  func.func @transform_8(%arg0: i32) -> (i32, i32) {
    %c0_i32 = arith.constant 0 : i32
    %c0_i32_0 = arith.constant 0 : i32
    %c0_i32_1 = arith.constant 0 : i32
    return %c0_i32, %c0_i32_0 : i32, i32
  }
  func.func @transform_9(%arg0: i32) -> (i32, i32) {
    %c0_i32 = arith.constant 0 : i32
    %c0_i32_0 = arith.constant 0 : i32
    %c0_i32_1 = arith.constant 0 : i32
    return %c0_i32, %c0_i32_0 : i32, i32
  }
  func.func @transform_10(%arg0: i32) -> (i32, i32) {
    %c0_i32 = arith.constant 0 : i32
    %c0_i32_0 = arith.constant 0 : i32
    %c0_i32_1 = arith.constant 0 : i32
    return %c0_i32, %c0_i32_0 : i32, i32
  }
  func.func @transform_11(%arg0: i32) -> (i32, i32) {
    %c0_i32 = arith.constant 0 : i32
    %c0_i32_0 = arith.constant 0 : i32
    %c0_i32_1 = arith.constant 0 : i32
    return %c0_i32, %c0_i32_0 : i32, i32
  }
  func.func @transform_12(%arg0: i32) -> (i32, i32) {
    %c0_i32 = arith.constant 0 : i32
    %c0_i32_0 = arith.constant 0 : i32
    %c0_i32_1 = arith.constant 0 : i32
    return %c0_i32, %c0_i32_0 : i32, i32
  }
  func.func @transform_13(%arg0: i32) -> (i32, i32) {
    %c0_i32 = arith.constant 0 : i32
    %c0_i32_0 = arith.constant 0 : i32
    %c0_i32_1 = arith.constant 0 : i32
    return %c0_i32, %c0_i32_0 : i32, i32
  }
  func.func @transform_14(%arg0: i32) -> (i32, i32) {
    %c0_i32 = arith.constant 0 : i32
    %c0_i32_0 = arith.constant 0 : i32
    %c0_i32_1 = arith.constant 0 : i32
    return %c0_i32, %c0_i32_0 : i32, i32
  }
  func.func @transform_15(%arg0: i32) -> (i32, i32) {
    %c0_i32 = arith.constant 0 : i32
    %c0_i32_0 = arith.constant 0 : i32
    %c0_i32_1 = arith.constant 0 : i32
    return %c0_i32, %c0_i32_0 : i32, i32
  }
  func.func @transform_16(%arg0: i32) -> (i32, i32) {
    %c0_i32 = arith.constant 0 : i32
    %c0_i32_0 = arith.constant 0 : i32
    %c0_i32_1 = arith.constant 0 : i32
    return %c0_i32, %c0_i32_0 : i32, i32
  }
  func.func @transform_17(%arg0: i32) -> (i32, i32, i32) {
    %c0_i32 = arith.constant 0 : i32
    %c0_i32_0 = arith.constant 0 : i32
    %c0_i32_1 = arith.constant 0 : i32
    return %arg0, %c0_i32, %c0_i32_0 : i32, i32, i32
  }
}

</mosaic_0001>

<llo_original>
// kernel: policy_net_forward.1
$region0: #{policy_net_forward.1}
  #allocation0 [shape = 'u32[]', space=smem, size = 0x4, offset = 0x4, fixed_abs, tag = 'smem constant byte address 0x4 - core index']
  #allocation1 [shape = 'u32[144,128]{1,0:T(1,128)}', space=vmem, size = 0x12000, scoped, tag = 'internal scratch']
  %s0 = inlined_call_operand.vmem [shape: bf16[2,196,128], index: 0, kind: input, shape index: {}]
  %s1 = inlined_call_operand.vmem [shape: bf16[128,16], index: 1, kind: input, shape index: {}]
  %s2 = inlined_call_operand.vmem [shape: f32[1,16], index: 2, kind: input, shape index: {}]
  %s3 = inlined_call_operand.vmem [shape: f32[1,16], index: 3, kind: input, shape index: {}]
  %s4 = inlined_call_operand.vmem [shape: bf16[800,196], index: 4, kind: input, shape index: {}]
  %s5 = inlined_call_operand.vmem [shape: bf16[25,16,32], index: 5, kind: input, shape index: {}]
  %s6 = inlined_call_operand.vmem [shape: f32[1,32], index: 6, kind: input, shape index: {}]
  %s7 = inlined_call_operand.vmem [shape: f32[1,32], index: 7, kind: input, shape index: {}]
  %s8 = inlined_call_operand.vmem [shape: bf16[32,800], index: 8, kind: input, shape index: {}]
  %s9 = inlined_call_operand.vmem [shape: f32[32,800], index: 9, kind: input, shape index: {}]
  %s10 = inlined_call_operand.vmem [shape: bf16[800,32], index: 10, kind: input, shape index: {}]
  %s11 = inlined_call_operand.vmem [shape: f32[1,32], index: 11, kind: input, shape index: {}]
  %s12 = inlined_call_operand.vmem [shape: f32[1,32], index: 12, kind: input, shape index: {}]
  %s13 = inlined_call_operand.vmem [shape: bf16[32,8], index: 13, kind: input, shape index: {}]
  %s14 = inlined_call_operand.vmem [shape: f32[1,8], index: 14, kind: input, shape index: {}]
  %s15 = inlined_call_operand.vmem [shape: bf16[8,4], index: 15, kind: input, shape index: {}]
  %s16 = inlined_call_operand.vmem [shape: f32[1,4], index: 16, kind: input, shape index: {}]
  %s17 = inlined_call_operand.hbm [shape: f32[2,1,4], index: 17, kind: output, shape index: {}]
  %s18 = sld [smem:[#allocation0]]
  $region101: #{policy_net_forward.1} parent=0
    _
  %s20 = ssub.s32 1, %s18
  %s21 = scalar_select 0, %s20, %s18
  $region1: #{policy_net_forward.1} parent=0
    #allocation2 [shape = 'u8[1024]{0}', space=vmem, size = 0x400, scoped, tag = 'output window, operand 0']
    #allocation3 [shape = 's32[2]{0}', space=sflag, size = 0x8, scoped, tag = 'scoped memory for policy_net_forward.1']
    %22 = vsyncpa [#allocation3], 0
    %s23 = scalar_lea.sflag [#allocation3], 1
    %24 = vsyncpa %s23, 0
    loop: start=0, step=1, limit=4
    $region2: #{policy_net_forward.1} parent=1 // loop_pre_header
      _
    $region3: #{policy_net_forward.1} parent=1 // loop_header
      %s26 = sphi 0, %s30
      %p27 = scmp.ge.s32.totalorder %s26, 4
      %s36 = sphi 0, %s38
      %s39 = sphi 0, %s36
      %s40 = sphi 0, %s39
      %s56 = sphi 0, %s40
      %s60 = sphi 0, %s60
      %s62 = sphi 0, %s60
      %s63 = sphi 0, %s62
      %s77 = sphi 0, %s63
      %s81 = sphi 0, %s81
      %s83 = sphi 0, %s81
      %s84 = sphi 0, %s83
      %s98 = sphi 0, %s84
      %s102 = sphi 0, %s102
      %s104 = sphi 0, %s102
      %s105 = sphi 0, %s104
      %s119 = sphi 0, %s105
      %s123 = sphi 0, %s123
      %s125 = sphi 0, %s123
      %s126 = sphi 0, %s125
      %s140 = sphi 0, %s126
      %s144 = sphi 0, %s144
      %s146 = sphi 0, %s144
      %s147 = sphi 0, %s146
      %s161 = sphi 0, %s147
      %s165 = sphi 0, %s165
      %s167 = sphi 0, %s165
      %s168 = sphi 0, %s167
      %s182 = sphi 0, %s168
      %s186 = sphi 0, %s186
      %s188 = sphi 0, %s186
      %s189 = sphi 0, %s188
      %s203 = sphi 0, %s189
      %s207 = sphi 0, %s207
      %s209 = sphi 0, %s207
      %s210 = sphi 0, %s209
      %s224 = sphi 0, %s210
      %s228 = sphi 0, %s228
      %s230 = sphi 0, %s228
      %s231 = sphi 0, %s230
      %s245 = sphi 0, %s231
      %s249 = sphi 0, %s249
      %s251 = sphi 0, %s249
      %s252 = sphi 0, %s251
      %s266 = sphi 0, %s252
      %s270 = sphi 0, %s270
      %s272 = sphi 0, %s270
      %s273 = sphi 0, %s272
      %s287 = sphi 0, %s273
      %s291 = sphi 0, %s291
      %s293 = sphi 0, %s291
      %s294 = sphi 0, %s293
      %s308 = sphi 0, %s294
      %s312 = sphi 0, %s312
      %s314 = sphi 0, %s312
      %s315 = sphi 0, %s314
      %s329 = sphi 0, %s315
      %s333 = sphi 0, %s333
      %s335 = sphi 0, %s333
      %s336 = sphi 0, %s335
      %s350 = sphi 0, %s336
      %s354 = sphi 0, %s354
      %s356 = sphi 0, %s354
      %s357 = sphi 0, %s356
      %s371 = sphi 0, %s357
      %s375 = sphi 0, %s375
      %s377 = sphi 0, %s375
      %s378 = sphi 0, %s377
      %s392 = sphi 0, %s378
      %s398 = sphi 0, %s400
      %s401 = sphi 0, %s398
      %s402 = sphi 0, %s401
      %s418 = sphi 0, %s402
    $region4: #{policy_net_forward.1} parent=1 // loop_header_branch
      %29 = sbr.rel (%p27) target = $region8
    $region5: #{policy_net_forward.1} parent=1 // loop_body
      %s31 = ssub.s32 %s26, 1
      %s32 = ssub.s32 %s26, 2
      %s33 = sadd.s32 %s26, 1
      %s34 = ssub.s32 %s26, %s33
      %p35 = scmp.eq.s32.totalorder %s34, 0
      %s37 = sadd.s32 %s36, 1
      %s38 = scalar_select %p35, %s36, %s37
      %p41 = pneg %p35
      %p42 = scmp.eq.s32.totalorder %s26, 1
      %p43 = por %p41, %p42
      %p44 = scmp.ne.s32.totalorder %s36, %s39
      %p45 = scmp.eq.s32.totalorder %s26, 0
      %p46 = por %p44, %p45
      %p47 = scmp.ne.s32.totalorder %s36, %s39
      %p48 = scmp.eq.s32.totalorder %s31, 1
      %p49 = por %p47, %p48
      %p50 = scmp.ne.s32.totalorder %s39, %s40
      %p51 = scmp.eq.s32.totalorder %s31, 0
      %p52 = por %p50, %p51
      %p53 = scmp.ne.s32.totalorder %s39, %s40
      %p54 = scmp.eq.s32.totalorder %s32, 1
      %p55 = por %p53, %p54
      %p57 = scmp.ne.s32.totalorder %s40, %s56
      %p58 = scmp.eq.s32.totalorder %s32, 0
      %p59 = por %p57, %p58
      %s61 = sadd.s32 %s60, 1
      %p64 = scmp.eq.s32.totalorder %s26, 1
      %p65 = scmp.ne.s32.totalorder %s60, %s62
      %p66 = scmp.eq.s32.totalorder %s26, 0
      %p67 = por %p65, %p66
      %p68 = scmp.ne.s32.totalorder %s60, %s62
      %p69 = scmp.eq.s32.totalorder %s31, 1
      %p70 = por %p68, %p69
      %p71 = scmp.ne.s32.totalorder %s62, %s63
      %p72 = scmp.eq.s32.totalorder %s31, 0
      %p73 = por %p71, %p72
      %p74 = scmp.ne.s32.totalorder %s62, %s63
      %p75 = scmp.eq.s32.totalorder %s32, 1
      %p76 = por %p74, %p75
      %p78 = scmp.ne.s32.totalorder %s63, %s77
      %p79 = scmp.eq.s32.totalorder %s32, 0
      %p80 = por %p78, %p79
      %s82 = sadd.s32 %s81, 1
      %p85 = scmp.eq.s32.totalorder %s26, 1
      %p86 = scmp.ne.s32.totalorder %s81, %s83
      %p87 = scmp.eq.s32.totalorder %s26, 0
      %p88 = por %p86, %p87
      %p89 = scmp.ne.s32.totalorder %s81, %s83
      %p90 = scmp.eq.s32.totalorder %s31, 1
      %p91 = por %p89, %p90
      %p92 = scmp.ne.s32.totalorder %s83, %s84
      %p93 = scmp.eq.s32.totalorder %s31, 0
      %p94 = por %p92, %p93
      %p95 = scmp.ne.s32.totalorder %s83, %s84
      %p96 = scmp.eq.s32.totalorder %s32, 1
      %p97 = por %p95, %p96
      %p99 = scmp.ne.s32.totalorder %s84, %s98
      %p100 = scmp.eq.s32.totalorder %s32, 0
      %p101 = por %p99, %p100
      %s103 = sadd.s32 %s102, 1
      %p106 = scmp.eq.s32.totalorder %s26, 1
      %p107 = scmp.ne.s32.totalorder %s102, %s104
      %p108 = scmp.eq.s32.totalorder %s26, 0
      %p109 = por %p107, %p108
      %p110 = scmp.ne.s32.totalorder %s102, %s104
      %p111 = scmp.eq.s32.totalorder %s31, 1
      %p112 = por %p110, %p111
      %p113 = scmp.ne.s32.totalorder %s104, %s105
      %p114 = scmp.eq.s32.totalorder %s31, 0
      %p115 = por %p113, %p114
      %p116 = scmp.ne.s32.totalorder %s104, %s105
      %p117 = scmp.eq.s32.totalorder %s32, 1
      %p118 = por %p116, %p117
      %p120 = scmp.ne.s32.totalorder %s105, %s119
      %p121 = scmp.eq.s32.totalorder %s32, 0
      %p122 = por %p120, %p121
      %s124 = sadd.s32 %s123, 1
      %p127 = scmp.eq.s32.totalorder %s26, 1
      %p128 = scmp.ne.s32.totalorder %s123, %s125
      %p129 = scmp.eq.s32.totalorder %s26, 0
      %p130 = por %p128, %p129
      %p131 = scmp.ne.s32.totalorder %s123, %s125
      %p132 = scmp.eq.s32.totalorder %s31, 1
      %p133 = por %p131, %p132
      %p134 = scmp.ne.s32.totalorder %s125, %s126
      %p135 = scmp.eq.s32.totalorder %s31, 0
      %p136 = por %p134, %p135
      %p137 = scmp.ne.s32.totalorder %s125, %s126
      %p138 = scmp.eq.s32.totalorder %s32, 1
      %p139 = por %p137, %p138
      %p141 = scmp.ne.s32.totalorder %s126, %s140
      %p142 = scmp.eq.s32.totalorder %s32, 0
      %p143 = por %p141, %p142
      %s145 = sadd.s32 %s144, 1
      %p148 = scmp.eq.s32.totalorder %s26, 1
      %p149 = scmp.ne.s32.totalorder %s144, %s146
      %p150 = scmp.eq.s32.totalorder %s26, 0
      %p151 = por %p149, %p150
      %p152 = scmp.ne.s32.totalorder %s144, %s146
      %p153 = scmp.eq.s32.totalorder %s31, 1
      %p154 = por %p152, %p153
      %p155 = scmp.ne.s32.totalorder %s146, %s147
      %p156 = scmp.eq.s32.totalorder %s31, 0
      %p157 = por %p155, %p156
      %p158 = scmp.ne.s32.totalorder %s146, %s147
      %p159 = scmp.eq.s32.totalorder %s32, 1
      %p160 = por %p158, %p159
      %p162 = scmp.ne.s32.totalorder %s147, %s161
      %p163 = scmp.eq.s32.totalorder %s32, 0
      %p164 = por %p162, %p163
      %s166 = sadd.s32 %s165, 1
      %p169 = scmp.eq.s32.totalorder %s26, 1
      %p170 = scmp.ne.s32.totalorder %s165, %s167
      %p171 = scmp.eq.s32.totalorder %s26, 0
      %p172 = por %p170, %p171
      %p173 = scmp.ne.s32.totalorder %s165, %s167
      %p174 = scmp.eq.s32.totalorder %s31, 1
      %p175 = por %p173, %p174
      %p176 = scmp.ne.s32.totalorder %s167, %s168
      %p177 = scmp.eq.s32.totalorder %s31, 0
      %p178 = por %p176, %p177
      %p179 = scmp.ne.s32.totalorder %s167, %s168
      %p180 = scmp.eq.s32.totalorder %s32, 1
      %p181 = por %p179, %p180
      %p183 = scmp.ne.s32.totalorder %s168, %s182
      %p184 = scmp.eq.s32.totalorder %s32, 0
      %p185 = por %p183, %p184
      %s187 = sadd.s32 %s186, 1
      %p190 = scmp.eq.s32.totalorder %s26, 1
      %p191 = scmp.ne.s32.totalorder %s186, %s188
      %p192 = scmp.eq.s32.totalorder %s26, 0
      %p193 = por %p191, %p192
      %p194 = scmp.ne.s32.totalorder %s186, %s188
      %p195 = scmp.eq.s32.totalorder %s31, 1
      %p196 = por %p194, %p195
      %p197 = scmp.ne.s32.totalorder %s188, %s189
      %p198 = scmp.eq.s32.totalorder %s31, 0
      %p199 = por %p197, %p198
      %p200 = scmp.ne.s32.totalorder %s188, %s189
      %p201 = scmp.eq.s32.totalorder %s32, 1
      %p202 = por %p200, %p201
      %p204 = scmp.ne.s32.totalorder %s189, %s203
      %p205 = scmp.eq.s32.totalorder %s32, 0
      %p206 = por %p204, %p205
      %s208 = sadd.s32 %s207, 1
      %p211 = scmp.eq.s32.totalorder %s26, 1
      %p212 = scmp.ne.s32.totalorder %s207, %s209
      %p213 = scmp.eq.s32.totalorder %s26, 0
      %p214 = por %p212, %p213
      %p215 = scmp.ne.s32.totalorder %s207, %s209
      %p216 = scmp.eq.s32.totalorder %s31, 1
      %p217 = por %p215, %p216
      %p218 = scmp.ne.s32.totalorder %s209, %s210
      %p219 = scmp.eq.s32.totalorder %s31, 0
      %p220 = por %p218, %p219
      %p221 = scmp.ne.s32.totalorder %s209, %s210
      %p222 = scmp.eq.s32.totalorder %s32, 1
      %p223 = por %p221, %p222
      %p225 = scmp.ne.s32.totalorder %s210, %s224
      %p226 = scmp.eq.s32.totalorder %s32, 0
      %p227 = por %p225, %p226
      %s229 = sadd.s32 %s228, 1
      %p232 = scmp.eq.s32.totalorder %s26, 1
      %p233 = scmp.ne.s32.totalorder %s228, %s230
      %p234 = scmp.eq.s32.totalorder %s26, 0
      %p235 = por %p233, %p234
      %p236 = scmp.ne.s32.totalorder %s228, %s230
      %p237 = scmp.eq.s32.totalorder %s31, 1
      %p238 = por %p236, %p237
      %p239 = scmp.ne.s32.totalorder %s230, %s231
      %p240 = scmp.eq.s32.totalorder %s31, 0
      %p241 = por %p239, %p240
      %p242 = scmp.ne.s32.totalorder %s230, %s231
      %p243 = scmp.eq.s32.totalorder %s32, 1
      %p244 = por %p242, %p243
      %p246 = scmp.ne.s32.totalorder %s231, %s245
      %p247 = scmp.eq.s32.totalorder %s32, 0
      %p248 = por %p246, %p247
      %s250 = sadd.s32 %s249, 1
      %p253 = scmp.eq.s32.totalorder %s26, 1
      %p254 = scmp.ne.s32.totalorder %s249, %s251
      %p255 = scmp.eq.s32.totalorder %s26, 0
      %p256 = por %p254, %p255
      %p257 = scmp.ne.s32.totalorder %s249, %s251
      %p258 = scmp.eq.s32.totalorder %s31, 1
      %p259 = por %p257, %p258
      %p260 = scmp.ne.s32.totalorder %s251, %s252
      %p261 = scmp.eq.s32.totalorder %s31, 0
      %p262 = por %p260, %p261
      %p263 = scmp.ne.s32.totalorder %s251, %s252
      %p264 = scmp.eq.s32.totalorder %s32, 1
      %p265 = por %p263, %p264
      %p267 = scmp.ne.s32.totalorder %s252, %s266
      %p268 = scmp.eq.s32.totalorder %s32, 0
      %p269 = por %p267, %p268
      %s271 = sadd.s32 %s270, 1
      %p274 = scmp.eq.s32.totalorder %s26, 1
      %p275 = scmp.ne.s32.totalorder %s270, %s272
      %p276 = scmp.eq.s32.totalorder %s26, 0
      %p277 = por %p275, %p276
      %p278 = scmp.ne.s32.totalorder %s270, %s272
      %p279 = scmp.eq.s32.totalorder %s31, 1
      %p280 = por %p278, %p279
      %p281 = scmp.ne.s32.totalorder %s272, %s273
      %p282 = scmp.eq.s32.totalorder %s31, 0
      %p283 = por %p281, %p282
      %p284 = scmp.ne.s32.totalorder %s272, %s273
      %p285 = scmp.eq.s32.totalorder %s32, 1
      %p286 = por %p284, %p285
      %p288 = scmp.ne.s32.totalorder %s273, %s287
      %p289 = scmp.eq.s32.totalorder %s32, 0
      %p290 = por %p288, %p289
      %s292 = sadd.s32 %s291, 1
      %p295 = scmp.eq.s32.totalorder %s26, 1
      %p296 = scmp.ne.s32.totalorder %s291, %s293
      %p297 = scmp.eq.s32.totalorder %s26, 0
      %p298 = por %p296, %p297
      %p299 = scmp.ne.s32.totalorder %s291, %s293
      %p300 = scmp.eq.s32.totalorder %s31, 1
      %p301 = por %p299, %p300
      %p302 = scmp.ne.s32.totalorder %s293, %s294
      %p303 = scmp.eq.s32.totalorder %s31, 0
      %p304 = por %p302, %p303
      %p305 = scmp.ne.s32.totalorder %s293, %s294
      %p306 = scmp.eq.s32.totalorder %s32, 1
      %p307 = por %p305, %p306
      %p309 = scmp.ne.s32.totalorder %s294, %s308
      %p310 = scmp.eq.s32.totalorder %s32, 0
      %p311 = por %p309, %p310
      %s313 = sadd.s32 %s312, 1
      %p316 = scmp.eq.s32.totalorder %s26, 1
      %p317 = scmp.ne.s32.totalorder %s312, %s314
      %p318 = scmp.eq.s32.totalorder %s26, 0
      %p319 = por %p317, %p318
      %p320 = scmp.ne.s32.totalorder %s312, %s314
      %p321 = scmp.eq.s32.totalorder %s31, 1
      %p322 = por %p320, %p321
      %p323 = scmp.ne.s32.totalorder %s314, %s315
      %p324 = scmp.eq.s32.totalorder %s31, 0
      %p325 = por %p323, %p324
      %p326 = scmp.ne.s32.totalorder %s314, %s315
      %p327 = scmp.eq.s32.totalorder %s32, 1
      %p328 = por %p326, %p327
      %p330 = scmp.ne.s32.totalorder %s315, %s329
      %p331 = scmp.eq.s32.totalorder %s32, 0
      %p332 = por %p330, %p331
      %s334 = sadd.s32 %s333, 1
      %p337 = scmp.eq.s32.totalorder %s26, 1
      %p338 = scmp.ne.s32.totalorder %s333, %s335
      %p339 = scmp.eq.s32.totalorder %s26, 0
      %p340 = por %p338, %p339
      %p341 = scmp.ne.s32.totalorder %s333, %s335
      %p342 = scmp.eq.s32.totalorder %s31, 1
      %p343 = por %p341, %p342
      %p344 = scmp.ne.s32.totalorder %s335, %s336
      %p345 = scmp.eq.s32.totalorder %s31, 0
      %p346 = por %p344, %p345
      %p347 = scmp.ne.s32.totalorder %s335, %s336
      %p348 = scmp.eq.s32.totalorder %s32, 1
      %p349 = por %p347, %p348
      %p351 = scmp.ne.s32.totalorder %s336, %s350
      %p352 = scmp.eq.s32.totalorder %s32, 0
      %p353 = por %p351, %p352
      %s355 = sadd.s32 %s354, 1
      %p358 = scmp.eq.s32.totalorder %s26, 1
      %p359 = scmp.ne.s32.totalorder %s354, %s356
      %p360 = scmp.eq.s32.totalorder %s26, 0
      %p361 = por %p359, %p360
      %p362 = scmp.ne.s32.totalorder %s354, %s356
      %p363 = scmp.eq.s32.totalorder %s31, 1
      %p364 = por %p362, %p363
      %p365 = scmp.ne.s32.totalorder %s356, %s357
      %p366 = scmp.eq.s32.totalorder %s31, 0
      %p367 = por %p365, %p366
      %p368 = scmp.ne.s32.totalorder %s356, %s357
      %p369 = scmp.eq.s32.totalorder %s32, 1
      %p370 = por %p368, %p369
      %p372 = scmp.ne.s32.totalorder %s357, %s371
      %p373 = scmp.eq.s32.totalorder %s32, 0
      %p374 = por %p372, %p373
      %s376 = sadd.s32 %s375, 1
      %p379 = scmp.eq.s32.totalorder %s26, 1
      %p380 = scmp.ne.s32.totalorder %s375, %s377
      %p381 = scmp.eq.s32.totalorder %s26, 0
      %p382 = por %p380, %p381
      %p383 = scmp.ne.s32.totalorder %s375, %s377
      %p384 = scmp.eq.s32.totalorder %s31, 1
      %p385 = por %p383, %p384
      %p386 = scmp.ne.s32.totalorder %s377, %s378
      %p387 = scmp.eq.s32.totalorder %s31, 0
      %p388 = por %p386, %p387
      %p389 = scmp.ne.s32.totalorder %s377, %s378
      %p390 = scmp.eq.s32.totalorder %s32, 1
      %p391 = por %p389, %p390
      %p393 = scmp.ne.s32.totalorder %s378, %s392
      %p394 = scmp.eq.s32.totalorder %s32, 0
      %p395 = por %p393, %p394
      %s396 = ssub.s32 %s26, %s33
      %p397 = scmp.eq.s32.totalorder %s396, 0
      %s399 = sadd.s32 %s398, 1
      %s400 = scalar_select %p397, %s398, %s399
      %p403 = pneg %p397
      %p404 = scmp.eq.s32.totalorder %s26, 1
      %p405 = por %p403, %p404
      %p406 = scmp.ne.s32.totalorder %s398, %s401
      %p407 = scmp.eq.s32.totalorder %s26, 0
      %p408 = por %p406, %p407
      %p409 = scmp.ne.s32.totalorder %s398, %s401
      %p410 = scmp.eq.s32.totalorder %s31, 1
      %p411 = por %p409, %p410
      %p412 = scmp.ne.s32.totalorder %s401, %s402
      %p413 = scmp.eq.s32.totalorder %s31, 0
      %p414 = por %p412, %p413
      %p415 = scmp.ne.s32.totalorder %s401, %s402
      %p416 = scmp.eq.s32.totalorder %s32, 1
      %p417 = por %p415, %p416
      %p419 = scmp.ne.s32.totalorder %s402, %s418
      %p420 = scmp.eq.s32.totalorder %s32, 0
      %p421 = por %p419, %p420
      %p422 = scmp.le.s32.totalorder 1, %s26
      %p423 = scmp.lt.s32.totalorder %s26, 3
      %p424 = pnand %p422, %p423
      %p425 = pneg %p424
      // Predicated region
      $region9: #{policy_net_forward.1} parent=5 // pred_check
        _
      $region10: #{policy_net_forward.1} parent=5 // pred_check_branch
        %427 = sbr.rel (%p424) target = $region12
      $region11: #{policy_net_forward.1} parent=5 // pred_region
        %s428 = ssub.s32 %s26, 1
        // Predicated region
        $region13: #{policy_net_forward.1} parent=11 // pred_check
          %p429 = pneg %p73
        $region14: #{policy_net_forward.1} parent=11 // pred_check_branch
          %431 = sbr.rel (%p429) target = $region16
        $region15: #{policy_net_forward.1} parent=11 // pred_region
          _
        $region16: #{policy_net_forward.1} parent=11 // pred_fallthru
          _
        // Predicated region
        $region17: #{policy_net_forward.1} parent=11 // pred_check
          %p432 = pneg %p94
        $region18: #{policy_net_forward.1} parent=11 // pred_check_branch
          %434 = sbr.rel (%p432) target = $region20
        $region19: #{policy_net_forward.1} parent=11 // pred_region
          _
        $region20: #{policy_net_forward.1} parent=11 // pred_fallthru
          _
        // Predicated region
        $region21: #{policy_net_forward.1} parent=11 // pred_check
          %p435 = pneg %p115
        $region22: #{policy_net_forward.1} parent=11 // pred_check_branch
          %437 = sbr.rel (%p435) target = $region24
        $region23: #{policy_net_forward.1} parent=11 // pred_region
          _
        $region24: #{policy_net_forward.1} parent=11 // pred_fallthru
          _
        // Predicated region
        $region25: #{policy_net_forward.1} parent=11 // pred_check
          %p438 = pneg %p136
        $region26: #{policy_net_forward.1} parent=11 // pred_check_branch
          %440 = sbr.rel (%p438) target = $region28
        $region27: #{policy_net_forward.1} parent=11 // pred_region
          _
        $region28: #{policy_net_forward.1} parent=11 // pred_fallthru
          _
        // Predicated region
        $region29: #{policy_net_forward.1} parent=11 // pred_check
          %p441 = pneg %p157
        $region30: #{policy_net_forward.1} parent=11 // pred_check_branch
          %443 = sbr.rel (%p441) target = $region32
        $region31: #{policy_net_forward.1} parent=11 // pred_region
          _
        $region32: #{policy_net_forward.1} parent=11 // pred_fallthru
          _
        // Predicated region
        $region33: #{policy_net_forward.1} parent=11 // pred_check
          %p444 = pneg %p178
        $region34: #{policy_net_forward.1} parent=11 // pred_check_branch
          %446 = sbr.rel (%p444) target = $region36
        $region35: #{policy_net_forward.1} parent=11 // pred_region
          _
        $region36: #{policy_net_forward.1} parent=11 // pred_fallthru
          _
        // Predicated region
        $region37: #{policy_net_forward.1} parent=11 // pred_check
          %p447 = pneg %p199
        $region38: #{policy_net_forward.1} parent=11 // pred_check_branch
          %449 = sbr.rel (%p447) target = $region40
        $region39: #{policy_net_forward.1} parent=11 // pred_region
          _
        $region40: #{policy_net_forward.1} parent=11 // pred_fallthru
          _
        // Predicated region
        $region41: #{policy_net_forward.1} parent=11 // pred_check
          %p450 = pneg %p220
        $region42: #{policy_net_forward.1} parent=11 // pred_check_branch
          %452 = sbr.rel (%p450) target = $region44
        $region43: #{policy_net_forward.1} parent=11 // pred_region
          _
        $region44: #{policy_net_forward.1} parent=11 // pred_fallthru
          _
        // Predicated region
        $region45: #{policy_net_forward.1} parent=11 // pred_check
          %p453 = pneg %p241
        $region46: #{policy_net_forward.1} parent=11 // pred_check_branch
          %455 = sbr.rel (%p453) target = $region48
        $region47: #{policy_net_forward.1} parent=11 // pred_region
          _
        $region48: #{policy_net_forward.1} parent=11 // pred_fallthru
          _
        // Predicated region
        $region49: #{policy_net_forward.1} parent=11 // pred_check
          %p456 = pneg %p262
        $region50: #{policy_net_forward.1} parent=11 // pred_check_branch
          %458 = sbr.rel (%p456) target = $region52
        $region51: #{policy_net_forward.1} parent=11 // pred_region
          _
        $region52: #{policy_net_forward.1} parent=11 // pred_fallthru
          _
        // Predicated region
        $region53: #{policy_net_forward.1} parent=11 // pred_check
          %p459 = pneg %p283
        $region54: #{policy_net_forward.1} parent=11 // pred_check_branch
          %461 = sbr.rel (%p459) target = $region56
        $region55: #{policy_net_forward.1} parent=11 // pred_region
          _
        $region56: #{policy_net_forward.1} parent=11 // pred_fallthru
          _
        // Predicated region
        $region57: #{policy_net_forward.1} parent=11 // pred_check
          %p462 = pneg %p304
        $region58: #{policy_net_forward.1} parent=11 // pred_check_branch
          %464 = sbr.rel (%p462) target = $region60
        $region59: #{policy_net_forward.1} parent=11 // pred_region
          _
        $region60: #{policy_net_forward.1} parent=11 // pred_fallthru
          _
        // Predicated region
        $region61: #{policy_net_forward.1} parent=11 // pred_check
          %p465 = pneg %p325
        $region62: #{policy_net_forward.1} parent=11 // pred_check_branch
          %467 = sbr.rel (%p465) target = $region64
        $region63: #{policy_net_forward.1} parent=11 // pred_region
          _
        $region64: #{policy_net_forward.1} parent=11 // pred_fallthru
          _
        // Predicated region
        $region65: #{policy_net_forward.1} parent=11 // pred_check
          %p468 = pneg %p346
        $region66: #{policy_net_forward.1} parent=11 // pred_check_branch
          %470 = sbr.rel (%p468) target = $region68
        $region67: #{policy_net_forward.1} parent=11 // pred_region
          _
        $region68: #{policy_net_forward.1} parent=11 // pred_fallthru
          _
        // Predicated region
        $region69: #{policy_net_forward.1} parent=11 // pred_check
          %p471 = pneg %p367
        $region70: #{policy_net_forward.1} parent=11 // pred_check_branch
          %473 = sbr.rel (%p471) target = $region72
        $region71: #{policy_net_forward.1} parent=11 // pred_region
          _
        $region72: #{policy_net_forward.1} parent=11 // pred_fallthru
          _
        // Predicated region
        $region73: #{policy_net_forward.1} parent=11 // pred_check
          %p474 = pneg %p388
        $region74: #{policy_net_forward.1} parent=11 // pred_check_branch
          %476 = sbr.rel (%p474) target = $region76
        $region75: #{policy_net_forward.1} parent=11 // pred_region
          _
        $region76: #{policy_net_forward.1} parent=11 // pred_fallthru
          _
      $region12: #{policy_net_forward.1} parent=5 // pred_fallthru
        _
      %p477 = scmp.lt.s32.totalorder %s26, 2
      // Predicated region
      $region77: #{policy_net_forward.1} parent=5 // pred_check
        %p478 = pneg %p477
      $region78: #{policy_net_forward.1} parent=5 // pred_check_branch
        %480 = sbr.rel (%p478) target = $region80
      $region79: #{policy_net_forward.1} parent=5 // pred_region
        // Predicated region
        $region81: #{policy_net_forward.1} parent=79 // pred_check
          %p481 = pneg %p46
        $region82: #{policy_net_forward.1} parent=79 // pred_check_branch
          %483 = sbr.rel (%p481) target = $region84
        $region83: #{policy_net_forward.1} parent=79 // pred_region
          %p484 = scmp.lt.s32.totalorder %s26, 1
          %s485 = scalar_select %p484, %s26, 1
          %s486 = smul.addr %s485, 25
          %s487 = smul.addr %s486, 4
          %s488 = scalar_lea.vmem %s0, %s487
        $region84: #{policy_net_forward.1} parent=79 // pred_fallthru
          _
      $region80: #{policy_net_forward.1} parent=5 // pred_fallthru
        _
      %p489 = scmp.le.s32.totalorder 1, %s26
      %p490 = scmp.lt.s32.totalorder %s26, 3
      %p491 = pnand %p489, %p490
      %p492 = pneg %p491
      // Predicated region
      $region85: #{policy_net_forward.1} parent=5 // pred_check
        _
      $region86: #{policy_net_forward.1} parent=5 // pred_check_branch
        %494 = sbr.rel (%p491) target = $region88
      $region87: #{policy_net_forward.1} parent=5 // pred_region
        %s495 = ssub.s32 %s26, 1
        %p496 = scmp.lt.s32.totalorder %s31, 1
        %s497 = scalar_select %p496, %s31, 1
        %s498 = smul.addr %s497, 25
        %s499 = smul.addr %s498, 4
        %s500 = scalar_lea.vmem %s0, %s499
        %p501 = pneg %p52
        %p502 = pneg %p49
        %p503 = pneg %p73
        %p504 = pneg %p70
        %p505 = pneg %p94
        %p506 = pneg %p91
        %p507 = pneg %p115
        %p508 = pneg %p112
        %p509 = pneg %p136
        %p510 = pneg %p133
        %p511 = pneg %p157
        %p512 = pneg %p154
        %p513 = pneg %p178
        %p514 = pneg %p175
        %p515 = pneg %p199
        %p516 = pneg %p196
        %p517 = pneg %p220
        %p518 = pneg %p217
        %p519 = pneg %p241
        %p520 = pneg %p238
        %p521 = pneg %p262
        %p522 = pneg %p259
        %p523 = pneg %p283
        %p524 = pneg %p280
        %p525 = pneg %p304
        %p526 = pneg %p301
        %p527 = pneg %p325
        %p528 = pneg %p322
        %p529 = pneg %p346
        %p530 = pneg %p343
        %p531 = pneg %p367
        %p532 = pneg %p364
        %p533 = pneg %p388
        %p534 = pneg %p385
        %p535 = pneg %p414
        %p536 = pneg %p411
        %s537 = sand.u32 %s401, 1
        %s538 = scalar_lea.sflag [#allocation3], %s537
        %s539 = sand.u32 %s401, 1
        %s540 = scalar_lea.vmem [#allocation2], %s539
        %p541 = scmp.lt.s32.totalorder %s31, 1
        %s542 = scalar_select %p541, %s31, 1
        %s543 = smul.addr %s542, 25
        %s544 = smul.addr %s543, 4
        %s545 = scalar_lea.vmem %s0, %s544
        %v547 = vld [vmem:[%s545] sm:$0xf]
        %v548 = vld [vmem:[%s545 + $0x4] sm:$0xf]
        %v549 = vld [vmem:[%s545 + $0x8] sm:$0xf]
        %v550 = vld [vmem:[%s545 + $0xc] sm:$0xf]
        %v551 = vld [vmem:[%s545 + $0x10] sm:$0xf]
        %v552 = vld [vmem:[%s545 + $0x14] sm:$0xf]
        %v553 = vld [vmem:[%s545 + $0x18] sm:$0xf]
        %v554 = vld [vmem:[%s545 + $0x1c] sm:$0xf]
        %v555 = vld [vmem:[%s545 + $0x20] sm:$0xf]
        %v556 = vld [vmem:[%s545 + $0x24] sm:$0xf]
        %v557 = vld [vmem:[%s545 + $0x28] sm:$0xf]
        %v558 = vld [vmem:[%s545 + $0x2c] sm:$0xf]
        %v559 = vld [vmem:[%s545 + $0x30] sm:$0xf]
        %v560 = vld [vmem:[%s545 + $0x34] sm:$0xf]
        %v561 = vld [vmem:[%s545 + $0x38] sm:$0xf]
        %v562 = vld [vmem:[%s545 + $0x3c] sm:$0xf]
        %v563 = vld [vmem:[%s545 + $0x40] sm:$0xf]
        %v564 = vld [vmem:[%s545 + $0x44] sm:$0xf]
        %v565 = vld [vmem:[%s545 + $0x48] sm:$0xf]
        %v566 = vld [vmem:[%s545 + $0x4c] sm:$0xf]
        %v567 = vld [vmem:[%s545 + $0x50] sm:$0xf]
        %v568 = vld [vmem:[%s545 + $0x54] sm:$0xf]
        %v569 = vld [vmem:[%s545 + $0x58] sm:$0xf]
        %v570 = vld [vmem:[%s545 + $0x5c] sm:$0xf]
        %v571 = vld [vmem:[%s545 + $0x60] sm:$0x3]
        %v572 = vld [vmem:[%s1] sm:$0xf]
        %v573 = vld [vmem:[%s1 + $0x4] sm:$0xf]
        %v574 = vld [vmem:[%s1 + $0x8] sm:$0xf]
        %v575 = vld [vmem:[%s1 + $0xc] sm:$0xf]
        %v576 = vld [vmem:[%s1 + $0x10] sm:$0xf]
        %v577 = vld [vmem:[%s1 + $0x14] sm:$0xf]
        %v578 = vld [vmem:[%s1 + $0x18] sm:$0xf]
        %v579 = vld [vmem:[%s1 + $0x1c] sm:$0xf]
        %v580 = vld [vmem:[%s1 + $0x20] sm:$0xf]
        %v581 = vld [vmem:[%s1 + $0x24] sm:$0xf]
        %v582 = vld [vmem:[%s1 + $0x28] sm:$0xf]
        %v583 = vld [vmem:[%s1 + $0x2c] sm:$0xf]
        %v584 = vld [vmem:[%s1 + $0x30] sm:$0xf]
        %v585 = vld [vmem:[%s1 + $0x34] sm:$0xf]
        %v586 = vld [vmem:[%s1 + $0x38] sm:$0xf]
        %v587 = vld [vmem:[%s1 + $0x3c] sm:$0xf]
        %v613 = vunpack.c.l.b16 %v547
        %v614 = vunpack.c.l.b16 %v548
        %v615 = vunpack.c.l.b16 %v549
        %v616 = vunpack.c.l.b16 %v550
        %v617 = vunpack.c.l.b16 %v551
        %v618 = vunpack.c.l.b16 %v552
        %v619 = vunpack.c.l.b16 %v553
        %v620 = vunpack.c.l.b16 %v554
        %v621 = vunpack.c.l.b16 %v555
        %v622 = vunpack.c.l.b16 %v556
        %v623 = vunpack.c.l.b16 %v557
        %v624 = vunpack.c.l.b16 %v558
        %v625 = vunpack.c.l.b16 %v559
        %v626 = vunpack.c.l.b16 %v560
        %v627 = vunpack.c.l.b16 %v561
        %v628 = vunpack.c.l.b16 %v562
        %v629 = vunpack.c.l.b16 %v563
        %v630 = vunpack.c.l.b16 %v564
        %v631 = vunpack.c.l.b16 %v565
        %v632 = vunpack.c.l.b16 %v566
        %v633 = vunpack.c.l.b16 %v567
        %v634 = vunpack.c.l.b16 %v568
        %v635 = vunpack.c.l.b16 %v569
        %v636 = vunpack.c.l.b16 %v570
        %v637 = vunpack.c.l.b16 %v571
        %v638 = vpack.c.b16 %v614, %v613
        %v639 = vpack.c.b16 %v616, %v615
        %v640 = vpack.c.b16 %v618, %v617
        %v641 = vpack.c.b16 %v620, %v619
        %v642 = vpack.c.b16 %v622, %v621
        %v643 = vpack.c.b16 %v624, %v623
        %v644 = vpack.c.b16 %v626, %v625
        %v645 = vpack.c.b16 %v628, %v627
        %v646 = vpack.c.b16 %v630, %v629
        %v647 = vpack.c.b16 %v632, %v631
        %v648 = vpack.c.b16 %v634, %v633
        %v649 = vpack.c.b16 %v636, %v635
        %v650 = vpack.c.b16 %v637, %v637
        %v680 = vunpack.c.l.b16 %v572
        %v681 = vunpack.c.l.b16 %v573
        %v682 = vunpack.c.l.b16 %v574
        %v683 = vunpack.c.l.b16 %v575
        %v684 = vunpack.c.l.b16 %v576
        %v685 = vunpack.c.l.b16 %v577
        %v686 = vunpack.c.l.b16 %v578
        %v687 = vunpack.c.l.b16 %v579
        %v688 = vunpack.c.l.b16 %v580
        %v689 = vunpack.c.l.b16 %v581
        %v690 = vunpack.c.l.b16 %v582
        %v691 = vunpack.c.l.b16 %v583
        %v692 = vunpack.c.l.b16 %v584
        %v693 = vunpack.c.l.b16 %v585
        %v694 = vunpack.c.l.b16 %v586
        %v695 = vunpack.c.l.b16 %v587
        %v696 = vpack.c.b16 %v681, %v680
        %v697 = vpack.c.b16 %v683, %v682
        %v698 = vpack.c.b16 %v685, %v684
        %v699 = vpack.c.b16 %v687, %v686
        %v700 = vpack.c.b16 %v689, %v688
        %v701 = vpack.c.b16 %v691, %v690
        %v702 = vpack.c.b16 %v693, %v692
        %v703 = vpack.c.b16 %v695, %v694
        %712 = vmatprep.subr.bf16.mxu0 0
        %713 = vmatpush1.bf16.msra.mxu0 %v696
        %714 = vmatprep.subr.bf16.mxu0 0
        %715 = vmatpush1.bf16.msra.mxu0 %v697
        %716 = vmatprep.subr.bf16.mxu0 0
        %717 = vmatpush1.bf16.msra.mxu0 %v698
        %718 = vmatprep.subr.bf16.mxu0 0
        %719 = vmatpush1.bf16.msra.mxu0 %v699
        %720 = vmatprep.subr.bf16.mxu0 0
        %721 = vmatpush1.bf16.msra.mxu0 %v700
        %722 = vmatprep.subr.bf16.mxu0 0
        %723 = vmatpush1.bf16.msra.mxu0 %v701
        %724 = vmatprep.subr.bf16.mxu0 0
        %725 = vmatpush1.bf16.msra.mxu0 %v702
        %726 = vmatprep.subr.bf16.mxu0 0
        %727 = vmatpush1.bf16.msra.mxu0 %v703
        %728 = vmatprep.subr.bf16.mxu0 0
        %729 = vmatpush1.bf16.msra.mxu0 0
        %730 = vmatprep.subr.bf16.mxu0 0
        %731 = vmatpush1.bf16.msra.mxu0 0
        %732 = vmatprep.subr.bf16.mxu0 0
        %733 = vmatpush1.bf16.msra.mxu0 0
        %734 = vmatprep.subr.bf16.mxu0 0
        %735 = vmatpush1.bf16.msra.mxu0 0
        %736 = vmatprep.subr.bf16.mxu0 0
        %737 = vmatpush1.bf16.msra.mxu0 0
        %738 = vmatprep.subr.bf16.mxu0 0
        %739 = vmatpush1.bf16.msra.mxu0 0
        %740 = vmatprep.subr.bf16.mxu0 0
        %741 = vmatpush1.bf16.msra.mxu0 0
        %742 = vmatprep.subr.bf16.mxu0 0
        %743 = vmatpush1.bf16.msra.mxu0 0
        %744 = vmatprep.mubr.bf16.mxu0 0
        %745 = vmatmul.mubr.bf16.gmra.mrb[0].mxu0 %v638
        %v746 = vpop.f32.mrb[0].mxu0
        %v747 = vadd.f32 0.0, %v746
        %v748 = vpop.f32.mrb[0].mxu0
        %v749 = vpop.f32.mrb[0].mxu0
        %v750 = vadd.f32 0.0, %v749
        %v751 = vpop.f32.mrb[0].mxu0
        %752 = vmatprep.mubr.bf16.mxu0 0
        %753 = vmatmul.mubr.bf16.gmra.mrb[0].mxu0 %v639
        %v754 = vpop.f32.mrb[0].mxu0
        %v755 = vadd.f32 0.0, %v754
        %v756 = vpop.f32.mrb[0].mxu0
        %v757 = vpop.f32.mrb[0].mxu0
        %v758 = vadd.f32 0.0, %v757
        %v759 = vpop.f32.mrb[0].mxu0
        %760 = vmatprep.mubr.bf16.mxu0 0
        %761 = vmatmul.mubr.bf16.gmra.mrb[0].mxu0 %v640
        %v762 = vpop.f32.mrb[0].mxu0
        %v763 = vadd.f32 0.0, %v762
        %v764 = vpop.f32.mrb[0].mxu0
        %v765 = vpop.f32.mrb[0].mxu0
        %v766 = vadd.f32 0.0, %v765
        %v767 = vpop.f32.mrb[0].mxu0
        %768 = vmatprep.mubr.bf16.mxu0 0
        %769 = vmatmul.mubr.bf16.gmra.mrb[0].mxu0 %v641
        %v770 = vpop.f32.mrb[0].mxu0
        %v771 = vadd.f32 0.0, %v770
        %v772 = vpop.f32.mrb[0].mxu0
        %v773 = vpop.f32.mrb[0].mxu0
        %v774 = vadd.f32 0.0, %v773
        %v775 = vpop.f32.mrb[0].mxu0
        %776 = vmatprep.mubr.bf16.mxu0 0
        %777 = vmatmul.mubr.bf16.gmra.mrb[0].mxu0 %v642
        %v778 = vpop.f32.mrb[0].mxu0
        %v779 = vadd.f32 0.0, %v778
        %v780 = vpop.f32.mrb[0].mxu0
        %v781 = vpop.f32.mrb[0].mxu0
        %v782 = vadd.f32 0.0, %v781
        %v783 = vpop.f32.mrb[0].mxu0
        %784 = vmatprep.mubr.bf16.mxu0 0
        %785 = vmatmul.mubr.bf16.gmra.mrb[0].mxu0 %v643
        %v786 = vpop.f32.mrb[0].mxu0
        %v787 = vadd.f32 0.0, %v786
        %v788 = vpop.f32.mrb[0].mxu0
        %v789 = vpop.f32.mrb[0].mxu0
        %v790 = vadd.f32 0.0, %v789
        %v791 = vpop.f32.mrb[0].mxu0
        %792 = vmatprep.mubr.bf16.mxu0 0
        %793 = vmatmul.mubr.bf16.gmra.mrb[0].mxu0 %v644
        %v794 = vpop.f32.mrb[0].mxu0
        %v795 = vadd.f32 0.0, %v794
        %v796 = vpop.f32.mrb[0].mxu0
        %v797 = vpop.f32.mrb[0].mxu0
        %v798 = vadd.f32 0.0, %v797
        %v799 = vpop.f32.mrb[0].mxu0
        %800 = vmatprep.mubr.bf16.mxu0 0
        %801 = vmatmul.mubr.bf16.gmra.mrb[0].mxu0 %v645
        %v802 = vpop.f32.mrb[0].mxu0
        %v803 = vadd.f32 0.0, %v802
        %v804 = vpop.f32.mrb[0].mxu0
        %v805 = vpop.f32.mrb[0].mxu0
        %v806 = vadd.f32 0.0, %v805
        %v807 = vpop.f32.mrb[0].mxu0
        %808 = vmatprep.mubr.bf16.mxu0 0
        %809 = vmatmul.mubr.bf16.gmra.mrb[0].mxu0 %v646
        %v810 = vpop.f32.mrb[0].mxu0
        %v811 = vadd.f32 0.0, %v810
        %v812 = vpop.f32.mrb[0].mxu0
        %v813 = vpop.f32.mrb[0].mxu0
        %v814 = vadd.f32 0.0, %v813
        %v815 = vpop.f32.mrb[0].mxu0
        %816 = vmatprep.mubr.bf16.mxu0 0
        %817 = vmatmul.mubr.bf16.gmra.mrb[0].mxu0 %v647
        %v818 = vpop.f32.mrb[0].mxu0
        %v819 = vadd.f32 0.0, %v818
        %v820 = vpop.f32.mrb[0].mxu0
        %v821 = vpop.f32.mrb[0].mxu0
        %v822 = vadd.f32 0.0, %v821
        %v823 = vpop.f32.mrb[0].mxu0
        %824 = vmatprep.mubr.bf16.mxu0 0
        %825 = vmatmul.mubr.bf16.gmra.mrb[0].mxu0 %v648
        %v826 = vpop.f32.mrb[0].mxu0
        %v827 = vadd.f32 0.0, %v826
        %v828 = vpop.f32.mrb[0].mxu0
        %v829 = vpop.f32.mrb[0].mxu0
        %v830 = vadd.f32 0.0, %v829
        %v831 = vpop.f32.mrb[0].mxu0
        %832 = vmatprep.mubr.bf16.mxu0 0
        %833 = vmatmul.mubr.bf16.gmra.mrb[0].mxu0 %v649
        %v834 = vpop.f32.mrb[0].mxu0
        %v835 = vadd.f32 0.0, %v834
        %v836 = vpop.f32.mrb[0].mxu0
        %v837 = vpop.f32.mrb[0].mxu0
        %v838 = vadd.f32 0.0, %v837
        %v839 = vpop.f32.mrb[0].mxu0
        %840 = vmatprep.mubr.bf16.mxu0 0
        %841 = vmatmul.mubr.bf16.gmra.mrb[0].mxu0 %v650
        %v842 = vpop.f32.mrb[0].mxu0
        %v843 = vadd.f32 0.0, %v842
        %v844 = vpop.f32.mrb[0].mxu0
        %v845 = vpop.f32.mrb[0].mxu0
        %v846 = vpop.f32.mrb[0].mxu0
        %847 = vdwg.mxu0
        %v848 = vld [vmem:[%s2] sm:$0x1]
        %v850 = vlaneseq
        %v851 = vshrl.u32 %v850, 7
        %v852 = vsub.s32 0, %v851
        %v853 = vrot.slane %v848, %v852
        %v855 = vmul.f32 %v747, %v853
        %v856 = vmul.f32 %v750, %v853
        %v857 = vmul.f32 %v755, %v853
        %v858 = vmul.f32 %v758, %v853
        %v859 = vmul.f32 %v763, %v853
        %v860 = vmul.f32 %v766, %v853
        %v861 = vmul.f32 %v771, %v853
        %v862 = vmul.f32 %v774, %v853
        %v863 = vmul.f32 %v779, %v853
        %v864 = vmul.f32 %v782, %v853
        %v865 = vmul.f32 %v787, %v853
        %v866 = vmul.f32 %v790, %v853
        %v867 = vmul.f32 %v795, %v853
        %v868 = vmul.f32 %v798, %v853
        %v869 = vmul.f32 %v803, %v853
        %v870 = vmul.f32 %v806, %v853
        %v871 = vmul.f32 %v811, %v853
        %v872 = vmul.f32 %v814, %v853
        %v873 = vmul.f32 %v819, %v853
        %v874 = vmul.f32 %v822, %v853
        %v875 = vmul.f32 %v827, %v853
        %v876 = vmul.f32 %v830, %v853
        %v877 = vmul.f32 %v835, %v853
        %v878 = vmul.f32 %v838, %v853
        %v879 = vmul.f32 %v843, %v853
        %v880 = vld [vmem:[%s3] sm:$0x1]
        %v882 = vlaneseq
        %v883 = vshrl.u32 %v882, 7
        %v884 = vsub.s32 0, %v883
        %v885 = vrot.slane %v880, %v884
        %v887 = vadd.f32 %v855, %v885
        %v888 = vadd.f32 %v856, %v885
        %v889 = vadd.f32 %v857, %v885
        %v890 = vadd.f32 %v858, %v885
        %v891 = vadd.f32 %v859, %v885
        %v892 = vadd.f32 %v860, %v885
        %v893 = vadd.f32 %v861, %v885
        %v894 = vadd.f32 %v862, %v885
        %v895 = vadd.f32 %v863, %v885
        %v896 = vadd.f32 %v864, %v885
        %v897 = vadd.f32 %v865, %v885
        %v898 = vadd.f32 %v866, %v885
        %v899 = vadd.f32 %v867, %v885
        %v900 = vadd.f32 %v868, %v885
        %v901 = vadd.f32 %v869, %v885
        %v902 = vadd.f32 %v870, %v885
        %v903 = vadd.f32 %v871, %v885
        %v904 = vadd.f32 %v872, %v885
        %v905 = vadd.f32 %v873, %v885
        %v906 = vadd.f32 %v874, %v885
        %v907 = vadd.f32 %v875, %v885
        %v908 = vadd.f32 %v876, %v885
        %v909 = vadd.f32 %v877, %v885
        %v910 = vadd.f32 %v878, %v885
        %v911 = vadd.f32 %v879, %v885
        %v912 = vmax.f32 %v887, 0.0
        %v913 = vmax.f32 %v888, 0.0
        %v914 = vmax.f32 %v889, 0.0
        %v915 = vmax.f32 %v890, 0.0
        %v916 = vmax.f32 %v891, 0.0
        %v917 = vmax.f32 %v892, 0.0
        %v918 = vmax.f32 %v893, 0.0
        %v919 = vmax.f32 %v894, 0.0
        %v920 = vmax.f32 %v895, 0.0
        %v921 = vmax.f32 %v896, 0.0
        %v922 = vmax.f32 %v897, 0.0
        %v923 = vmax.f32 %v898, 0.0
        %v924 = vmax.f32 %v899, 0.0
        %v925 = vmax.f32 %v900, 0.0
        %v926 = vmax.f32 %v901, 0.0
        %v927 = vmax.f32 %v902, 0.0
        %v928 = vmax.f32 %v903, 0.0
        %v929 = vmax.f32 %v904, 0.0
        %v930 = vmax.f32 %v905, 0.0
        %v931 = vmax.f32 %v906, 0.0
        %v932 = vmax.f32 %v907, 0.0
        %v933 = vmax.f32 %v908, 0.0
        %v934 = vmax.f32 %v909, 0.0
        %v935 = vmax.f32 %v910, 0.0
        %v936 = vmax.f32 %v911, 0.0
        %v937 = vpack.c.bf16 %v913, %v912
        %v938 = vpack.c.bf16 %v915, %v914
        %v939 = vpack.c.bf16 %v917, %v916
        %v940 = vpack.c.bf16 %v919, %v918
        %v941 = vpack.c.bf16 %v921, %v920
        %v942 = vpack.c.bf16 %v923, %v922
        %v943 = vpack.c.bf16 %v925, %v924
        %v944 = vpack.c.bf16 %v927, %v926
        %v945 = vpack.c.bf16 %v929, %v928
        %v946 = vpack.c.bf16 %v931, %v930
        %v947 = vpack.c.bf16 %v933, %v932
        %v948 = vpack.c.bf16 %v935, %v934
        %v949 = vpack.c.bf16 %v936, %v936
        %v950 = vld [vmem:[%s4] sm:$0xff]
        %v951 = vld [vmem:[%s4 + $0x8] sm:$0xff]
        %v952 = vld [vmem:[%s4 + $0x10] sm:$0xff]
        %v953 = vld [vmem:[%s4 + $0x18] sm:$0xff]
        %v954 = vld [vmem:[%s4 + $0x20] sm:$0xff]
        %v955 = vld [vmem:[%s4 + $0x28] sm:$0xff]
        %v956 = vld [vmem:[%s4 + $0x30] sm:$0xff]
        %v957 = vld [vmem:[%s4 + $0x38] sm:$0xff]
        %v958 = vld [vmem:[%s4 + $0x40] sm:$0xff]
        %v959 = vld [vmem:[%s4 + $0x48] sm:$0xff]
        %v960 = vld [vmem:[%s4 + $0x50] sm:$0xff]
        %v961 = vld [vmem:[%s4 + $0x58] sm:$0xff]
        %v962 = vld [vmem:[%s4 + $0x60] sm:$0xff]
        %v963 = vld [vmem:[%s4 + $0x68] sm:$0xff]
        %v964 = vld [vmem:[%s4 + $0x70] sm:$0xff]
        %v965 = vld [vmem:[%s4 + $0x78] sm:$0xff]
        %v966 = vld [vmem:[%s4 + $0x80] sm:$0xff]
        %v967 = vld [vmem:[%s4 + $0x88] sm:$0xff]
        %v968 = vld [vmem:[%s4 + $0x90] sm:$0xff]
        %v969 = vld [vmem:[%s4 + $0x98] sm:$0xff]
        %v970 = vld [vmem:[%s4 + $0xa0] sm:$0xff]
        %v971 = vld [vmem:[%s4 + $0xa8] sm:$0xff]
        %v972 = vld [vmem:[%s4 + $0xb0] sm:$0xff]
        %v973 = vld [vmem:[%s4 + $0xb8] sm:$0xff]
        %v974 = vld [vmem:[%s4 + $0xc0] sm:$0xff]
        %v975 = vld [vmem:[%s4 + $0xc8] sm:$0xff]
        %v976 = vld [vmem:[%s4 + $0xd0] sm:$0xff]
        %v977 = vld [vmem:[%s4 + $0xd8] sm:$0xff]
        %v978 = vld [vmem:[%s4 + $0xe0] sm:$0xff]
        %v979 = vld [vmem:[%s4 + $0xe8] sm:$0xff]
        %v980 = vld [vmem:[%s4 + $0xf0] sm:$0xff]
        %v981 = vld [vmem:[%s4 + $0xf8] sm:$0xff]
        %v982 = vld [vmem:[%s4 + $0x100] sm:$0xff]
        %v983 = vld [vmem:[%s4 + $0x108] sm:$0xff]
        %v984 = vld [vmem:[%s4 + $0x110] sm:$0xff]
        %v985 = vld [vmem:[%s4 + $0x118] sm:$0xff]
        %v986 = vld [vmem:[%s4 + $0x120] sm:$0xff]
        %v987 = vld [vmem:[%s4 + $0x128] sm:$0xff]
        %v988 = vld [vmem:[%s4 + $0x130] sm:$0xff]
        %v989 = vld [vmem:[%s4 + $0x138] sm:$0xff]
        %v990 = vld [vmem:[%s4 + $0x140] sm:$0xff]
        %v991 = vld [vmem:[%s4 + $0x148] sm:$0xff]
        %v992 = vld [vmem:[%s4 + $0x150] sm:$0xff]
        %v993 = vld [vmem:[%s4 + $0x158] sm:$0xff]
        %v994 = vld [vmem:[%s4 + $0x160] sm:$0xff]
        %v995 = vld [vmem:[%s4 + $0x168] sm:$0xff]
        %v996 = vld [vmem:[%s4 + $0x170] sm:$0xff]
        %v997 = vld [vmem:[%s4 + $0x178] sm:$0xff]
        %v998 = vld [vmem:[%s4 + $0x180] sm:$0xff]
        %v999 = vld [vmem:[%s4 + $0x188] sm:$0xff]
        %v1000 = vld [vmem:[%s4 + $0x190] sm:$0xff]
        %v1001 = vld [vmem:[%s4 + $0x198] sm:$0xff]
        %v1002 = vld [vmem:[%s4 + $0x1a0] sm:$0xff]
        %v1003 = vld [vmem:[%s4 + $0x1a8] sm:$0xff]
        %v1004 = vld [vmem:[%s4 + $0x1b0] sm:$0xff]
        %v1005 = vld [vmem:[%s4 + $0x1b8] sm:$0xff]
        %v1006 = vld [vmem:[%s4 + $0x1c0] sm:$0xff]
        %v1007 = vld [vmem:[%s4 + $0x1c8] sm:$0xff]
        %v1008 = vld [vmem:[%s4 + $0x1d0] sm:$0xff]
        %v1009 = vld [vmem:[%s4 + $0x1d8] sm:$0xff]
        %v1010 = vld [vmem:[%s4 + $0x1e0] sm:$0xff]
        %v1011 = vld [vmem:[%s4 + $0x1e8] sm:$0xff]
        %v1012 = vld [vmem:[%s4 + $0x1f0] sm:$0xff]
        %v1013 = vld [vmem:[%s4 + $0x1f8] sm:$0xff]
        %v1014 = vld [vmem:[%s4 + $0x200] sm:$0xff]
        %v1015 = vld [vmem:[%s4 + $0x208] sm:$0xff]
        %v1016 = vld [vmem:[%s4 + $0x210] sm:$0xff]
        %v1017 = vld [vmem:[%s4 + $0x218] sm:$0xff]
        %v1018 = vld [vmem:[%s4 + $0x220] sm:$0xff]
        %v1019 = vld [vmem:[%s4 + $0x228] sm:$0xff]
        %v1020 = vld [vmem:[%s4 + $0x230] sm:$0xff]
        %v1021 = vld [vmem:[%s4 + $0x238] sm:$0xff]
        %v1022 = vld [vmem:[%s4 + $0x240] sm:$0xff]
        %v1023 = vld [vmem:[%s4 + $0x248] sm:$0xff]
        %v1024 = vld [vmem:[%s4 + $0x250] sm:$0xff]
        %v1025 = vld [vmem:[%s4 + $0x258] sm:$0xff]
        %v1026 = vld [vmem:[%s4 + $0x260] sm:$0xff]
        %v1027 = vld [vmem:[%s4 + $0x268] sm:$0xff]
        %v1028 = vld [vmem:[%s4 + $0x270] sm:$0xff]
        %v1029 = vld [vmem:[%s4 + $0x278] sm:$0xff]
        %v1030 = vld [vmem:[%s4 + $0x280] sm:$0xff]
        %v1031 = vld [vmem:[%s4 + $0x288] sm:$0xff]
        %v1032 = vld [vmem:[%s4 + $0x290] sm:$0xff]
        %v1033 = vld [vmem:[%s4 + $0x298] sm:$0xff]
        %v1034 = vld [vmem:[%s4 + $0x2a0] sm:$0xff]
        %v1035 = vld [vmem:[%s4 + $0x2a8] sm:$0xff]
        %v1036 = vld [vmem:[%s4 + $0x2b0] sm:$0xff]
        %v1037 = vld [vmem:[%s4 + $0x2b8] sm:$0xff]
        %v1038 = vld [vmem:[%s4 + $0x2c0] sm:$0xff]
        %v1039 = vld [vmem:[%s4 + $0x2c8] sm:$0xff]
        %v1040 = vld [vmem:[%s4 + $0x2d0] sm:$0xff]
        %v1041 = vld [vmem:[%s4 + $0x2d8] sm:$0xff]
        %v1042 = vld [vmem:[%s4 + $0x2e0] sm:$0xff]
        %v1043 = vld [vmem:[%s4 + $0x2e8] sm:$0xff]
        %v1044 = vld [vmem:[%s4 + $0x2f0] sm:$0xff]
        %v1045 = vld [vmem:[%s4 + $0x2f8] sm:$0xff]
        %v1046 = vld [vmem:[%s4 + $0x300] sm:$0xff]
        %v1047 = vld [vmem:[%s4 + $0x308] sm:$0xff]
        %v1048 = vld [vmem:[%s4 + $0x310] sm:$0xff]
        %v1049 = vld [vmem:[%s4 + $0x318] sm:$0xff]
        %v1150 = vunpack.c.l.b16 %v950
        %v1151 = vunpack.c.h.b16 %v950
        %v1152 = vunpack.c.l.b16 %v951
        %v1153 = vunpack.c.h.b16 %v951
        %v1154 = vunpack.c.l.b16 %v952
        %v1155 = vunpack.c.h.b16 %v952
        %v1156 = vunpack.c.l.b16 %v953
        %v1157 = vunpack.c.h.b16 %v953
        %v1158 = vunpack.c.l.b16 %v954
        %v1159 = vunpack.c.h.b16 %v954
        %v1160 = vunpack.c.l.b16 %v955
        %v1161 = vunpack.c.h.b16 %v955
        %v1162 = vunpack.c.l.b16 %v956
        %v1163 = vunpack.c.h.b16 %v956
        %v1164 = vunpack.c.l.b16 %v957
        %v1165 = vunpack.c.h.b16 %v957
        %v1166 = vunpack.c.l.b16 %v958
        %v1167 = vunpack.c.h.b16 %v958
        %v1168 = vunpack.c.l.b16 %v959
        %v1169 = vunpack.c.h.b16 %v959
        %v1170 = vunpack.c.l.b16 %v960
        %v1171 = vunpack.c.h.b16 %v960
        %v1172 = vunpack.c.l.b16 %v961
        %v1173 = vunpack.c.h.b16 %v961
        %v1174 = vunpack.c.l.b16 %v962
        %v1175 = vunpack.c.h.b16 %v962
        %v1176 = vunpack.c.l.b16 %v963
        %v1177 = vunpack.c.h.b16 %v963
        %v1178 = vunpack.c.l.b16 %v964
        %v1179 = vunpack.c.h.b16 %v964
        %v1180 = vunpack.c.l.b16 %v965
        %v1181 = vunpack.c.h.b16 %v965
        %v1182 = vunpack.c.l.b16 %v966
        %v1183 = vunpack.c.h.b16 %v966
        %v1184 = vunpack.c.l.b16 %v967
        %v1185 = vunpack.c.h.b16 %v967
        %v1186 = vunpack.c.l.b16 %v968
        %v1187 = vunpack.c.h.b16 %v968
        %v1188 = vunpack.c.l.b16 %v969
        %v1189 = vunpack.c.h.b16 %v969
        %v1190 = vunpack.c.l.b16 %v970
        %v1191 = vunpack.c.h.b16 %v970
        %v1192 = vunpack.c.l.b16 %v971
        %v1193 = vunpack.c.h.b16 %v971
        %v1194 = vunpack.c.l.b16 %v972
        %v1195 = vunpack.c.h.b16 %v972
        %v1196 = vunpack.c.l.b16 %v973
        %v1197 = vunpack.c.h.b16 %v973
        %v1198 = vunpack.c.l.b16 %v974
        %v1199 = vunpack.c.h.b16 %v974
        %v1200 = vunpack.c.l.b16 %v975
        %v1201 = vunpack.c.h.b16 %v975
        %v1202 = vunpack.c.l.b16 %v976
        %v1203 = vunpack.c.h.b16 %v976
        %v1204 = vunpack.c.l.b16 %v977
        %v1205 = vunpack.c.h.b16 %v977
        %v1206 = vunpack.c.l.b16 %v978
        %v1207 = vunpack.c.h.b16 %v978
        %v1208 = vunpack.c.l.b16 %v979
        %v1209 = vunpack.c.h.b16 %v979
        %v1210 = vunpack.c.l.b16 %v980
        %v1211 = vunpack.c.h.b16 %v980
        %v1212 = vunpack.c.l.b16 %v981
        %v1213 = vunpack.c.h.b16 %v981
        %v1214 = vunpack.c.l.b16 %v982
        %v1215 = vunpack.c.h.b16 %v982
        %v1216 = vunpack.c.l.b16 %v983
        %v1217 = vunpack.c.h.b16 %v983
        %v1218 = vunpack.c.l.b16 %v984
        %v1219 = vunpack.c.h.b16 %v984
        %v1220 = vunpack.c.l.b16 %v985
        %v1221 = vunpack.c.h.b16 %v985
        %v1222 = vunpack.c.l.b16 %v986
        %v1223 = vunpack.c.h.b16 %v986
        %v1224 = vunpack.c.l.b16 %v987
        %v1225 = vunpack.c.h.b16 %v987
        %v1226 = vunpack.c.l.b16 %v988
        %v1227 = vunpack.c.h.b16 %v988
        %v1228 = vunpack.c.l.b16 %v989
        %v1229 = vunpack.c.h.b16 %v989
        %v1230 = vunpack.c.l.b16 %v990
        %v1231 = vunpack.c.h.b16 %v990
        %v1232 = vunpack.c.l.b16 %v991
        %v1233 = vunpack.c.h.b16 %v991
        %v1234 = vunpack.c.l.b16 %v992
        %v1235 = vunpack.c.h.b16 %v992
        %v1236 = vunpack.c.l.b16 %v993
        %v1237 = vunpack.c.h.b16 %v993
        %v1238 = vunpack.c.l.b16 %v994
        %v1239 = vunpack.c.h.b16 %v994
        %v1240 = vunpack.c.l.b16 %v995
        %v1241 = vunpack.c.h.b16 %v995
        %v1242 = vunpack.c.l.b16 %v996
        %v1243 = vunpack.c.h.b16 %v996
        %v1244 = vunpack.c.l.b16 %v997
        %v1245 = vunpack.c.h.b16 %v997
        %v1246 = vunpack.c.l.b16 %v998
        %v1247 = vunpack.c.h.b16 %v998
        %v1248 = vunpack.c.l.b16 %v999
        %v1249 = vunpack.c.h.b16 %v999
        %v1250 = vunpack.c.l.b16 %v1000
        %v1251 = vunpack.c.h.b16 %v1000
        %v1252 = vunpack.c.l.b16 %v1001
        %v1253 = vunpack.c.h.b16 %v1001
        %v1254 = vunpack.c.l.b16 %v1002
        %v1255 = vunpack.c.h.b16 %v1002
        %v1256 = vunpack.c.l.b16 %v1003
        %v1257 = vunpack.c.h.b16 %v1003
        %v1258 = vunpack.c.l.b16 %v1004
        %v1259 = vunpack.c.h.b16 %v1004
        %v1260 = vunpack.c.l.b16 %v1005
        %v1261 = vunpack.c.h.b16 %v1005
        %v1262 = vunpack.c.l.b16 %v1006
        %v1263 = vunpack.c.h.b16 %v1006
        %v1264 = vunpack.c.l.b16 %v1007
        %v1265 = vunpack.c.h.b16 %v1007
        %v1266 = vunpack.c.l.b16 %v1008
        %v1267 = vunpack.c.h.b16 %v1008
        %v1268 = vunpack.c.l.b16 %v1009
        %v1269 = vunpack.c.h.b16 %v1009
        %v1270 = vunpack.c.l.b16 %v1010
        %v1271 = vunpack.c.h.b16 %v1010
        %v1272 = vunpack.c.l.b16 %v1011
        %v1273 = vunpack.c.h.b16 %v1011
        %v1274 = vunpack.c.l.b16 %v1012
        %v1275 = vunpack.c.h.b16 %v1012
        %v1276 = vunpack.c.l.b16 %v1013
        %v1277 = vunpack.c.h.b16 %v1013
        %v1278 = vunpack.c.l.b16 %v1014
        %v1279 = vunpack.c.h.b16 %v1014
        %v1280 = vunpack.c.l.b16 %v1015
        %v1281 = vunpack.c.h.b16 %v1015
        %v1282 = vunpack.c.l.b16 %v1016
        %v1283 = vunpack.c.h.b16 %v1016
        %v1284 = vunpack.c.l.b16 %v1017
        %v1285 = vunpack.c.h.b16 %v1017
        %v1286 = vunpack.c.l.b16 %v1018
        %v1287 = vunpack.c.h.b16 %v1018
        %v1288 = vunpack.c.l.b16 %v1019
        %v1289 = vunpack.c.h.b16 %v1019
        %v1290 = vunpack.c.l.b16 %v1020
        %v1291 = vunpack.c.h.b16 %v1020
        %v1292 = vunpack.c.l.b16 %v1021
        %v1293 = vunpack.c.h.b16 %v1021
        %v1294 = vunpack.c.l.b16 %v1022
        %v1295 = vunpack.c.h.b16 %v1022
        %v1296 = vunpack.c.l.b16 %v1023
        %v1297 = vunpack.c.h.b16 %v1023
        %v1298 = vunpack.c.l.b16 %v1024
        %v1299 = vunpack.c.h.b16 %v1024
        %v1300 = vunpack.c.l.b16 %v1025
        %v1301 = vunpack.c.h.b16 %v1025
        %v1302 = vunpack.c.l.b16 %v1026
        %v1303 = vunpack.c.h.b16 %v1026
        %v1304 = vunpack.c.l.b16 %v1027
        %v1305 = vunpack.c.h.b16 %v1027
        %v1306 = vunpack.c.l.b16 %v1028
        %v1307 = vunpack.c.h.b16 %v1028
        %v1308 = vunpack.c.l.b16 %v1029
        %v1309 = vunpack.c.h.b16 %v1029
        %v1310 = vunpack.c.l.b16 %v1030
        %v1311 = vunpack.c.h.b16 %v1030
        %v1312 = vunpack.c.l.b16 %v1031
        %v1313 = vunpack.c.h.b16 %v1031
        %v1314 = vunpack.c.l.b16 %v1032
        %v1315 = vunpack.c.h.b16 %v1032
        %v1316 = vunpack.c.l.b16 %v1033
        %v1317 = vunpack.c.h.b16 %v1033
        %v1318 = vunpack.c.l.b16 %v1034
        %v1319 = vunpack.c.h.b16 %v1034
        %v1320 = vunpack.c.l.b16 %v1035
        %v1321 = vunpack.c.h.b16 %v1035
        %v1322 = vunpack.c.l.b16 %v1036
        %v1323 = vunpack.c.h.b16 %v1036
        %v1324 = vunpack.c.l.b16 %v1037
        %v1325 = vunpack.c.h.b16 %v1037
        %v1326 = vunpack.c.l.b16 %v1038
        %v1327 = vunpack.c.h.b16 %v1038
        %v1328 = vunpack.c.l.b16 %v1039
        %v1329 = vunpack.c.h.b16 %v1039
        %v1330 = vunpack.c.l.b16 %v1040
        %v1331 = vunpack.c.h.b16 %v1040
        %v1332 = vunpack.c.l.b16 %v1041
        %v1333 = vunpack.c.h.b16 %v1041
        %v1334 = vunpack.c.l.b16 %v1042
        %v1335 = vunpack.c.h.b16 %v1042
        %v1336 = vunpack.c.l.b16 %v1043
        %v1337 = vunpack.c.h.b16 %v1043
        %v1338 = vunpack.c.l.b16 %v1044
        %v1339 = vunpack.c.h.b16 %v1044
        %v1340 = vunpack.c.l.b16 %v1045
        %v1341 = vunpack.c.h.b16 %v1045
        %v1342 = vunpack.c.l.b16 %v1046
        %v1343 = vunpack.c.h.b16 %v1046
        %v1344 = vunpack.c.l.b16 %v1047
        %v1345 = vunpack.c.h.b16 %v1047
        %v1346 = vunpack.c.l.b16 %v1048
        %v1347 = vunpack.c.h.b16 %v1048
        %v1348 = vunpack.c.l.b16 %v1049
        %v1349 = vunpack.c.h.b16 %v1049
        %v1350 = vpack.c.b16 %v1152, %v1150
        %v1351 = vpack.c.b16 %v1153, %v1151
        %v1352 = vpack.c.b16 %v1156, %v1154
        %v1353 = vpack.c.b16 %v1157, %v1155
        %v1354 = vpack.c.b16 %v1160, %v1158
        %v1355 = vpack.c.b16 %v1161, %v1159
        %v1356 = vpack.c.b16 %v1164, %v1162
        %v1357 = vpack.c.b16 %v1165, %v1163
        %v1358 = vpack.c.b16 %v1168, %v1166
        %v1359 = vpack.c.b16 %v1169, %v1167
        %v1360 = vpack.c.b16 %v1172, %v1170
        %v1361 = vpack.c.b16 %v1173, %v1171
        %v1362 = vpack.c.b16 %v1176, %v1174
        %v1363 = vpack.c.b16 %v1177, %v1175
        %v1364 = vpack.c.b16 %v1180, %v1178
        %v1365 = vpack.c.b16 %v1181, %v1179
        %v1366 = vpack.c.b16 %v1184, %v1182
        %v1367 = vpack.c.b16 %v1185, %v1183
        %v1368 = vpack.c.b16 %v1188, %v1186
        %v1369 = vpack.c.b16 %v1189, %v1187
        %v1370 = vpack.c.b16 %v1192, %v1190
        %v1371 = vpack.c.b16 %v1193, %v1191
        %v1372 = vpack.c.b16 %v1196, %v1194
        %v1373 = vpack.c.b16 %v1197, %v1195
        %v1374 = vpack.c.b16 %v1200, %v1198
        %v1375 = vpack.c.b16 %v1201, %v1199
        %v1376 = vpack.c.b16 %v1204, %v1202
        %v1377 = vpack.c.b16 %v1205, %v1203
        %v1378 = vpack.c.b16 %v1208, %v1206
        %v1379 = vpack.c.b16 %v1209, %v1207
        %v1380 = vpack.c.b16 %v1212, %v1210
        %v1381 = vpack.c.b16 %v1213, %v1211
        %v1382 = vpack.c.b16 %v1216, %v1214
        %v1383 = vpack.c.b16 %v1217, %v1215
        %v1384 = vpack.c.b16 %v1220, %v1218
        %v1385 = vpack.c.b16 %v1221, %v1219
        %v1386 = vpack.c.b16 %v1224, %v1222
        %v1387 = vpack.c.b16 %v1225, %v1223
        %v1388 = vpack.c.b16 %v1228, %v1226
        %v1389 = vpack.c.b16 %v1229, %v1227
        %v1390 = vpack.c.b16 %v1232, %v1230
        %v1391 = vpack.c.b16 %v1233, %v1231
        %v1392 = vpack.c.b16 %v1236, %v1234
        %v1393 = vpack.c.b16 %v1237, %v1235
        %v1394 = vpack.c.b16 %v1240, %v1238
        %v1395 = vpack.c.b16 %v1241, %v1239
        %v1396 = vpack.c.b16 %v1244, %v1242
        %v1397 = vpack.c.b16 %v1245, %v1243
        %v1398 = vpack.c.b16 %v1248, %v1246
        %v1399 = vpack.c.b16 %v1249, %v1247
        %v1400 = vpack.c.b16 %v1252, %v1250
        %v1401 = vpack.c.b16 %v1253, %v1251
        %v1402 = vpack.c.b16 %v1256, %v1254
        %v1403 = vpack.c.b16 %v1257, %v1255
        %v1404 = vpack.c.b16 %v1260, %v1258
        %v1405 = vpack.c.b16 %v1261, %v1259
        %v1406 = vpack.c.b16 %v1264, %v1262
        %v1407 = vpack.c.b16 %v1265, %v1263
        %v1408 = vpack.c.b16 %v1268, %v1266
        %v1409 = vpack.c.b16 %v1269, %v1267
        %v1410 = vpack.c.b16 %v1272, %v1270
        %v1411 = vpack.c.b16 %v1273, %v1271
        %v1412 = vpack.c.b16 %v1276, %v1274
        %v1413 = vpack.c.b16 %v1277, %v1275
        %v1414 = vpack.c.b16 %v1280, %v1278
        %v1415 = vpack.c.b16 %v1281, %v1279
        %v1416 = vpack.c.b16 %v1284, %v1282
        %v1417 = vpack.c.b16 %v1285, %v1283
        %v1418 = vpack.c.b16 %v1288, %v1286
        %v1419 = vpack.c.b16 %v1289, %v1287
        %v1420 = vpack.c.b16 %v1292, %v1290
        %v1421 = vpack.c.b16 %v1293, %v1291
        %v1422 = vpack.c.b16 %v1296, %v1294
        %v1423 = vpack.c.b16 %v1297, %v1295
        %v1424 = vpack.c.b16 %v1300, %v1298
        %v1425 = vpack.c.b16 %v1301, %v1299
        %v1426 = vpack.c.b16 %v1304, %v1302
        %v1427 = vpack.c.b16 %v1305, %v1303
        %v1428 = vpack.c.b16 %v1308, %v1306
        %v1429 = vpack.c.b16 %v1309, %v1307
        %v1430 = vpack.c.b16 %v1312, %v1310
        %v1431 = vpack.c.b16 %v1313, %v1311
        %v1432 = vpack.c.b16 %v1316, %v1314
        %v1433 = vpack.c.b16 %v1317, %v1315
        %v1434 = vpack.c.b16 %v1320, %v1318
        %v1435 = vpack.c.b16 %v1321, %v1319
        %v1436 = vpack.c.b16 %v1324, %v1322
        %v1437 = vpack.c.b16 %v1325, %v1323
        %v1438 = vpack.c.b16 %v1328, %v1326
        %v1439 = vpack.c.b16 %v1329, %v1327
        %v1440 = vpack.c.b16 %v1332, %v1330
        %v1441 = vpack.c.b16 %v1333, %v1331
        %v1442 = vpack.c.b16 %v1336, %v1334
        %v1443 = vpack.c.b16 %v1337, %v1335
        %v1444 = vpack.c.b16 %v1340, %v1338
        %v1445 = vpack.c.b16 %v1341, %v1339
        %v1446 = vpack.c.b16 %v1344, %v1342
        %v1447 = vpack.c.b16 %v1345, %v1343
        %v1448 = vpack.c.b16 %v1348, %v1346
        %v1449 = vpack.c.b16 %v1349, %v1347
        %vm1500 = vcmask 556032
        %v1502 = vsel %vm1500, %v1351, 0
        %v1505 = vsel %vm1500, %v1353, 0
        %v1508 = vsel %vm1500, %v1355, 0
        %v1511 = vsel %vm1500, %v1357, 0
        %v1514 = vsel %vm1500, %v1359, 0
        %v1517 = vsel %vm1500, %v1361, 0
        %v1520 = vsel %vm1500, %v1363, 0
        %v1523 = vsel %vm1500, %v1365, 0
        %v1526 = vsel %vm1500, %v1367, 0
        %v1529 = vsel %vm1500, %v1369, 0
        %v1532 = vsel %vm1500, %v1371, 0
        %v1535 = vsel %vm1500, %v1373, 0
        %v1538 = vsel %vm1500, %v1375, 0
        %v1541 = vsel %vm1500, %v1377, 0
        %v1544 = vsel %vm1500, %v1379, 0
        %v1547 = vsel %vm1500, %v1381, 0
        %v1550 = vsel %vm1500, %v1383, 0
        %v1553 = vsel %vm1500, %v1385, 0
        %v1556 = vsel %vm1500, %v1387, 0
        %v1559 = vsel %vm1500, %v1389, 0
        %v1562 = vsel %vm1500, %v1391, 0
        %v1565 = vsel %vm1500, %v1393, 0
        %v1568 = vsel %vm1500, %v1395, 0
        %v1571 = vsel %vm1500, %v1397, 0
        %v1574 = vsel %vm1500, %v1399, 0
        %v1577 = vsel %vm1500, %v1401, 0
        %v1580 = vsel %vm1500, %v1403, 0
        %v1583 = vsel %vm1500, %v1405, 0
        %v1586 = vsel %vm1500, %v1407, 0
        %v1589 = vsel %vm1500, %v1409, 0
        %v1592 = vsel %vm1500, %v1411, 0
        %v1595 = vsel %vm1500, %v1413, 0
        %v1598 = vsel %vm1500, %v1415, 0
        %v1601 = vsel %vm1500, %v1417, 0
        %v1604 = vsel %vm1500, %v1419, 0
        %v1607 = vsel %vm1500, %v1421, 0
        %v1610 = vsel %vm1500, %v1423, 0
        %v1613 = vsel %vm1500, %v1425, 0
        %v1616 = vsel %vm1500, %v1427, 0
        %v1619 = vsel %vm1500, %v1429, 0
        %v1622 = vsel %vm1500, %v1431, 0
        %v1625 = vsel %vm1500, %v1433, 0
        %v1628 = vsel %vm1500, %v1435, 0
        %v1631 = vsel %vm1500, %v1437, 0
        %v1634 = vsel %vm1500, %v1439, 0
        %v1637 = vsel %vm1500, %v1441, 0
        %v1640 = vsel %vm1500, %v1443, 0
        %v1643 = vsel %vm1500, %v1445, 0
        %v1646 = vsel %vm1500, %v1447, 0
        %v1649 = vsel %vm1500, %v1449, 0
        %vm1651 = vcmask 1041408
        %v1653 = vsel %vm1651, %v949, 0
        %1655 = vmatprep.subr.bf16.mxu0 0
        %1656 = vmatpush1.bf16.msra.mxu0 %v937
        %1657 = vmatprep.subr.bf16.mxu0 0
        %1658 = vmatpush1.bf16.msra.mxu0 %v938
        %1659 = vmatprep.subr.bf16.mxu0 0
        %1660 = vmatpush1.bf16.msra.mxu0 %v939
        %1661 = vmatprep.subr.bf16.mxu0 0
        %1662 = vmatpush1.bf16.msra.mxu0 %v940
        %1663 = vmatprep.subr.bf16.mxu0 0
        %1664 = vmatpush1.bf16.msra.mxu0 %v941
        %1665 = vmatprep.subr.bf16.mxu0 0
        %1666 = vmatpush1.bf16.msra.mxu0 %v942
        %1667 = vmatprep.subr.bf16.mxu0 0
        %1668 = vmatpush1.bf16.msra.mxu0 %v943
        %1669 = vmatprep.subr.bf16.mxu0 0
        %1670 = vmatpush1.bf16.msra.mxu0 %v944
        %1671 = vmatprep.subr.bf16.mxu0 0
        %1672 = vmatpush1.bf16.msra.mxu0 %v945
        %1673 = vmatprep.subr.bf16.mxu0 0
        %1674 = vmatpush1.bf16.msra.mxu0 %v946
        %1675 = vmatprep.subr.bf16.mxu0 0
        %1676 = vmatpush1.bf16.msra.mxu0 %v947
        %1677 = vmatprep.subr.bf16.mxu0 0
        %1678 = vmatpush1.bf16.msra.mxu0 %v948
        %1679 = vmatprep.subr.bf16.mxu0 0
        %1680 = vmatpush1.bf16.msra.mxu0 %v1653
        %1681 = vmatprep.subr.bf16.mxu0 0
        %1682 = vmatpush1.bf16.msra.mxu0 0
        %1683 = vmatprep.subr.bf16.mxu0 0
        %1684 = vmatpush1.bf16.msra.mxu0 0
        %1685 = vmatprep.subr.bf16.mxu0 0
        %1686 = vmatpush1.bf16.msra.mxu0 0
        %1687 = vmatprep.mubr.bf16.mxu0 %v1502
        %1688 = vmatmul.mubr.bf16.gmra.mrb[0].mxu0 %v1350
        %v1689 = vpop.f32.mrb[0].mxu0
        %v1690 = vadd.f32 0.0, %v1689
        %v1691 = vpop.f32.mrb[0].mxu0
        %v1692 = vpop.f32.mrb[0].mxu0
        %v1693 = vadd.f32 0.0, %v1692
        %v1694 = vpop.f32.mrb[0].mxu0
        %1695 = vmatprep.mubr.bf16.mxu0 %v1505
        %1696 = vmatmul.mubr.bf16.gmra.mrb[0].mxu0 %v1352
        %v1697 = vpop.f32.mrb[0].mxu0
        %v1698 = vadd.f32 0.0, %v1697
        %v1699 = vpop.f32.mrb[0].mxu0
        %v1700 = vpop.f32.mrb[0].mxu0
        %v1701 = vadd.f32 0.0, %v1700
        %v1702 = vpop.f32.mrb[0].mxu0
        %1703 = vmatprep.mubr.bf16.mxu0 %v1508
        %1704 = vmatmul.mubr.bf16.gmra.mrb[0].mxu0 %v1354
        %v1705 = vpop.f32.mrb[0].mxu0
        %v1706 = vadd.f32 0.0, %v1705
        %v1707 = vpop.f32.mrb[0].mxu0
        %v1708 = vpop.f32.mrb[0].mxu0
        %v1709 = vadd.f32 0.0, %v1708
        %v1710 = vpop.f32.mrb[0].mxu0
        %1711 = vmatprep.mubr.bf16.mxu0 %v1511
        %1712 = vmatmul.mubr.bf16.gmra.mrb[0].mxu0 %v1356
        %v1713 = vpop.f32.mrb[0].mxu0
        %v1714 = vadd.f32 0.0, %v1713
        %v1715 = vpop.f32.mrb[0].mxu0
        %v1716 = vpop.f32.mrb[0].mxu0
        %v1717 = vadd.f32 0.0, %v1716
        %v1718 = vpop.f32.mrb[0].mxu0
        %1719 = vmatprep.mubr.bf16.mxu0 %v1514
        %1720 = vmatmul.mubr.bf16.gmra.mrb[0].mxu0 %v1358
        %v1721 = vpop.f32.mrb[0].mxu0
        %v1722 = vadd.f32 0.0, %v1721
        %v1723 = vpop.f32.mrb[0].mxu0
        %v1724 = vpop.f32.mrb[0].mxu0
        %v1725 = vadd.f32 0.0, %v1724
        %v1726 = vpop.f32.mrb[0].mxu0
        %1727 = vmatprep.mubr.bf16.mxu0 %v1517
        %1728 = vmatmul.mubr.bf16.gmra.mrb[0].mxu0 %v1360
        %v1729 = vpop.f32.mrb[0].mxu0
        %v1730 = vadd.f32 0.0, %v1729
        %v1731 = vpop.f32.mrb[0].mxu0
        %v1732 = vpop.f32.mrb[0].mxu0
        %v1733 = vadd.f32 0.0, %v1732
        %v1734 = vpop.f32.mrb[0].mxu0
        %1735 = vmatprep.mubr.bf16.mxu0 %v1520
        %1736 = vmatmul.mubr.bf16.gmra.mrb[0].mxu0 %v1362
        %v1737 = vpop.f32.mrb[0].mxu0
        %v1738 = vadd.f32 0.0, %v1737
        %v1739 = vpop.f32.mrb[0].mxu0
        %v1740 = vpop.f32.mrb[0].mxu0
        %v1741 = vadd.f32 0.0, %v1740
        %v1742 = vpop.f32.mrb[0].mxu0
        %1743 = vmatprep.mubr.bf16.mxu0 %v1523
        %1744 = vmatmul.mubr.bf16.gmra.mrb[0].mxu0 %v1364
        %v1745 = vpop.f32.mrb[0].mxu0
        %v1746 = vadd.f32 0.0, %v1745
        %v1747 = vpop.f32.mrb[0].mxu0
        %v1748 = vpop.f32.mrb[0].mxu0
        %v1749 = vadd.f32 0.0, %v1748
        %v1750 = vpop.f32.mrb[0].mxu0
        %1751 = vmatprep.mubr.bf16.mxu0 %v1526
        %1752 = vmatmul.mubr.bf16.gmra.mrb[0].mxu0 %v1366
        %v1753 = vpop.f32.mrb[0].mxu0
        %v1754 = vadd.f32 0.0, %v1753
        %v1755 = vpop.f32.mrb[0].mxu0
        %v1756 = vpop.f32.mrb[0].mxu0
        %v1757 = vadd.f32 0.0, %v1756
        %v1758 = vpop.f32.mrb[0].mxu0
        %1759 = vmatprep.mubr.bf16.mxu0 %v1529
        %1760 = vmatmul.mubr.bf16.gmra.mrb[0].mxu0 %v1368
        %v1761 = vpop.f32.mrb[0].mxu0
        %v1762 = vadd.f32 0.0, %v1761
        %v1763 = vpop.f32.mrb[0].mxu0
        %v1764 = vpop.f32.mrb[0].mxu0
        %v1765 = vadd.f32 0.0, %v1764
        %v1766 = vpop.f32.mrb[0].mxu0
        %1767 = vmatprep.mubr.bf16.mxu0 %v1532
        %1768 = vmatmul.mubr.bf16.gmra.mrb[0].mxu0 %v1370
        %v1769 = vpop.f32.mrb[0].mxu0
        %v1770 = vadd.f32 0.0, %v1769
        %v1771 = vpop.f32.mrb[0].mxu0
        %v1772 = vpop.f32.mrb[0].mxu0
        %v1773 = vadd.f32 0.0, %v1772
        %v1774 = vpop.f32.mrb[0].mxu0
        %1775 = vmatprep.mubr.bf16.mxu0 %v1535
        %1776 = vmatmul.mubr.bf16.gmra.mrb[0].mxu0 %v1372
        %v1777 = vpop.f32.mrb[0].mxu0
        %v1778 = vadd.f32 0.0, %v1777
        %v1779 = vpop.f32.mrb[0].mxu0
        %v1780 = vpop.f32.mrb[0].mxu0
        %v1781 = vadd.f32 0.0, %v1780
        %v1782 = vpop.f32.mrb[0].mxu0
        %1783 = vmatprep.mubr.bf16.mxu0 %v1538
        %1784 = vmatmul.mubr.bf16.gmra.mrb[0].mxu0 %v1374
        %v1785 = vpop.f32.mrb[0].mxu0
        %v1786 = vadd.f32 0.0, %v1785
        %v1787 = vpop.f32.mrb[0].mxu0
        %v1788 = vpop.f32.mrb[0].mxu0
        %v1789 = vadd.f32 0.0, %v1788
        %v1790 = vpop.f32.mrb[0].mxu0
        %1791 = vmatprep.mubr.bf16.mxu0 %v1541
        %1792 = vmatmul.mubr.bf16.gmra.mrb[0].mxu0 %v1376
        %v1793 = vpop.f32.mrb[0].mxu0
        %v1794 = vadd.f32 0.0, %v1793
        %v1795 = vpop.f32.mrb[0].mxu0
        %v1796 = vpop.f32.mrb[0].mxu0
        %v1797 = vadd.f32 0.0, %v1796
        %v1798 = vpop.f32.mrb[0].mxu0
        %1799 = vmatprep.mubr.bf16.mxu0 %v1544
        %1800 = vmatmul.mubr.bf16.gmra.mrb[0].mxu0 %v1378
        %v1801 = vpop.f32.mrb[0].mxu0
        %v1802 = vadd.f32 0.0, %v1801
        %v1803 = vpop.f32.mrb[0].mxu0
        %v1804 = vpop.f32.mrb[0].mxu0
        %v1805 = vadd.f32 0.0, %v1804
        %v1806 = vpop.f32.mrb[0].mxu0
        %1807 = vmatprep.mubr.bf16.mxu0 %v1547
        %1808 = vmatmul.mubr.bf16.gmra.mrb[0].mxu0 %v1380
        %v1809 = vpop.f32.mrb[0].mxu0
        %v1810 = vadd.f32 0.0, %v1809
        %v1811 = vpop.f32.mrb[0].mxu0
        %v1812 = vpop.f32.mrb[0].mxu0
        %v1813 = vadd.f32 0.0, %v1812
        %v1814 = vpop.f32.mrb[0].mxu0
        %1815 = vmatprep.mubr.bf16.mxu0 %v1550
        %1816 = vmatmul.mubr.bf16.gmra.mrb[0].mxu0 %v1382
        %v1817 = vpop.f32.mrb[0].mxu0
        %v1818 = vadd.f32 0.0, %v1817
        %v1819 = vpop.f32.mrb[0].mxu0
        %v1820 = vpop.f32.mrb[0].mxu0
        %v1821 = vadd.f32 0.0, %v1820
        %v1822 = vpop.f32.mrb[0].mxu0
        %1823 = vmatprep.mubr.bf16.mxu0 %v1553
        %1824 = vmatmul.mubr.bf16.gmra.mrb[0].mxu0 %v1384
        %v1825 = vpop.f32.mrb[0].mxu0
        %v1826 = vadd.f32 0.0, %v1825
        %v1827 = vpop.f32.mrb[0].mxu0
        %v1828 = vpop.f32.mrb[0].mxu0
        %v1829 = vadd.f32 0.0, %v1828
        %v1830 = vpop.f32.mrb[0].mxu0
        %1831 = vmatprep.mubr.bf16.mxu0 %v1556
        %1832 = vmatmul.mubr.bf16.gmra.mrb[0].mxu0 %v1386
        %v1833 = vpop.f32.mrb[0].mxu0
        %v1834 = vadd.f32 0.0, %v1833
        %v1835 = vpop.f32.mrb[0].mxu0
        %v1836 = vpop.f32.mrb[0].mxu0
        %v1837 = vadd.f32 0.0, %v1836
        %v1838 = vpop.f32.mrb[0].mxu0
        %1839 = vmatprep.mubr.bf16.mxu0 %v1559
        %1840 = vmatmul.mubr.bf16.gmra.mrb[0].mxu0 %v1388
        %v1841 = vpop.f32.mrb[0].mxu0
        %v1842 = vadd.f32 0.0, %v1841
        %v1843 = vpop.f32.mrb[0].mxu0
        %v1844 = vpop.f32.mrb[0].mxu0
        %v1845 = vadd.f32 0.0, %v1844
        %v1846 = vpop.f32.mrb[0].mxu0
        %1847 = vmatprep.mubr.bf16.mxu0 %v1562
        %1848 = vmatmul.mubr.bf16.gmra.mrb[0].mxu0 %v1390
        %v1849 = vpop.f32.mrb[0].mxu0
        %v1850 = vadd.f32 0.0, %v1849
        %v1851 = vpop.f32.mrb[0].mxu0
        %v1852 = vpop.f32.mrb[0].mxu0
        %v1853 = vadd.f32 0.0, %v1852
        %v1854 = vpop.f32.mrb[0].mxu0
        %1855 = vmatprep.mubr.bf16.mxu0 %v1565
        %1856 = vmatmul.mubr.bf16.gmra.mrb[0].mxu0 %v1392
        %v1857 = vpop.f32.mrb[0].mxu0
        %v1858 = vadd.f32 0.0, %v1857
        %v1859 = vpop.f32.mrb[0].mxu0
        %v1860 = vpop.f32.mrb[0].mxu0
        %v1861 = vadd.f32 0.0, %v1860
        %v1862 = vpop.f32.mrb[0].mxu0
        %1863 = vmatprep.mubr.bf16.mxu0 %v1568
        %1864 = vmatmul.mubr.bf16.gmra.mrb[0].mxu0 %v1394
        %v1865 = vpop.f32.mrb[0].mxu0
        %v1866 = vadd.f32 0.0, %v1865
        %v1867 = vpop.f32.mrb[0].mxu0
        %v1868 = vpop.f32.mrb[0].mxu0
        %v1869 = vadd.f32 0.0, %v1868
        %v1870 = vpop.f32.mrb[0].mxu0
        %1871 = vmatprep.mubr.bf16.mxu0 %v1571
        %1872 = vmatmul.mubr.bf16.gmra.mrb[0].mxu0 %v1396
        %v1873 = vpop.f32.mrb[0].mxu0
        %v1874 = vadd.f32 0.0, %v1873
        %v1875 = vpop.f32.mrb[0].mxu0
        %v1876 = vpop.f32.mrb[0].mxu0
        %v1877 = vadd.f32 0.0, %v1876
        %v1878 = vpop.f32.mrb[0].mxu0
        %1879 = vmatprep.mubr.bf16.mxu0 %v1574
        %1880 = vmatmul.mubr.bf16.gmra.mrb[0].mxu0 %v1398
        %v1881 = vpop.f32.mrb[0].mxu0
        %v1882 = vadd.f32 0.0, %v1881
        %v1883 = vpop.f32.mrb[0].mxu0
        %v1884 = vpop.f32.mrb[0].mxu0
        %v1885 = vadd.f32 0.0, %v1884
        %v1886 = vpop.f32.mrb[0].mxu0
        %1887 = vmatprep.mubr.bf16.mxu0 %v1577
        %1888 = vmatmul.mubr.bf16.gmra.mrb[0].mxu0 %v1400
        %v1889 = vpop.f32.mrb[0].mxu0
        %v1890 = vadd.f32 0.0, %v1889
        %v1891 = vpop.f32.mrb[0].mxu0
        %v1892 = vpop.f32.mrb[0].mxu0
        %v1893 = vadd.f32 0.0, %v1892
        %v1894 = vpop.f32.mrb[0].mxu0
        %1895 = vmatprep.mubr.bf16.mxu0 %v1580
        %1896 = vmatmul.mubr.bf16.gmra.mrb[0].mxu0 %v1402
        %v1897 = vpop.f32.mrb[0].mxu0
        %v1898 = vadd.f32 0.0, %v1897
        %v1899 = vpop.f32.mrb[0].mxu0
        %v1900 = vpop.f32.mrb[0].mxu0
        %v1901 = vadd.f32 0.0, %v1900
        %v1902 = vpop.f32.mrb[0].mxu0
        %1903 = vmatprep.mubr.bf16.mxu0 %v1583
        %1904 = vmatmul.mubr.bf16.gmra.mrb[0].mxu0 %v1404
        %v1905 = vpop.f32.mrb[0].mxu0
        %v1906 = vadd.f32 0.0, %v1905
        %v1907 = vpop.f32.mrb[0].mxu0
        %v1908 = vpop.f32.mrb[0].mxu0
        %v1909 = vadd.f32 0.0, %v1908
        %v1910 = vpop.f32.mrb[0].mxu0
        %1911 = vmatprep.mubr.bf16.mxu0 %v1586
        %1912 = vmatmul.mubr.bf16.gmra.mrb[0].mxu0 %v1406
        %v1913 = vpop.f32.mrb[0].mxu0
        %v1914 = vadd.f32 0.0, %v1913
        %v1915 = vpop.f32.mrb[0].mxu0
        %v1916 = vpop.f32.mrb[0].mxu0
        %v1917 = vadd.f32 0.0, %v1916
        %v1918 = vpop.f32.mrb[0].mxu0
        %1919 = vmatprep.mubr.bf16.mxu0 %v1589
        %1920 = vmatmul.mubr.bf16.gmra.mrb[0].mxu0 %v1408
        %v1921 = vpop.f32.mrb[0].mxu0
        %v1922 = vadd.f32 0.0, %v1921
        %v1923 = vpop.f32.mrb[0].mxu0
        %v1924 = vpop.f32.mrb[0].mxu0
        %v1925 = vadd.f32 0.0, %v1924
        %v1926 = vpop.f32.mrb[0].mxu0
        %1927 = vmatprep.mubr.bf16.mxu0 %v1592
        %1928 = vmatmul.mubr.bf16.gmra.mrb[0].mxu0 %v1410
        %v1929 = vpop.f32.mrb[0].mxu0
        %v1930 = vadd.f32 0.0, %v1929
        %v1931 = vpop.f32.mrb[0].mxu0
        %v1932 = vpop.f32.mrb[0].mxu0
        %v1933 = vadd.f32 0.0, %v1932
        %v1934 = vpop.f32.mrb[0].mxu0
        %1935 = vmatprep.mubr.bf16.mxu0 %v1595
        %1936 = vmatmul.mubr.bf16.gmra.mrb[0].mxu0 %v1412
        %v1937 = vpop.f32.mrb[0].mxu0
        %v1938 = vadd.f32 0.0, %v1937
        %v1939 = vpop.f32.mrb[0].mxu0
        %v1940 = vpop.f32.mrb[0].mxu0
        %v1941 = vadd.f32 0.0, %v1940
        %v1942 = vpop.f32.mrb[0].mxu0
        %1943 = vmatprep.mubr.bf16.mxu0 %v1598
        %1944 = vmatmul.mubr.bf16.gmra.mrb[0].mxu0 %v1414
        %v1945 = vpop.f32.mrb[0].mxu0
        %v1946 = vadd.f32 0.0, %v1945
        %v1947 = vpop.f32.mrb[0].mxu0
        %v1948 = vpop.f32.mrb[0].mxu0
        %v1949 = vadd.f32 0.0, %v1948
        %v1950 = vpop.f32.mrb[0].mxu0
        %1951 = vmatprep.mubr.bf16.mxu0 %v1601
        %1952 = vmatmul.mubr.bf16.gmra.mrb[0].mxu0 %v1416
        %v1953 = vpop.f32.mrb[0].mxu0
        %v1954 = vadd.f32 0.0, %v1953
        %v1955 = vpop.f32.mrb[0].mxu0
        %v1956 = vpop.f32.mrb[0].mxu0
        %v1957 = vadd.f32 0.0, %v1956
        %v1958 = vpop.f32.mrb[0].mxu0
        %1959 = vmatprep.mubr.bf16.mxu0 %v1604
        %1960 = vmatmul.mubr.bf16.gmra.mrb[0].mxu0 %v1418
        %v1961 = vpop.f32.mrb[0].mxu0
        %v1962 = vadd.f32 0.0, %v1961
        %v1963 = vpop.f32.mrb[0].mxu0
        %v1964 = vpop.f32.mrb[0].mxu0
        %v1965 = vadd.f32 0.0, %v1964
        %v1966 = vpop.f32.mrb[0].mxu0
        %1967 = vmatprep.mubr.bf16.mxu0 %v1607
        %1968 = vmatmul.mubr.bf16.gmra.mrb[0].mxu0 %v1420
        %v1969 = vpop.f32.mrb[0].mxu0
        %v1970 = vadd.f32 0.0, %v1969
        %v1971 = vpop.f32.mrb[0].mxu0
        %v1972 = vpop.f32.mrb[0].mxu0
        %v1973 = vadd.f32 0.0, %v1972
        %v1974 = vpop.f32.mrb[0].mxu0
        %1975 = vmatprep.mubr.bf16.mxu0 %v1610
        %1976 = vmatmul.mubr.bf16.gmra.mrb[0].mxu0 %v1422
        %v1977 = vpop.f32.mrb[0].mxu0
        %v1978 = vadd.f32 0.0, %v1977
        %v1979 = vpop.f32.mrb[0].mxu0
        %v1980 = vpop.f32.mrb[0].mxu0
        %v1981 = vadd.f32 0.0, %v1980
        %v1982 = vpop.f32.mrb[0].mxu0
        %1983 = vmatprep.mubr.bf16.mxu0 %v1613
        %1984 = vmatmul.mubr.bf16.gmra.mrb[0].mxu0 %v1424
        %v1985 = vpop.f32.mrb[0].mxu0
        %v1986 = vadd.f32 0.0, %v1985
        %v1987 = vpop.f32.mrb[0].mxu0
        %v1988 = vpop.f32.mrb[0].mxu0
        %v1989 = vadd.f32 0.0, %v1988
        %v1990 = vpop.f32.mrb[0].mxu0
        %1991 = vmatprep.mubr.bf16.mxu0 %v1616
        %1992 = vmatmul.mubr.bf16.gmra.mrb[0].mxu0 %v1426
        %v1993 = vpop.f32.mrb[0].mxu0
        %v1994 = vadd.f32 0.0, %v1993
        %v1995 = vpop.f32.mrb[0].mxu0
        %v1996 = vpop.f32.mrb[0].mxu0
        %v1997 = vadd.f32 0.0, %v1996
        %v1998 = vpop.f32.mrb[0].mxu0
        %1999 = vmatprep.mubr.bf16.mxu0 %v1619
        %2000 = vmatmul.mubr.bf16.gmra.mrb[0].mxu0 %v1428
        %v2001 = vpop.f32.mrb[0].mxu0
        %v2002 = vadd.f32 0.0, %v2001
        %v2003 = vpop.f32.mrb[0].mxu0
        %v2004 = vpop.f32.mrb[0].mxu0
        %v2005 = vadd.f32 0.0, %v2004
        %v2006 = vpop.f32.mrb[0].mxu0
        %2007 = vmatprep.mubr.bf16.mxu0 %v1622
        %2008 = vmatmul.mubr.bf16.gmra.mrb[0].mxu0 %v1430
        %v2009 = vpop.f32.mrb[0].mxu0
        %v2010 = vadd.f32 0.0, %v2009
        %v2011 = vpop.f32.mrb[0].mxu0
        %v2012 = vpop.f32.mrb[0].mxu0
        %v2013 = vadd.f32 0.0, %v2012
        %v2014 = vpop.f32.mrb[0].mxu0
        %2015 = vmatprep.mubr.bf16.mxu0 %v1625
        %2016 = vmatmul.mubr.bf16.gmra.mrb[0].mxu0 %v1432
        %v2017 = vpop.f32.mrb[0].mxu0
        %v2018 = vadd.f32 0.0, %v2017
        %v2019 = vpop.f32.mrb[0].mxu0
        %v2020 = vpop.f32.mrb[0].mxu0
        %v2021 = vadd.f32 0.0, %v2020
        %v2022 = vpop.f32.mrb[0].mxu0
        %2023 = vmatprep.mubr.bf16.mxu0 %v1628
        %2024 = vmatmul.mubr.bf16.gmra.mrb[0].mxu0 %v1434
        %v2025 = vpop.f32.mrb[0].mxu0
        %v2026 = vadd.f32 0.0, %v2025
        %v2027 = vpop.f32.mrb[0].mxu0
        %v2028 = vpop.f32.mrb[0].mxu0
        %v2029 = vadd.f32 0.0, %v2028
        %v2030 = vpop.f32.mrb[0].mxu0
        %2031 = vmatprep.mubr.bf16.mxu0 %v1631
        %2032 = vmatmul.mubr.bf16.gmra.mrb[0].mxu0 %v1436
        %v2033 = vpop.f32.mrb[0].mxu0
        %v2034 = vadd.f32 0.0, %v2033
        %v2035 = vpop.f32.mrb[0].mxu0
        %v2036 = vpop.f32.mrb[0].mxu0
        %v2037 = vadd.f32 0.0, %v2036
        %v2038 = vpop.f32.mrb[0].mxu0
        %2039 = vmatprep.mubr.bf16.mxu0 %v1634
        %2040 = vmatmul.mubr.bf16.gmra.mrb[0].mxu0 %v1438
        %v2041 = vpop.f32.mrb[0].mxu0
        %v2042 = vadd.f32 0.0, %v2041
        %v2043 = vpop.f32.mrb[0].mxu0
        %v2044 = vpop.f32.mrb[0].mxu0
        %v2045 = vadd.f32 0.0, %v2044
        %v2046 = vpop.f32.mrb[0].mxu0
        %2047 = vmatprep.mubr.bf16.mxu0 %v1637
        %2048 = vmatmul.mubr.bf16.gmra.mrb[0].mxu0 %v1440
        %v2049 = vpop.f32.mrb[0].mxu0
        %v2050 = vadd.f32 0.0, %v2049
        %v2051 = vpop.f32.mrb[0].mxu0
        %v2052 = vpop.f32.mrb[0].mxu0
        %v2053 = vadd.f32 0.0, %v2052
        %v2054 = vpop.f32.mrb[0].mxu0
        %2055 = vmatprep.mubr.bf16.mxu0 %v1640
        %2056 = vmatmul.mubr.bf16.gmra.mrb[0].mxu0 %v1442
        %v2057 = vpop.f32.mrb[0].mxu0
        %v2058 = vadd.f32 0.0, %v2057
        %v2059 = vpop.f32.mrb[0].mxu0
        %v2060 = vpop.f32.mrb[0].mxu0
        %v2061 = vadd.f32 0.0, %v2060
        %v2062 = vpop.f32.mrb[0].mxu0
        %2063 = vmatprep.mubr.bf16.mxu0 %v1643
        %2064 = vmatmul.mubr.bf16.gmra.mrb[0].mxu0 %v1444
        %v2065 = vpop.f32.mrb[0].mxu0
        %v2066 = vadd.f32 0.0, %v2065
        %v2067 = vpop.f32.mrb[0].mxu0
        %v2068 = vpop.f32.mrb[0].mxu0
        %v2069 = vadd.f32 0.0, %v2068
        %v2070 = vpop.f32.mrb[0].mxu0
        %2071 = vmatprep.mubr.bf16.mxu0 %v1646
        %2072 = vmatmul.mubr.bf16.gmra.mrb[0].mxu0 %v1446
        %v2073 = vpop.f32.mrb[0].mxu0
        %v2074 = vadd.f32 0.0, %v2073
        %v2075 = vpop.f32.mrb[0].mxu0
        %v2076 = vpop.f32.mrb[0].mxu0
        %v2077 = vadd.f32 0.0, %v2076
        %v2078 = vpop.f32.mrb[0].mxu0
        %2079 = vmatprep.mubr.bf16.mxu0 %v1649
        %2080 = vmatmul.mubr.bf16.gmra.mrb[0].mxu0 %v1448
        %v2081 = vpop.f32.mrb[0].mxu0
        %v2082 = vadd.f32 0.0, %v2081
        %v2083 = vpop.f32.mrb[0].mxu0
        %v2084 = vpop.f32.mrb[0].mxu0
        %v2085 = vadd.f32 0.0, %v2084
        %v2086 = vpop.f32.mrb[0].mxu0
        %2087 = vdwg.mxu0
        %v2088 = vpack.c.bf16 %v1693, %v1690
        %v2089 = vpack.c.bf16 %v1701, %v1698
        %v2090 = vpack.c.bf16 %v1709, %v1706
        %v2091 = vpack.c.bf16 %v1717, %v1714
        %v2092 = vpack.c.bf16 %v1725, %v1722
        %v2093 = vpack.c.bf16 %v1733, %v1730
        %v2094 = vpack.c.bf16 %v1741, %v1738
        %v2095 = vpack.c.bf16 %v1749, %v1746
        %v2096 = vpack.c.bf16 %v1757, %v1754
        %v2097 = vpack.c.bf16 %v1765, %v1762
        %v2098 = vpack.c.bf16 %v1773, %v1770
        %v2099 = vpack.c.bf16 %v1781, %v1778
        %v2100 = vpack.c.bf16 %v1789, %v1786
        %v2101 = vpack.c.bf16 %v1797, %v1794
        %v2102 = vpack.c.bf16 %v1805, %v1802
        %v2103 = vpack.c.bf16 %v1813, %v1810
        %v2104 = vpack.c.bf16 %v1821, %v1818
        %v2105 = vpack.c.bf16 %v1829, %v1826
        %v2106 = vpack.c.bf16 %v1837, %v1834
        %v2107 = vpack.c.bf16 %v1845, %v1842
        %v2108 = vpack.c.bf16 %v1853, %v1850
        %v2109 = vpack.c.bf16 %v1861, %v1858
        %v2110 = vpack.c.bf16 %v1869, %v1866
        %v2111 = vpack.c.bf16 %v1877, %v1874
        %v2112 = vpack.c.bf16 %v1885, %v1882
        %v2113 = vpack.c.bf16 %v1893, %v1890
        %v2114 = vpack.c.bf16 %v1901, %v1898
        %v2115 = vpack.c.bf16 %v1909, %v1906
        %v2116 = vpack.c.bf16 %v1917, %v1914
        %v2117 = vpack.c.bf16 %v1925, %v1922
        %v2118 = vpack.c.bf16 %v1933, %v1930
        %v2119 = vpack.c.bf16 %v1941, %v1938
        %v2120 = vpack.c.bf16 %v1949, %v1946
        %v2121 = vpack.c.bf16 %v1957, %v1954
        %v2122 = vpack.c.bf16 %v1965, %v1962
        %v2123 = vpack.c.bf16 %v1973, %v1970
        %v2124 = vpack.c.bf16 %v1981, %v1978
        %v2125 = vpack.c.bf16 %v1989, %v1986
        %v2126 = vpack.c.bf16 %v1997, %v1994
        %v2127 = vpack.c.bf16 %v2005, %v2002
        %v2128 = vpack.c.bf16 %v2013, %v2010
        %v2129 = vpack.c.bf16 %v2021, %v2018
        %v2130 = vpack.c.bf16 %v2029, %v2026
        %v2131 = vpack.c.bf16 %v2037, %v2034
        %v2132 = vpack.c.bf16 %v2045, %v2042
        %v2133 = vpack.c.bf16 %v2053, %v2050
        %v2134 = vpack.c.bf16 %v2061, %v2058
        %v2135 = vpack.c.bf16 %v2069, %v2066
        %v2136 = vpack.c.bf16 %v2077, %v2074
        %v2137 = vpack.c.bf16 %v2085, %v2082
        %v2138 = vld [vmem:[%s5] sm:$0xf]
        %v2139 = vld [vmem:[%s5 + $0x4] sm:$0xf]
        %s2140 = scalar_lea.vmem %s5, 8
        %v2141 = vld [vmem:[%s2140] sm:$0xf]
        %v2142 = vld [vmem:[%s2140 + $0x4] sm:$0xf]
        %v2145 = vunpack.c.l.b16 %v2141
        %v2146 = vunpack.c.l.b16 %v2142
        %v2147 = vpack.c.b16 %v2146, %v2145
        %vm2149 = vcmask 130048
        %v2151 = vsel %vm2149, %v2090, 0
        %v2154 = vsel %vm2149, %v2091, 0
        %2156 = vmatprep.subr.bf16.mxu0 0
        %2157 = vmatpush1.bf16.msra.mxu0 %v2147
        %2158 = vmatprep.subr.bf16.mxu0 0
        %2159 = vmatpush1.bf16.msra.mxu0 0
        %2160 = vmatprep.subr.bf16.mxu0 0
        %2161 = vmatpush1.bf16.msra.mxu0 0
        %2162 = vmatprep.subr.bf16.mxu0 0
        %2163 = vmatpush1.bf16.msra.mxu0 0
        %2164 = vmatprep.subr.bf16.mxu0 0
        %2165 = vmatpush1.bf16.msra.mxu0 0
        %2166 = vmatprep.subr.bf16.mxu0 0
        %2167 = vmatpush1.bf16.msra.mxu0 0
        %2168 = vmatprep.subr.bf16.mxu0 0
        %2169 = vmatpush1.bf16.msra.mxu0 0
        %2170 = vmatprep.subr.bf16.mxu0 0
        %2171 = vmatpush1.bf16.msra.mxu0 0
        %2172 = vmatprep.subr.bf16.mxu0 0
        %2173 = vmatpush1.bf16.msra.mxu0 0
        %2174 = vmatprep.subr.bf16.mxu0 0
        %2175 = vmatpush1.bf16.msra.mxu0 0
        %2176 = vmatprep.subr.bf16.mxu0 0
        %2177 = vmatpush1.bf16.msra.mxu0 0
        %2178 = vmatprep.subr.bf16.mxu0 0
        %2179 = vmatpush1.bf16.msra.mxu0 0
        %2180 = vmatprep.subr.bf16.mxu0 0
        %2181 = vmatpush1.bf16.msra.mxu0 0
        %2182 = vmatprep.subr.bf16.mxu0 0
        %2183 = vmatpush1.bf16.msra.mxu0 0
        %2184 = vmatprep.subr.bf16.mxu0 0
        %2185 = vmatpush1.bf16.msra.mxu0 0
        %2186 = vmatprep.subr.bf16.mxu0 0
        %2187 = vmatpush1.bf16.msra.mxu0 0
        %2188 = vmatprep.mubr.bf16.mxu0 0
        %2189 = vmatmul.mubr.bf16.gmra.mrb[0].mxu0 %v2151
        %v2190 = vpop.f32.mrb[0].mxu0
        %v2191 = vadd.f32 0.0, %v2190
        %v2192 = vpop.f32.mrb[0].mxu0
        %v2193 = vpop.f32.mrb[0].mxu0
        %v2194 = vadd.f32 0.0, %v2193
        %v2195 = vpop.f32.mrb[0].mxu0
        %2196 = vmatprep.mubr.bf16.mxu0 0
        %2197 = vmatmul.mubr.bf16.gmra.mrb[0].mxu0 %v2154
        %v2198 = vpop.f32.mrb[0].mxu0
        %v2199 = vadd.f32 0.0, %v2198
        %v2200 = vpop.f32.mrb[0].mxu0
        %v2201 = vpop.f32.mrb[0].mxu0
        %v2202 = vadd.f32 0.0, %v2201
        %v2203 = vpop.f32.mrb[0].mxu0
        %2204 = vdwg.mxu0
        %v2207 = vunpack.c.l.b16 %v2138
        %v2208 = vunpack.c.l.b16 %v2139
        %v2209 = vpack.c.b16 %v2208, %v2207
        %v2212 = vsel %vm2149, %v2088, 0
        %v2215 = vsel %vm2149, %v2089, 0
        %2217 = vmatprep.subr.bf16.mxu0 0
        %2218 = vmatpush1.bf16.msra.mxu0 %v2209
        %2219 = vmatprep.subr.bf16.mxu0 0
        %2220 = vmatpush1.bf16.msra.mxu0 0
        %2221 = vmatprep.subr.bf16.mxu0 0
        %2222 = vmatpush1.bf16.msra.mxu0 0
        %2223 = vmatprep.subr.bf16.mxu0 0
        %2224 = vmatpush1.bf16.msra.mxu0 0
        %2225 = vmatprep.subr.bf16.mxu0 0
        %2226 = vmatpush1.bf16.msra.mxu0 0
        %2227 = vmatprep.subr.bf16.mxu0 0
        %2228 = vmatpush1.bf16.msra.mxu0 0
        %2229 = vmatprep.subr.bf16.mxu0 0
        %2230 = vmatpush1.bf16.msra.mxu0 0
        %2231 = vmatprep.subr.bf16.mxu0 0
        %2232 = vmatpush1.bf16.msra.mxu0 0
        %2233 = vmatprep.subr.bf16.mxu0 0
        %2234 = vmatpush1.bf16.msra.mxu0 0
        %2235 = vmatprep.subr.bf16.mxu0 0
        %2236 = vmatpush1.bf16.msra.mxu0 0
        %2237 = vmatprep.subr.bf16.mxu0 0
        %2238 = vmatpush1.bf16.msra.mxu0 0
        %2239 = vmatprep.subr.bf16.mxu0 0
        %2240 = vmatpush1.bf16.msra.mxu0 0
        %2241 = vmatprep.subr.bf16.mxu0 0
        %2242 = vmatpush1.bf16.msra.mxu0 0
        %2243 = vmatprep.subr.bf16.mxu0 0
        %2244 = vmatpush1.bf16.msra.mxu0 0
        %2245 = vmatprep.subr.bf16.mxu0 0
        %2246 = vmatpush1.bf16.msra.mxu0 0
        %2247 = vmatprep.subr.bf16.mxu0 0
        %2248 = vmatpush1.bf16.msra.mxu0 0
        %2249 = vmatprep.mubr.bf16.mxu0 0
        %2250 = vmatmul.mubr.bf16.gmra.mrb[0].mxu0 %v2212
        %v2251 = vpop.f32.mrb[0].mxu0
        %v2252 = vadd.f32 %v2191, %v2251
        %v2253 = vpop.f32.mrb[0].mxu0
        %v2254 = vpop.f32.mrb[0].mxu0
        %v2255 = vadd.f32 %v2194, %v2254
        %v2256 = vpop.f32.mrb[0].mxu0
        %2257 = vmatprep.mubr.bf16.mxu0 0
        %2258 = vmatmul.mubr.bf16.gmra.mrb[0].mxu0 %v2215
        %v2259 = vpop.f32.mrb[0].mxu0
        %v2260 = vadd.f32 %v2199, %v2259
        %v2261 = vpop.f32.mrb[0].mxu0
        %v2262 = vpop.f32.mrb[0].mxu0
        %v2263 = vadd.f32 %v2202, %v2262
        %v2264 = vpop.f32.mrb[0].mxu0
        %2265 = vdwg.mxu0
        %s2266 = scalar_lea.vmem %s5, 16
        %v2267 = vld [vmem:[%s2266] sm:$0xf]
        %v2268 = vld [vmem:[%s2266 + $0x4] sm:$0xf]
        %v2271 = vunpack.c.l.b16 %v2267
        %v2272 = vunpack.c.l.b16 %v2268
        %v2273 = vpack.c.b16 %v2272, %v2271
        %v2276 = vsel %vm2149, %v2092, 0
        %v2279 = vsel %vm2149, %v2093, 0
        %2281 = vmatprep.subr.bf16.mxu0 0
        %2282 = vmatpush1.bf16.msra.mxu0 %v2273
        %2283 = vmatprep.subr.bf16.mxu0 0
        %2284 = vmatpush1.bf16.msra.mxu0 0
        %2285 = vmatprep.subr.bf16.mxu0 0
        %2286 = vmatpush1.bf16.msra.mxu0 0
        %2287 = vmatprep.subr.bf16.mxu0 0
        %2288 = vmatpush1.bf16.msra.mxu0 0
        %2289 = vmatprep.subr.bf16.mxu0 0
        %2290 = vmatpush1.bf16.msra.mxu0 0
        %2291 = vmatprep.subr.bf16.mxu0 0
        %2292 = vmatpush1.bf16.msra.mxu0 0
        %2293 = vmatprep.subr.bf16.mxu0 0
        %2294 = vmatpush1.bf16.msra.mxu0 0
        %2295 = vmatprep.subr.bf16.mxu0 0
        %2296 = vmatpush1.bf16.msra.mxu0 0
        %2297 = vmatprep.subr.bf16.mxu0 0
        %2298 = vmatpush1.bf16.msra.mxu0 0
        %2299 = vmatprep.subr.bf16.mxu0 0
        %2300 = vmatpush1.bf16.msra.mxu0 0
        %2301 = vmatprep.subr.bf16.mxu0 0
        %2302 = vmatpush1.bf16.msra.mxu0 0
        %2303 = vmatprep.subr.bf16.mxu0 0
        %2304 = vmatpush1.bf16.msra.mxu0 0
        %2305 = vmatprep.subr.bf16.mxu0 0
        %2306 = vmatpush1.bf16.msra.mxu0 0
        %2307 = vmatprep.subr.bf16.mxu0 0
        %2308 = vmatpush1.bf16.msra.mxu0 0
        %2309 = vmatprep.subr.bf16.mxu0 0
        %2310 = vmatpush1.bf16.msra.mxu0 0
        %2311 = vmatprep.subr.bf16.mxu0 0
        %2312 = vmatpush1.bf16.msra.mxu0 0
        %2313 = vmatprep.mubr.bf16.mxu0 0
        %2314 = vmatmul.mubr.bf16.gmra.mrb[0].mxu0 %v2276
        %v2315 = vpop.f32.mrb[0].mxu0
        %v2316 = vadd.f32 0.0, %v2315
        %v2317 = vpop.f32.mrb[0].mxu0
        %v2318 = vpop.f32.mrb[0].mxu0
        %v2319 = vadd.f32 0.0, %v2318
        %v2320 = vpop.f32.mrb[0].mxu0
        %2321 = vmatprep.mubr.bf16.mxu0 0
        %2322 = vmatmul.mubr.bf16.gmra.mrb[0].mxu0 %v2279
        %v2323 = vpop.f32.mrb[0].mxu0
        %v2324 = vadd.f32 0.0, %v2323
        %v2325 = vpop.f32.mrb[0].mxu0
        %v2326 = vpop.f32.mrb[0].mxu0
        %v2327 = vadd.f32 0.0, %v2326
        %v2328 = vpop.f32.mrb[0].mxu0
        %2329 = vdwg.mxu0
        %v2330 = vadd.f32 %v2252, %v2316
        %v2331 = vadd.f32 %v2255, %v2319
        %v2332 = vadd.f32 %v2260, %v2324
        %v2333 = vadd.f32 %v2263, %v2327
        %s2334 = scalar_lea.vmem %s5, 24
        %v2335 = vld [vmem:[%s2334] sm:$0xf]
        %v2336 = vld [vmem:[%s2334 + $0x4] sm:$0xf]
        %v2339 = vunpack.c.l.b16 %v2335
        %v2340 = vunpack.c.l.b16 %v2336
        %v2341 = vpack.c.b16 %v2340, %v2339
        %v2344 = vsel %vm2149, %v2094, 0
        %v2347 = vsel %vm2149, %v2095, 0
        %2349 = vmatprep.subr.bf16.mxu0 0
        %2350 = vmatpush1.bf16.msra.mxu0 %v2341
        %2351 = vmatprep.subr.bf16.mxu0 0
        %2352 = vmatpush1.bf16.msra.mxu0 0
        %2353 = vmatprep.subr.bf16.mxu0 0
        %2354 = vmatpush1.bf16.msra.mxu0 0
        %2355 = vmatprep.subr.bf16.mxu0 0
        %2356 = vmatpush1.bf16.msra.mxu0 0
        %2357 = vmatprep.subr.bf16.mxu0 0
        %2358 = vmatpush1.bf16.msra.mxu0 0
        %2359 = vmatprep.subr.bf16.mxu0 0
        %2360 = vmatpush1.bf16.msra.mxu0 0
        %2361 = vmatprep.subr.bf16.mxu0 0
        %2362 = vmatpush1.bf16.msra.mxu0 0
        %2363 = vmatprep.subr.bf16.mxu0 0
        %2364 = vmatpush1.bf16.msra.mxu0 0
        %2365 = vmatprep.subr.bf16.mxu0 0
        %2366 = vmatpush1.bf16.msra.mxu0 0
        %2367 = vmatprep.subr.bf16.mxu0 0
        %2368 = vmatpush1.bf16.msra.mxu0 0
        %2369 = vmatprep.subr.bf16.mxu0 0
        %2370 = vmatpush1.bf16.msra.mxu0 0
        %2371 = vmatprep.subr.bf16.mxu0 0
        %2372 = vmatpush1.bf16.msra.mxu0 0
        %2373 = vmatprep.subr.bf16.mxu0 0
        %2374 = vmatpush1.bf16.msra.mxu0 0
        %2375 = vmatprep.subr.bf16.mxu0 0
        %2376 = vmatpush1.bf16.msra.mxu0 0
        %2377 = vmatprep.subr.bf16.mxu0 0
        %2378 = vmatpush1.bf16.msra.mxu0 0
        %2379 = vmatprep.subr.bf16.mxu0 0
        %2380 = vmatpush1.bf16.msra.mxu0 0
        %2381 = vmatprep.mubr.bf16.mxu0 0
        %2382 = vmatmul.mubr.bf16.gmra.mrb[0].mxu0 %v2344
        %v2383 = vpop.f32.mrb[0].mxu0
        %v2384 = vadd.f32 0.0, %v2383
        %v2385 = vpop.f32.mrb[0].mxu0
        %v2386 = vpop.f32.mrb[0].mxu0
        %v2387 = vadd.f32 0.0, %v2386
        %v2388 = vpop.f32.mrb[0].mxu0
        %2389 = vmatprep.mubr.bf16.mxu0 0
        %2390 = vmatmul.mubr.bf16.gmra.mrb[0].mxu0 %v2347
        %v2391 = vpop.f32.mrb[0].mxu0
        %v2392 = vadd.f32 0.0, %v2391
        %v2393 = vpop.f32.mrb[0].mxu0
        %v2394 = vpop.f32.mrb[0].mxu0
        %v2395 = vadd.f32 0.0, %v2394
        %v2396 = vpop.f32.mrb[0].mxu0
        %2397 = vdwg.mxu0
        %v2398 = vadd.f32 %v2330, %v2384
        %v2399 = vadd.f32 %v2331, %v2387
        %v2400 = vadd.f32 %v2332, %v2392
        %v2401 = vadd.f32 %v2333, %v2395
        %s2402 = scalar_lea.vmem %s5, 32
        %v2403 = vld [vmem:[%s2402] sm:$0xf]
        %v2404 = vld [vmem:[%s2402 + $0x4] sm:$0xf]
        %v2407 = vunpack.c.l.b16 %v2403
        %v2408 = vunpack.c.l.b16 %v2404
        %v2409 = vpack.c.b16 %v2408, %v2407
        %v2412 = vsel %vm2149, %v2096, 0
        %v2415 = vsel %vm2149, %v2097, 0
        %2417 = vmatprep.subr.bf16.mxu0 0
        %2418 = vmatpush1.bf16.msra.mxu0 %v2409
        %2419 = vmatprep.subr.bf16.mxu0 0
        %2420 = vmatpush1.bf16.msra.mxu0 0
        %2421 = vmatprep.subr.bf16.mxu0 0
        %2422 = vmatpush1.bf16.msra.mxu0 0
        %2423 = vmatprep.subr.bf16.mxu0 0
        %2424 = vmatpush1.bf16.msra.mxu0 0
        %2425 = vmatprep.subr.bf16.mxu0 0
        %2426 = vmatpush1.bf16.msra.mxu0 0
        %2427 = vmatprep.subr.bf16.mxu0 0
        %2428 = vmatpush1.bf16.msra.mxu0 0
        %2429 = vmatprep.subr.bf16.mxu0 0
        %2430 = vmatpush1.bf16.msra.mxu0 0
        %2431 = vmatprep.subr.bf16.mxu0 0
        %2432 = vmatpush1.bf16.msra.mxu0 0
        %2433 = vmatprep.subr.bf16.mxu0 0
        %2434 = vmatpush1.bf16.msra.mxu0 0
        %2435 = vmatprep.subr.bf16.mxu0 0
        %2436 = vmatpush1.bf16.msra.mxu0 0
        %2437 = vmatprep.subr.bf16.mxu0 0
        %2438 = vmatpush1.bf16.msra.mxu0 0
        %2439 = vmatprep.subr.bf16.mxu0 0
        %2440 = vmatpush1.bf16.msra.mxu0 0
        %2441 = vmatprep.subr.bf16.mxu0 0
        %2442 = vmatpush1.bf16.msra.mxu0 0
        %2443 = vmatprep.subr.bf16.mxu0 0
        %2444 = vmatpush1.bf16.msra.mxu0 0
        %2445 = vmatprep.subr.bf16.mxu0 0
        %2446 = vmatpush1.bf16.msra.mxu0 0
        %2447 = vmatprep.subr.bf16.mxu0 0
        %2448 = vmatpush1.bf16.msra.mxu0 0
        %2449 = vmatprep.mubr.bf16.mxu0 0
        %2450 = vmatmul.mubr.bf16.gmra.mrb[0].mxu0 %v2412
        %v2451 = vpop.f32.mrb[0].mxu0
        %v2452 = vadd.f32 0.0, %v2451
        %v2453 = vpop.f32.mrb[0].mxu0
        %v2454 = vpop.f32.mrb[0].mxu0
        %v2455 = vadd.f32 0.0, %v2454
        %v2456 = vpop.f32.mrb[0].mxu0
        %2457 = vmatprep.mubr.bf16.mxu0 0
        %2458 = vmatmul.mubr.bf16.gmra.mrb[0].mxu0 %v2415
        %v2459 = vpop.f32.mrb[0].mxu0
        %v2460 = vadd.f32 0.0, %v2459
        %v2461 = vpop.f32.mrb[0].mxu0
        %v2462 = vpop.f32.mrb[0].mxu0
        %v2463 = vadd.f32 0.0, %v2462
        %v2464 = vpop.f32.mrb[0].mxu0
        %2465 = vdwg.mxu0
        %v2466 = vadd.f32 %v2398, %v2452
        %v2467 = vadd.f32 %v2399, %v2455
        %v2468 = vadd.f32 %v2400, %v2460
        %v2469 = vadd.f32 %v2401, %v2463
        %s2470 = scalar_lea.vmem %s5, 40
        %v2471 = vld [vmem:[%s2470] sm:$0xf]
        %v2472 = vld [vmem:[%s2470 + $0x4] sm:$0xf]
        %v2475 = vunpack.c.l.b16 %v2471
        %v2476 = vunpack.c.l.b16 %v2472
        %v2477 = vpack.c.b16 %v2476, %v2475
        %v2480 = vsel %vm2149, %v2098, 0
        %v2483 = vsel %vm2149, %v2099, 0
        %2485 = vmatprep.subr.bf16.mxu0 0
        %2486 = vmatpush1.bf16.msra.mxu0 %v2477
        %2487 = vmatprep.subr.bf16.mxu0 0
        %2488 = vmatpush1.bf16.msra.mxu0 0
        %2489 = vmatprep.subr.bf16.mxu0 0
        %2490 = vmatpush1.bf16.msra.mxu0 0
        %2491 = vmatprep.subr.bf16.mxu0 0
        %2492 = vmatpush1.bf16.msra.mxu0 0
        %2493 = vmatprep.subr.bf16.mxu0 0
        %2494 = vmatpush1.bf16.msra.mxu0 0
        %2495 = vmatprep.subr.bf16.mxu0 0
        %2496 = vmatpush1.bf16.msra.mxu0 0
        %2497 = vmatprep.subr.bf16.mxu0 0
        %2498 = vmatpush1.bf16.msra.mxu0 0
        %2499 = vmatprep.subr.bf16.mxu0 0
        %2500 = vmatpush1.bf16.msra.mxu0 0
        %2501 = vmatprep.subr.bf16.mxu0 0
        %2502 = vmatpush1.bf16.msra.mxu0 0
        %2503 = vmatprep.subr.bf16.mxu0 0
        %2504 = vmatpush1.bf16.msra.mxu0 0
        %2505 = vmatprep.subr.bf16.mxu0 0
        %2506 = vmatpush1.bf16.msra.mxu0 0
        %2507 = vmatprep.subr.bf16.mxu0 0
        %2508 = vmatpush1.bf16.msra.mxu0 0
        %2509 = vmatprep.subr.bf16.mxu0 0
        %2510 = vmatpush1.bf16.msra.mxu0 0
        %2511 = vmatprep.subr.bf16.mxu0 0
        %2512 = vmatpush1.bf16.msra.mxu0 0
        %2513 = vmatprep.subr.bf16.mxu0 0
        %2514 = vmatpush1.bf16.msra.mxu0 0
        %2515 = vmatprep.subr.bf16.mxu0 0
        %2516 = vmatpush1.bf16.msra.mxu0 0
        %2517 = vmatprep.mubr.bf16.mxu0 0
        %2518 = vmatmul.mubr.bf16.gmra.mrb[0].mxu0 %v2480
        %v2519 = vpop.f32.mrb[0].mxu0
        %v2520 = vadd.f32 0.0, %v2519
        %v2521 = vpop.f32.mrb[0].mxu0
        %v2522 = vpop.f32.mrb[0].mxu0
        %v2523 = vadd.f32 0.0, %v2522
        %v2524 = vpop.f32.mrb[0].mxu0
        %2525 = vmatprep.mubr.bf16.mxu0 0
        %2526 = vmatmul.mubr.bf16.gmra.mrb[0].mxu0 %v2483
        %v2527 = vpop.f32.mrb[0].mxu0
        %v2528 = vadd.f32 0.0, %v2527
        %v2529 = vpop.f32.mrb[0].mxu0
        %v2530 = vpop.f32.mrb[0].mxu0
        %v2531 = vadd.f32 0.0, %v2530
        %v2532 = vpop.f32.mrb[0].mxu0
        %2533 = vdwg.mxu0
        %v2534 = vadd.f32 %v2466, %v2520
        %v2535 = vadd.f32 %v2467, %v2523
        %v2536 = vadd.f32 %v2468, %v2528
        %v2537 = vadd.f32 %v2469, %v2531
        %s2538 = scalar_lea.vmem %s5, 48
        %v2539 = vld [vmem:[%s2538] sm:$0xf]
        %v2540 = vld [vmem:[%s2538 + $0x4] sm:$0xf]
        %v2543 = vunpack.c.l.b16 %v2539
        %v2544 = vunpack.c.l.b16 %v2540
        %v2545 = vpack.c.b16 %v2544, %v2543
        %v2548 = vsel %vm2149, %v2100, 0
        %v2551 = vsel %vm2149, %v2101, 0
        %2553 = vmatprep.subr.bf16.mxu0 0
        %2554 = vmatpush1.bf16.msra.mxu0 %v2545
        %2555 = vmatprep.subr.bf16.mxu0 0
        %2556 = vmatpush1.bf16.msra.mxu0 0
        %2557 = vmatprep.subr.bf16.mxu0 0
        %2558 = vmatpush1.bf16.msra.mxu0 0
        %2559 = vmatprep.subr.bf16.mxu0 0
        %2560 = vmatpush1.bf16.msra.mxu0 0
        %2561 = vmatprep.subr.bf16.mxu0 0
        %2562 = vmatpush1.bf16.msra.mxu0 0
        %2563 = vmatprep.subr.bf16.mxu0 0
        %2564 = vmatpush1.bf16.msra.mxu0 0
        %2565 = vmatprep.subr.bf16.mxu0 0
        %2566 = vmatpush1.bf16.msra.mxu0 0
        %2567 = vmatprep.subr.bf16.mxu0 0
        %2568 = vmatpush1.bf16.msra.mxu0 0
        %2569 = vmatprep.subr.bf16.mxu0 0
        %2570 = vmatpush1.bf16.msra.mxu0 0
        %2571 = vmatprep.subr.bf16.mxu0 0
        %2572 = vmatpush1.bf16.msra.mxu0 0
        %2573 = vmatprep.subr.bf16.mxu0 0
        %2574 = vmatpush1.bf16.msra.mxu0 0
        %2575 = vmatprep.subr.bf16.mxu0 0
        %2576 = vmatpush1.bf16.msra.mxu0 0
        %2577 = vmatprep.subr.bf16.mxu0 0
        %2578 = vmatpush1.bf16.msra.mxu0 0
        %2579 = vmatprep.subr.bf16.mxu0 0
        %2580 = vmatpush1.bf16.msra.mxu0 0
        %2581 = vmatprep.subr.bf16.mxu0 0
        %2582 = vmatpush1.bf16.msra.mxu0 0
        %2583 = vmatprep.subr.bf16.mxu0 0
        %2584 = vmatpush1.bf16.msra.mxu0 0
        %2585 = vmatprep.mubr.bf16.mxu0 0
        %2586 = vmatmul.mubr.bf16.gmra.mrb[0].mxu0 %v2548
        %v2587 = vpop.f32.mrb[0].mxu0
        %v2588 = vadd.f32 0.0, %v2587
        %v2589 = vpop.f32.mrb[0].mxu0
        %v2590 = vpop.f32.mrb[0].mxu0
        %v2591 = vadd.f32 0.0, %v2590
        %v2592 = vpop.f32.mrb[0].mxu0
        %2593 = vmatprep.mubr.bf16.mxu0 0
        %2594 = vmatmul.mubr.bf16.gmra.mrb[0].mxu0 %v2551
        %v2595 = vpop.f32.mrb[0].mxu0
        %v2596 = vadd.f32 0.0, %v2595
        %v2597 = vpop.f32.mrb[0].mxu0
        %v2598 = vpop.f32.mrb[0].mxu0
        %v2599 = vadd.f32 0.0, %v2598
        %v2600 = vpop.f32.mrb[0].mxu0
        %2601 = vdwg.mxu0
        %v2602 = vadd.f32 %v2534, %v2588
        %v2603 = vadd.f32 %v2535, %v2591
        %v2604 = vadd.f32 %v2536, %v2596
        %v2605 = vadd.f32 %v2537, %v2599
        %s2606 = scalar_lea.vmem %s5, 56
        %v2607 = vld [vmem:[%s2606] sm:$0xf]
        %v2608 = vld [vmem:[%s2606 + $0x4] sm:$0xf]
        %v2611 = vunpack.c.l.b16 %v2607
        %v2612 = vunpack.c.l.b16 %v2608
        %v2613 = vpack.c.b16 %v2612, %v2611
        %v2616 = vsel %vm2149, %v2102, 0
        %v2619 = vsel %vm2149, %v2103, 0
        %2621 = vmatprep.subr.bf16.mxu0 0
        %2622 = vmatpush1.bf16.msra.mxu0 %v2613
        %2623 = vmatprep.subr.bf16.mxu0 0
        %2624 = vmatpush1.bf16.msra.mxu0 0
        %2625 = vmatprep.subr.bf16.mxu0 0
        %2626 = vmatpush1.bf16.msra.mxu0 0
        %2627 = vmatprep.subr.bf16.mxu0 0
        %2628 = vmatpush1.bf16.msra.mxu0 0
        %2629 = vmatprep.subr.bf16.mxu0 0
        %2630 = vmatpush1.bf16.msra.mxu0 0
        %2631 = vmatprep.subr.bf16.mxu0 0
        %2632 = vmatpush1.bf16.msra.mxu0 0
        %2633 = vmatprep.subr.bf16.mxu0 0
        %2634 = vmatpush1.bf16.msra.mxu0 0
        %2635 = vmatprep.subr.bf16.mxu0 0
        %2636 = vmatpush1.bf16.msra.mxu0 0
        %2637 = vmatprep.subr.bf16.mxu0 0
        %2638 = vmatpush1.bf16.msra.mxu0 0
        %2639 = vmatprep.subr.bf16.mxu0 0
        %2640 = vmatpush1.bf16.msra.mxu0 0
        %2641 = vmatprep.subr.bf16.mxu0 0
        %2642 = vmatpush1.bf16.msra.mxu0 0
        %2643 = vmatprep.subr.bf16.mxu0 0
        %2644 = vmatpush1.bf16.msra.mxu0 0
        %2645 = vmatprep.subr.bf16.mxu0 0
        %2646 = vmatpush1.bf16.msra.mxu0 0
        %2647 = vmatprep.subr.bf16.mxu0 0
        %2648 = vmatpush1.bf16.msra.mxu0 0
        %2649 = vmatprep.subr.bf16.mxu0 0
        %2650 = vmatpush1.bf16.msra.mxu0 0
        %2651 = vmatprep.subr.bf16.mxu0 0
        %2652 = vmatpush1.bf16.msra.mxu0 0
        %2653 = vmatprep.mubr.bf16.mxu0 0
        %2654 = vmatmul.mubr.bf16.gmra.mrb[0].mxu0 %v2616
        %v2655 = vpop.f32.mrb[0].mxu0
        %v2656 = vadd.f32 0.0, %v2655
        %v2657 = vpop.f32.mrb[0].mxu0
        %v2658 = vpop.f32.mrb[0].mxu0
        %v2659 = vadd.f32 0.0, %v2658
        %v2660 = vpop.f32.mrb[0].mxu0
        %2661 = vmatprep.mubr.bf16.mxu0 0
        %2662 = vmatmul.mubr.bf16.gmra.mrb[0].mxu0 %v2619
        %v2663 = vpop.f32.mrb[0].mxu0
        %v2664 = vadd.f32 0.0, %v2663
        %v2665 = vpop.f32.mrb[0].mxu0
        %v2666 = vpop.f32.mrb[0].mxu0
        %v2667 = vadd.f32 0.0, %v2666
        %v2668 = vpop.f32.mrb[0].mxu0
        %2669 = vdwg.mxu0
        %v2670 = vadd.f32 %v2602, %v2656
        %v2671 = vadd.f32 %v2603, %v2659
        %v2672 = vadd.f32 %v2604, %v2664
        %v2673 = vadd.f32 %v2605, %v2667
        %s2674 = scalar_lea.vmem %s5, 64
        %v2675 = vld [vmem:[%s2674] sm:$0xf]
        %v2676 = vld [vmem:[%s2674 + $0x4] sm:$0xf]
        %v2679 = vunpack.c.l.b16 %v2675
        %v2680 = vunpack.c.l.b16 %v2676
        %v2681 = vpack.c.b16 %v2680, %v2679
        %v2684 = vsel %vm2149, %v2104, 0
        %v2687 = vsel %vm2149, %v2105, 0
        %2689 = vmatprep.subr.bf16.mxu0 0
        %2690 = vmatpush1.bf16.msra.mxu0 %v2681
        %2691 = vmatprep.subr.bf16.mxu0 0
        %2692 = vmatpush1.bf16.msra.mxu0 0
        %2693 = vmatprep.subr.bf16.mxu0 0
        %2694 = vmatpush1.bf16.msra.mxu0 0
        %2695 = vmatprep.subr.bf16.mxu0 0
        %2696 = vmatpush1.bf16.msra.mxu0 0
        %2697 = vmatprep.subr.bf16.mxu0 0
        %2698 = vmatpush1.bf16.msra.mxu0 0
        %2699 = vmatprep.subr.bf16.mxu0 0
        %2700 = vmatpush1.bf16.msra.mxu0 0
        %2701 = vmatprep.subr.bf16.mxu0 0
        %2702 = vmatpush1.bf16.msra.mxu0 0
        %2703 = vmatprep.subr.bf16.mxu0 0
        %2704 = vmatpush1.bf16.msra.mxu0 0
        %2705 = vmatprep.subr.bf16.mxu0 0
        %2706 = vmatpush1.bf16.msra.mxu0 0
        %2707 = vmatprep.subr.bf16.mxu0 0
        %2708 = vmatpush1.bf16.msra.mxu0 0
        %2709 = vmatprep.subr.bf16.mxu0 0
        %2710 = vmatpush1.bf16.msra.mxu0 0
        %2711 = vmatprep.subr.bf16.mxu0 0
        %2712 = vmatpush1.bf16.msra.mxu0 0
        %2713 = vmatprep.subr.bf16.mxu0 0
        %2714 = vmatpush1.bf16.msra.mxu0 0
        %2715 = vmatprep.subr.bf16.mxu0 0
        %2716 = vmatpush1.bf16.msra.mxu0 0
        %2717 = vmatprep.subr.bf16.mxu0 0
        %2718 = vmatpush1.bf16.msra.mxu0 0
        %2719 = vmatprep.subr.bf16.mxu0 0
        %2720 = vmatpush1.bf16.msra.mxu0 0
        %2721 = vmatprep.mubr.bf16.mxu0 0
        %2722 = vmatmul.mubr.bf16.gmra.mrb[0].mxu0 %v2684
        %v2723 = vpop.f32.mrb[0].mxu0
        %v2724 = vadd.f32 0.0, %v2723
        %v2725 = vpop.f32.mrb[0].mxu0
        %v2726 = vpop.f32.mrb[0].mxu0
        %v2727 = vadd.f32 0.0, %v2726
        %v2728 = vpop.f32.mrb[0].mxu0
        %2729 = vmatprep.mubr.bf16.mxu0 0
        %2730 = vmatmul.mubr.bf16.gmra.mrb[0].mxu0 %v2687
        %v2731 = vpop.f32.mrb[0].mxu0
        %v2732 = vadd.f32 0.0, %v2731
        %v2733 = vpop.f32.mrb[0].mxu0
        %v2734 = vpop.f32.mrb[0].mxu0
        %v2735 = vadd.f32 0.0, %v2734
        %v2736 = vpop.f32.mrb[0].mxu0
        %2737 = vdwg.mxu0
        %v2738 = vadd.f32 %v2670, %v2724
        %v2739 = vadd.f32 %v2671, %v2727
        %v2740 = vadd.f32 %v2672, %v2732
        %v2741 = vadd.f32 %v2673, %v2735
        %s2742 = scalar_lea.vmem %s5, 72
        %v2743 = vld [vmem:[%s2742] sm:$0xf]
        %v2744 = vld [vmem:[%s2742 + $0x4] sm:$0xf]
        %v2747 = vunpack.c.l.b16 %v2743
        %v2748 = vunpack.c.l.b16 %v2744
        %v2749 = vpack.c.b16 %v2748, %v2747
        %v2752 = vsel %vm2149, %v2106, 0
        %v2755 = vsel %vm2149, %v2107, 0
        %2757 = vmatprep.subr.bf16.mxu0 0
        %2758 = vmatpush1.bf16.msra.mxu0 %v2749
        %2759 = vmatprep.subr.bf16.mxu0 0
        %2760 = vmatpush1.bf16.msra.mxu0 0
        %2761 = vmatprep.subr.bf16.mxu0 0
        %2762 = vmatpush1.bf16.msra.mxu0 0
        %2763 = vmatprep.subr.bf16.mxu0 0
        %2764 = vmatpush1.bf16.msra.mxu0 0
        %2765 = vmatprep.subr.bf16.mxu0 0
        %2766 = vmatpush1.bf16.msra.mxu0 0
        %2767 = vmatprep.subr.bf16.mxu0 0
        %2768 = vmatpush1.bf16.msra.mxu0 0
        %2769 = vmatprep.subr.bf16.mxu0 0
        %2770 = vmatpush1.bf16.msra.mxu0 0
        %2771 = vmatprep.subr.bf16.mxu0 0
        %2772 = vmatpush1.bf16.msra.mxu0 0
        %2773 = vmatprep.subr.bf16.mxu0 0
        %2774 = vmatpush1.bf16.msra.mxu0 0
        %2775 = vmatprep.subr.bf16.mxu0 0
        %2776 = vmatpush1.bf16.msra.mxu0 0
        %2777 = vmatprep.subr.bf16.mxu0 0
        %2778 = vmatpush1.bf16.msra.mxu0 0
        %2779 = vmatprep.subr.bf16.mxu0 0
        %2780 = vmatpush1.bf16.msra.mxu0 0
        %2781 = vmatprep.subr.bf16.mxu0 0
        %2782 = vmatpush1.bf16.msra.mxu0 0
        %2783 = vmatprep.subr.bf16.mxu0 0
        %2784 = vmatpush1.bf16.msra.mxu0 0
        %2785 = vmatprep.subr.bf16.mxu0 0
        %2786 = vmatpush1.bf16.msra.mxu0 0
        %2787 = vmatprep.subr.bf16.mxu0 0
        %2788 = vmatpush1.bf16.msra.mxu0 0
        %2789 = vmatprep.mubr.bf16.mxu0 0
        %2790 = vmatmul.mubr.bf16.gmra.mrb[0].mxu0 %v2752
        %v2791 = vpop.f32.mrb[0].mxu0
        %v2792 = vadd.f32 0.0, %v2791
        %v2793 = vpop.f32.mrb[0].mxu0
        %v2794 = vpop.f32.mrb[0].mxu0
        %v2795 = vadd.f32 0.0, %v2794
        %v2796 = vpop.f32.mrb[0].mxu0
        %2797 = vmatprep.mubr.bf16.mxu0 0
        %2798 = vmatmul.mubr.bf16.gmra.mrb[0].mxu0 %v2755
        %v2799 = vpop.f32.mrb[0].mxu0
        %v2800 = vadd.f32 0.0, %v2799
        %v2801 = vpop.f32.mrb[0].mxu0
        %v2802 = vpop.f32.mrb[0].mxu0
        %v2803 = vadd.f32 0.0, %v2802
        %v2804 = vpop.f32.mrb[0].mxu0
        %2805 = vdwg.mxu0
        %v2806 = vadd.f32 %v2738, %v2792
        %v2807 = vadd.f32 %v2739, %v2795
        %v2808 = vadd.f32 %v2740, %v2800
        %v2809 = vadd.f32 %v2741, %v2803
        %s2810 = scalar_lea.vmem %s5, 80
        %v2811 = vld [vmem:[%s2810] sm:$0xf]
        %v2812 = vld [vmem:[%s2810 + $0x4] sm:$0xf]
        %v2815 = vunpack.c.l.b16 %v2811
        %v2816 = vunpack.c.l.b16 %v2812
        %v2817 = vpack.c.b16 %v2816, %v2815
        %v2820 = vsel %vm2149, %v2108, 0
        %v2823 = vsel %vm2149, %v2109, 0
        %2825 = vmatprep.subr.bf16.mxu0 0
        %2826 = vmatpush1.bf16.msra.mxu0 %v2817
        %2827 = vmatprep.subr.bf16.mxu0 0
        %2828 = vmatpush1.bf16.msra.mxu0 0
        %2829 = vmatprep.subr.bf16.mxu0 0
        %2830 = vmatpush1.bf16.msra.mxu0 0
        %2831 = vmatprep.subr.bf16.mxu0 0
        %2832 = vmatpush1.bf16.msra.mxu0 0
        %2833 = vmatprep.subr.bf16.mxu0 0
        %2834 = vmatpush1.bf16.msra.mxu0 0
        %2835 = vmatprep.subr.bf16.mxu0 0
        %2836 = vmatpush1.bf16.msra.mxu0 0
        %2837 = vmatprep.subr.bf16.mxu0 0
        %2838 = vmatpush1.bf16.msra.mxu0 0
        %2839 = vmatprep.subr.bf16.mxu0 0
        %2840 = vmatpush1.bf16.msra.mxu0 0
        %2841 = vmatprep.subr.bf16.mxu0 0
        %2842 = vmatpush1.bf16.msra.mxu0 0
        %2843 = vmatprep.subr.bf16.mxu0 0
        %2844 = vmatpush1.bf16.msra.mxu0 0
        %2845 = vmatprep.subr.bf16.mxu0 0
        %2846 = vmatpush1.bf16.msra.mxu0 0
        %2847 = vmatprep.subr.bf16.mxu0 0
        %2848 = vmatpush1.bf16.msra.mxu0 0
        %2849 = vmatprep.subr.bf16.mxu0 0
        %2850 = vmatpush1.bf16.msra.mxu0 0
        %2851 = vmatprep.subr.bf16.mxu0 0
        %2852 = vmatpush1.bf16.msra.mxu0 0
        %2853 = vmatprep.subr.bf16.mxu0 0
        %2854 = vmatpush1.bf16.msra.mxu0 0
        %2855 = vmatprep.subr.bf16.mxu0 0
        %2856 = vmatpush1.bf16.msra.mxu0 0
        %2857 = vmatprep.mubr.bf16.mxu0 0
        %2858 = vmatmul.mubr.bf16.gmra.mrb[0].mxu0 %v2820
        %v2859 = vpop.f32.mrb[0].mxu0
        %v2860 = vadd.f32 0.0, %v2859
        %v2861 = vpop.f32.mrb[0].mxu0
        %v2862 = vpop.f32.mrb[0].mxu0
        %v2863 = vadd.f32 0.0, %v2862
        %v2864 = vpop.f32.mrb[0].mxu0
        %2865 = vmatprep.mubr.bf16.mxu0 0
        %2866 = vmatmul.mubr.bf16.gmra.mrb[0].mxu0 %v2823
        %v2867 = vpop.f32.mrb[0].mxu0
        %v2868 = vadd.f32 0.0, %v2867
        %v2869 = vpop.f32.mrb[0].mxu0
        %v2870 = vpop.f32.mrb[0].mxu0
        %v2871 = vadd.f32 0.0, %v2870
        %v2872 = vpop.f32.mrb[0].mxu0
        %2873 = vdwg.mxu0
        %v2874 = vadd.f32 %v2806, %v2860
        %v2875 = vadd.f32 %v2807, %v2863
        %v2876 = vadd.f32 %v2808, %v2868
        %v2877 = vadd.f32 %v2809, %v2871
        %s2878 = scalar_lea.vmem %s5, 88
        %v2879 = vld [vmem:[%s2878] sm:$0xf]
        %v2880 = vld [vmem:[%s2878 + $0x4] sm:$0xf]
        %v2883 = vunpack.c.l.b16 %v2879
        %v2884 = vunpack.c.l.b16 %v2880
        %v2885 = vpack.c.b16 %v2884, %v2883
        %v2888 = vsel %vm2149, %v2110, 0
        %v2891 = vsel %vm2149, %v2111, 0
        %2893 = vmatprep.subr.bf16.mxu0 0
        %2894 = vmatpush1.bf16.msra.mxu0 %v2885
        %2895 = vmatprep.subr.bf16.mxu0 0
        %2896 = vmatpush1.bf16.msra.mxu0 0
        %2897 = vmatprep.subr.bf16.mxu0 0
        %2898 = vmatpush1.bf16.msra.mxu0 0
        %2899 = vmatprep.subr.bf16.mxu0 0
        %2900 = vmatpush1.bf16.msra.mxu0 0
        %2901 = vmatprep.subr.bf16.mxu0 0
        %2902 = vmatpush1.bf16.msra.mxu0 0
        %2903 = vmatprep.subr.bf16.mxu0 0
        %2904 = vmatpush1.bf16.msra.mxu0 0
        %2905 = vmatprep.subr.bf16.mxu0 0
        %2906 = vmatpush1.bf16.msra.mxu0 0
        %2907 = vmatprep.subr.bf16.mxu0 0
        %2908 = vmatpush1.bf16.msra.mxu0 0
        %2909 = vmatprep.subr.bf16.mxu0 0
        %2910 = vmatpush1.bf16.msra.mxu0 0
        %2911 = vmatprep.subr.bf16.mxu0 0
        %2912 = vmatpush1.bf16.msra.mxu0 0
        %2913 = vmatprep.subr.bf16.mxu0 0
        %2914 = vmatpush1.bf16.msra.mxu0 0
        %2915 = vmatprep.subr.bf16.mxu0 0
        %2916 = vmatpush1.bf16.msra.mxu0 0
        %2917 = vmatprep.subr.bf16.mxu0 0
        %2918 = vmatpush1.bf16.msra.mxu0 0
        %2919 = vmatprep.subr.bf16.mxu0 0
        %2920 = vmatpush1.bf16.msra.mxu0 0
        %2921 = vmatprep.subr.bf16.mxu0 0
        %2922 = vmatpush1.bf16.msra.mxu0 0
        %2923 = vmatprep.subr.bf16.mxu0 0
        %2924 = vmatpush1.bf16.msra.mxu0 0
        %2925 = vmatprep.mubr.bf16.mxu0 0
        %2926 = vmatmul.mubr.bf16.gmra.mrb[0].mxu0 %v2888
        %v2927 = vpop.f32.mrb[0].mxu0
        %v2928 = vadd.f32 0.0, %v2927
        %v2929 = vpop.f32.mrb[0].mxu0
        %v2930 = vpop.f32.mrb[0].mxu0
        %v2931 = vadd.f32 0.0, %v2930
        %v2932 = vpop.f32.mrb[0].mxu0
        %2933 = vmatprep.mubr.bf16.mxu0 0
        %2934 = vmatmul.mubr.bf16.gmra.mrb[0].mxu0 %v2891
        %v2935 = vpop.f32.mrb[0].mxu0
        %v2936 = vadd.f32 0.0, %v2935
        %v2937 = vpop.f32.mrb[0].mxu0
        %v2938 = vpop.f32.mrb[0].mxu0
        %v2939 = vadd.f32 0.0, %v2938
        %v2940 = vpop.f32.mrb[0].mxu0
        %2941 = vdwg.mxu0
        %v2942 = vadd.f32 %v2874, %v2928
        %v2943 = vadd.f32 %v2875, %v2931
        %v2944 = vadd.f32 %v2876, %v2936
        %v2945 = vadd.f32 %v2877, %v2939
        %s2946 = scalar_lea.vmem %s5, 96
        %v2947 = vld [vmem:[%s2946] sm:$0xf]
        %v2948 = vld [vmem:[%s2946 + $0x4] sm:$0xf]
        %v2951 = vunpack.c.l.b16 %v2947
        %v2952 = vunpack.c.l.b16 %v2948
        %v2953 = vpack.c.b16 %v2952, %v2951
        %v2956 = vsel %vm2149, %v2112, 0
        %v2959 = vsel %vm2149, %v2113, 0
        %2961 = vmatprep.subr.bf16.mxu0 0
        %2962 = vmatpush1.bf16.msra.mxu0 %v2953
        %2963 = vmatprep.subr.bf16.mxu0 0
        %2964 = vmatpush1.bf16.msra.mxu0 0
        %2965 = vmatprep.subr.bf16.mxu0 0
        %2966 = vmatpush1.bf16.msra.mxu0 0
        %2967 = vmatprep.subr.bf16.mxu0 0
        %2968 = vmatpush1.bf16.msra.mxu0 0
        %2969 = vmatprep.subr.bf16.mxu0 0
        %2970 = vmatpush1.bf16.msra.mxu0 0
        %2971 = vmatprep.subr.bf16.mxu0 0
        %2972 = vmatpush1.bf16.msra.mxu0 0
        %2973 = vmatprep.subr.bf16.mxu0 0
        %2974 = vmatpush1.bf16.msra.mxu0 0
        %2975 = vmatprep.subr.bf16.mxu0 0
        %2976 = vmatpush1.bf16.msra.mxu0 0
        %2977 = vmatprep.subr.bf16.mxu0 0
        %2978 = vmatpush1.bf16.msra.mxu0 0
        %2979 = vmatprep.subr.bf16.mxu0 0
        %2980 = vmatpush1.bf16.msra.mxu0 0
        %2981 = vmatprep.subr.bf16.mxu0 0
        %2982 = vmatpush1.bf16.msra.mxu0 0
        %2983 = vmatprep.subr.bf16.mxu0 0
        %2984 = vmatpush1.bf16.msra.mxu0 0
        %2985 = vmatprep.subr.bf16.mxu0 0
        %2986 = vmatpush1.bf16.msra.mxu0 0
        %2987 = vmatprep.subr.bf16.mxu0 0
        %2988 = vmatpush1.bf16.msra.mxu0 0
        %2989 = vmatprep.subr.bf16.mxu0 0
        %2990 = vmatpush1.bf16.msra.mxu0 0
        %2991 = vmatprep.subr.bf16.mxu0 0
        %2992 = vmatpush1.bf16.msra.mxu0 0
        %2993 = vmatprep.mubr.bf16.mxu0 0
        %2994 = vmatmul.mubr.bf16.gmra.mrb[0].mxu0 %v2956
        %v2995 = vpop.f32.mrb[0].mxu0
        %v2996 = vadd.f32 0.0, %v2995
        %v2997 = vpop.f32.mrb[0].mxu0
        %v2998 = vpop.f32.mrb[0].mxu0
        %v2999 = vadd.f32 0.0, %v2998
        %v3000 = vpop.f32.mrb[0].mxu0
        %3001 = vmatprep.mubr.bf16.mxu0 0
        %3002 = vmatmul.mubr.bf16.gmra.mrb[0].mxu0 %v2959
        %v3003 = vpop.f32.mrb[0].mxu0
        %v3004 = vadd.f32 0.0, %v3003
        %v3005 = vpop.f32.mrb[0].mxu0
        %v3006 = vpop.f32.mrb[0].mxu0
        %v3007 = vadd.f32 0.0, %v3006
        %v3008 = vpop.f32.mrb[0].mxu0
        %3009 = vdwg.mxu0
        %v3010 = vadd.f32 %v2942, %v2996
        %v3011 = vadd.f32 %v2943, %v2999
        %v3012 = vadd.f32 %v2944, %v3004
        %v3013 = vadd.f32 %v2945, %v3007
        %s3014 = scalar_lea.vmem %s5, 104
        %v3015 = vld [vmem:[%s3014] sm:$0xf]
        %v3016 = vld [vmem:[%s3014 + $0x4] sm:$0xf]
        %v3019 = vunpack.c.l.b16 %v3015
        %v3020 = vunpack.c.l.b16 %v3016
        %v3021 = vpack.c.b16 %v3020, %v3019
        %v3024 = vsel %vm2149, %v2114, 0
        %v3027 = vsel %vm2149, %v2115, 0
        %3029 = vmatprep.subr.bf16.mxu0 0
        %3030 = vmatpush1.bf16.msra.mxu0 %v3021
        %3031 = vmatprep.subr.bf16.mxu0 0
        %3032 = vmatpush1.bf16.msra.mxu0 0
        %3033 = vmatprep.subr.bf16.mxu0 0
        %3034 = vmatpush1.bf16.msra.mxu0 0
        %3035 = vmatprep.subr.bf16.mxu0 0
        %3036 = vmatpush1.bf16.msra.mxu0 0
        %3037 = vmatprep.subr.bf16.mxu0 0
        %3038 = vmatpush1.bf16.msra.mxu0 0
        %3039 = vmatprep.subr.bf16.mxu0 0
        %3040 = vmatpush1.bf16.msra.mxu0 0
        %3041 = vmatprep.subr.bf16.mxu0 0
        %3042 = vmatpush1.bf16.msra.mxu0 0
        %3043 = vmatprep.subr.bf16.mxu0 0
        %3044 = vmatpush1.bf16.msra.mxu0 0
        %3045 = vmatprep.subr.bf16.mxu0 0
        %3046 = vmatpush1.bf16.msra.mxu0 0
        %3047 = vmatprep.subr.bf16.mxu0 0
        %3048 = vmatpush1.bf16.msra.mxu0 0
        %3049 = vmatprep.subr.bf16.mxu0 0
        %3050 = vmatpush1.bf16.msra.mxu0 0
        %3051 = vmatprep.subr.bf16.mxu0 0
        %3052 = vmatpush1.bf16.msra.mxu0 0
        %3053 = vmatprep.subr.bf16.mxu0 0
        %3054 = vmatpush1.bf16.msra.mxu0 0
        %3055 = vmatprep.subr.bf16.mxu0 0
        %3056 = vmatpush1.bf16.msra.mxu0 0
        %3057 = vmatprep.subr.bf16.mxu0 0
        %3058 = vmatpush1.bf16.msra.mxu0 0
        %3059 = vmatprep.subr.bf16.mxu0 0
        %3060 = vmatpush1.bf16.msra.mxu0 0
        %3061 = vmatprep.mubr.bf16.mxu0 0
        %3062 = vmatmul.mubr.bf16.gmra.mrb[0].mxu0 %v3024
        %v3063 = vpop.f32.mrb[0].mxu0
        %v3064 = vadd.f32 0.0, %v3063
        %v3065 = vpop.f32.mrb[0].mxu0
        %v3066 = vpop.f32.mrb[0].mxu0
        %v3067 = vadd.f32 0.0, %v3066
        %v3068 = vpop.f32.mrb[0].mxu0
        %3069 = vmatprep.mubr.bf16.mxu0 0
        %3070 = vmatmul.mubr.bf16.gmra.mrb[0].mxu0 %v3027
        %v3071 = vpop.f32.mrb[0].mxu0
        %v3072 = vadd.f32 0.0, %v3071
        %v3073 = vpop.f32.mrb[0].mxu0
        %v3074 = vpop.f32.mrb[0].mxu0
        %v3075 = vadd.f32 0.0, %v3074
        %v3076 = vpop.f32.mrb[0].mxu0
        %3077 = vdwg.mxu0
        %v3078 = vadd.f32 %v3010, %v3064
        %v3079 = vadd.f32 %v3011, %v3067
        %v3080 = vadd.f32 %v3012, %v3072
        %v3081 = vadd.f32 %v3013, %v3075
        %s3082 = scalar_lea.vmem %s5, 112
        %v3083 = vld [vmem:[%s3082] sm:$0xf]
        %v3084 = vld [vmem:[%s3082 + $0x4] sm:$0xf]
        %v3087 = vunpack.c.l.b16 %v3083
        %v3088 = vunpack.c.l.b16 %v3084
        %v3089 = vpack.c.b16 %v3088, %v3087
        %v3092 = vsel %vm2149, %v2116, 0
        %v3095 = vsel %vm2149, %v2117, 0
        %3097 = vmatprep.subr.bf16.mxu0 0
        %3098 = vmatpush1.bf16.msra.mxu0 %v3089
        %3099 = vmatprep.subr.bf16.mxu0 0
        %3100 = vmatpush1.bf16.msra.mxu0 0
        %3101 = vmatprep.subr.bf16.mxu0 0
        %3102 = vmatpush1.bf16.msra.mxu0 0
        %3103 = vmatprep.subr.bf16.mxu0 0
        %3104 = vmatpush1.bf16.msra.mxu0 0
        %3105 = vmatprep.subr.bf16.mxu0 0
        %3106 = vmatpush1.bf16.msra.mxu0 0
        %3107 = vmatprep.subr.bf16.mxu0 0
        %3108 = vmatpush1.bf16.msra.mxu0 0
        %3109 = vmatprep.subr.bf16.mxu0 0
        %3110 = vmatpush1.bf16.msra.mxu0 0
        %3111 = vmatprep.subr.bf16.mxu0 0
        %3112 = vmatpush1.bf16.msra.mxu0 0
        %3113 = vmatprep.subr.bf16.mxu0 0
        %3114 = vmatpush1.bf16.msra.mxu0 0
        %3115 = vmatprep.subr.bf16.mxu0 0
        %3116 = vmatpush1.bf16.msra.mxu0 0
        %3117 = vmatprep.subr.bf16.mxu0 0
        %3118 = vmatpush1.bf16.msra.mxu0 0
        %3119 = vmatprep.subr.bf16.mxu0 0
        %3120 = vmatpush1.bf16.msra.mxu0 0
        %3121 = vmatprep.subr.bf16.mxu0 0
        %3122 = vmatpush1.bf16.msra.mxu0 0
        %3123 = vmatprep.subr.bf16.mxu0 0
        %3124 = vmatpush1.bf16.msra.mxu0 0
        %3125 = vmatprep.subr.bf16.mxu0 0
        %3126 = vmatpush1.bf16.msra.mxu0 0
        %3127 = vmatprep.subr.bf16.mxu0 0
        %3128 = vmatpush1.bf16.msra.mxu0 0
        %3129 = vmatprep.mubr.bf16.mxu0 0
        %3130 = vmatmul.mubr.bf16.gmra.mrb[0].mxu0 %v3092
        %v3131 = vpop.f32.mrb[0].mxu0
        %v3132 = vadd.f32 0.0, %v3131
        %v3133 = vpop.f32.mrb[0].mxu0
        %v3134 = vpop.f32.mrb[0].mxu0
        %v3135 = vadd.f32 0.0, %v3134
        %v3136 = vpop.f32.mrb[0].mxu0
        %3137 = vmatprep.mubr.bf16.mxu0 0
        %3138 = vmatmul.mubr.bf16.gmra.mrb[0].mxu0 %v3095
        %v3139 = vpop.f32.mrb[0].mxu0
        %v3140 = vadd.f32 0.0, %v3139
        %v3141 = vpop.f32.mrb[0].mxu0
        %v3142 = vpop.f32.mrb[0].mxu0
        %v3143 = vadd.f32 0.0, %v3142
        %v3144 = vpop.f32.mrb[0].mxu0
        %3145 = vdwg.mxu0
        %v3146 = vadd.f32 %v3078, %v3132
        %v3147 = vadd.f32 %v3079, %v3135
        %v3148 = vadd.f32 %v3080, %v3140
        %v3149 = vadd.f32 %v3081, %v3143
        %s3150 = scalar_lea.vmem %s5, 120
        %v3151 = vld [vmem:[%s3150] sm:$0xf]
        %v3152 = vld [vmem:[%s3150 + $0x4] sm:$0xf]
        %v3155 = vunpack.c.l.b16 %v3151
        %v3156 = vunpack.c.l.b16 %v3152
        %v3157 = vpack.c.b16 %v3156, %v3155
        %v3160 = vsel %vm2149, %v2118, 0
        %v3163 = vsel %vm2149, %v2119, 0
        %3165 = vmatprep.subr.bf16.mxu0 0
        %3166 = vmatpush1.bf16.msra.mxu0 %v3157
        %3167 = vmatprep.subr.bf16.mxu0 0
        %3168 = vmatpush1.bf16.msra.mxu0 0
        %3169 = vmatprep.subr.bf16.mxu0 0
        %3170 = vmatpush1.bf16.msra.mxu0 0
        %3171 = vmatprep.subr.bf16.mxu0 0
        %3172 = vmatpush1.bf16.msra.mxu0 0
        %3173 = vmatprep.subr.bf16.mxu0 0
        %3174 = vmatpush1.bf16.msra.mxu0 0
        %3175 = vmatprep.subr.bf16.mxu0 0
        %3176 = vmatpush1.bf16.msra.mxu0 0
        %3177 = vmatprep.subr.bf16.mxu0 0
        %3178 = vmatpush1.bf16.msra.mxu0 0
        %3179 = vmatprep.subr.bf16.mxu0 0
        %3180 = vmatpush1.bf16.msra.mxu0 0
        %3181 = vmatprep.subr.bf16.mxu0 0
        %3182 = vmatpush1.bf16.msra.mxu0 0
        %3183 = vmatprep.subr.bf16.mxu0 0
        %3184 = vmatpush1.bf16.msra.mxu0 0
        %3185 = vmatprep.subr.bf16.mxu0 0
        %3186 = vmatpush1.bf16.msra.mxu0 0
        %3187 = vmatprep.subr.bf16.mxu0 0
        %3188 = vmatpush1.bf16.msra.mxu0 0
        %3189 = vmatprep.subr.bf16.mxu0 0
        %3190 = vmatpush1.bf16.msra.mxu0 0
        %3191 = vmatprep.subr.bf16.mxu0 0
        %3192 = vmatpush1.bf16.msra.mxu0 0
        %3193 = vmatprep.subr.bf16.mxu0 0
        %3194 = vmatpush1.bf16.msra.mxu0 0
        %3195 = vmatprep.subr.bf16.mxu0 0
        %3196 = vmatpush1.bf16.msra.mxu0 0
        %3197 = vmatprep.mubr.bf16.mxu0 0
        %3198 = vmatmul.mubr.bf16.gmra.mrb[0].mxu0 %v3160
        %v3199 = vpop.f32.mrb[0].mxu0
        %v3200 = vadd.f32 0.0, %v3199
        %v3201 = vpop.f32.mrb[0].mxu0
        %v3202 = vpop.f32.mrb[0].mxu0
        %v3203 = vadd.f32 0.0, %v3202
        %v3204 = vpop.f32.mrb[0].mxu0
        %3205 = vmatprep.mubr.bf16.mxu0 0
        %3206 = vmatmul.mubr.bf16.gmra.mrb[0].mxu0 %v3163
        %v3207 = vpop.f32.mrb[0].mxu0
        %v3208 = vadd.f32 0.0, %v3207
        %v3209 = vpop.f32.mrb[0].mxu0
        %v3210 = vpop.f32.mrb[0].mxu0
        %v3211 = vadd.f32 0.0, %v3210
        %v3212 = vpop.f32.mrb[0].mxu0
        %3213 = vdwg.mxu0
        %v3214 = vadd.f32 %v3146, %v3200
        %v3215 = vadd.f32 %v3147, %v3203
        %v3216 = vadd.f32 %v3148, %v3208
        %v3217 = vadd.f32 %v3149, %v3211
        %s3218 = scalar_lea.vmem %s5, 128
        %v3219 = vld [vmem:[%s3218] sm:$0xf]
        %v3220 = vld [vmem:[%s3218 + $0x4] sm:$0xf]
        %v3223 = vunpack.c.l.b16 %v3219
        %v3224 = vunpack.c.l.b16 %v3220
        %v3225 = vpack.c.b16 %v3224, %v3223
        %v3228 = vsel %vm2149, %v2120, 0
        %v3231 = vsel %vm2149, %v2121, 0
        %3233 = vmatprep.subr.bf16.mxu0 0
        %3234 = vmatpush1.bf16.msra.mxu0 %v3225
        %3235 = vmatprep.subr.bf16.mxu0 0
        %3236 = vmatpush1.bf16.msra.mxu0 0
        %3237 = vmatprep.subr.bf16.mxu0 0
        %3238 = vmatpush1.bf16.msra.mxu0 0
        %3239 = vmatprep.subr.bf16.mxu0 0
        %3240 = vmatpush1.bf16.msra.mxu0 0
        %3241 = vmatprep.subr.bf16.mxu0 0
        %3242 = vmatpush1.bf16.msra.mxu0 0
        %3243 = vmatprep.subr.bf16.mxu0 0
        %3244 = vmatpush1.bf16.msra.mxu0 0
        %3245 = vmatprep.subr.bf16.mxu0 0
        %3246 = vmatpush1.bf16.msra.mxu0 0
        %3247 = vmatprep.subr.bf16.mxu0 0
        %3248 = vmatpush1.bf16.msra.mxu0 0
        %3249 = vmatprep.subr.bf16.mxu0 0
        %3250 = vmatpush1.bf16.msra.mxu0 0
        %3251 = vmatprep.subr.bf16.mxu0 0
        %3252 = vmatpush1.bf16.msra.mxu0 0
        %3253 = vmatprep.subr.bf16.mxu0 0
        %3254 = vmatpush1.bf16.msra.mxu0 0
        %3255 = vmatprep.subr.bf16.mxu0 0
        %3256 = vmatpush1.bf16.msra.mxu0 0
        %3257 = vmatprep.subr.bf16.mxu0 0
        %3258 = vmatpush1.bf16.msra.mxu0 0
        %3259 = vmatprep.subr.bf16.mxu0 0
        %3260 = vmatpush1.bf16.msra.mxu0 0
        %3261 = vmatprep.subr.bf16.mxu0 0
        %3262 = vmatpush1.bf16.msra.mxu0 0
        %3263 = vmatprep.subr.bf16.mxu0 0
        %3264 = vmatpush1.bf16.msra.mxu0 0
        %3265 = vmatprep.mubr.bf16.mxu0 0
        %3266 = vmatmul.mubr.bf16.gmra.mrb[0].mxu0 %v3228
        %v3267 = vpop.f32.mrb[0].mxu0
        %v3268 = vadd.f32 0.0, %v3267
        %v3269 = vpop.f32.mrb[0].mxu0
        %v3270 = vpop.f32.mrb[0].mxu0
        %v3271 = vadd.f32 0.0, %v3270
        %v3272 = vpop.f32.mrb[0].mxu0
        %3273 = vmatprep.mubr.bf16.mxu0 0
        %3274 = vmatmul.mubr.bf16.gmra.mrb[0].mxu0 %v3231
        %v3275 = vpop.f32.mrb[0].mxu0
        %v3276 = vadd.f32 0.0, %v3275
        %v3277 = vpop.f32.mrb[0].mxu0
        %v3278 = vpop.f32.mrb[0].mxu0
        %v3279 = vadd.f32 0.0, %v3278
        %v3280 = vpop.f32.mrb[0].mxu0
        %3281 = vdwg.mxu0
        %v3282 = vadd.f32 %v3214, %v3268
        %v3283 = vadd.f32 %v3215, %v3271
        %v3284 = vadd.f32 %v3216, %v3276
        %v3285 = vadd.f32 %v3217, %v3279
        %s3286 = scalar_lea.vmem %s5, 136
        %v3287 = vld [vmem:[%s3286] sm:$0xf]
        %v3288 = vld [vmem:[%s3286 + $0x4] sm:$0xf]
        %v3291 = vunpack.c.l.b16 %v3287
        %v3292 = vunpack.c.l.b16 %v3288
        %v3293 = vpack.c.b16 %v3292, %v3291
        %v3296 = vsel %vm2149, %v2122, 0
        %v3299 = vsel %vm2149, %v2123, 0
        %3301 = vmatprep.subr.bf16.mxu0 0
        %3302 = vmatpush1.bf16.msra.mxu0 %v3293
        %3303 = vmatprep.subr.bf16.mxu0 0
        %3304 = vmatpush1.bf16.msra.mxu0 0
        %3305 = vmatprep.subr.bf16.mxu0 0
        %3306 = vmatpush1.bf16.msra.mxu0 0
        %3307 = vmatprep.subr.bf16.mxu0 0
        %3308 = vmatpush1.bf16.msra.mxu0 0
        %3309 = vmatprep.subr.bf16.mxu0 0
        %3310 = vmatpush1.bf16.msra.mxu0 0
        %3311 = vmatprep.subr.bf16.mxu0 0
        %3312 = vmatpush1.bf16.msra.mxu0 0
        %3313 = vmatprep.subr.bf16.mxu0 0
        %3314 = vmatpush1.bf16.msra.mxu0 0
        %3315 = vmatprep.subr.bf16.mxu0 0
        %3316 = vmatpush1.bf16.msra.mxu0 0
        %3317 = vmatprep.subr.bf16.mxu0 0
        %3318 = vmatpush1.bf16.msra.mxu0 0
        %3319 = vmatprep.subr.bf16.mxu0 0
        %3320 = vmatpush1.bf16.msra.mxu0 0
        %3321 = vmatprep.subr.bf16.mxu0 0
        %3322 = vmatpush1.bf16.msra.mxu0 0
        %3323 = vmatprep.subr.bf16.mxu0 0
        %3324 = vmatpush1.bf16.msra.mxu0 0
        %3325 = vmatprep.subr.bf16.mxu0 0
        %3326 = vmatpush1.bf16.msra.mxu0 0
        %3327 = vmatprep.subr.bf16.mxu0 0
        %3328 = vmatpush1.bf16.msra.mxu0 0
        %3329 = vmatprep.subr.bf16.mxu0 0
        %3330 = vmatpush1.bf16.msra.mxu0 0
        %3331 = vmatprep.subr.bf16.mxu0 0
        %3332 = vmatpush1.bf16.msra.mxu0 0
        %3333 = vmatprep.mubr.bf16.mxu0 0
        %3334 = vmatmul.mubr.bf16.gmra.mrb[0].mxu0 %v3296
        %v3335 = vpop.f32.mrb[0].mxu0
        %v3336 = vadd.f32 0.0, %v3335
        %v3337 = vpop.f32.mrb[0].mxu0
        %v3338 = vpop.f32.mrb[0].mxu0
        %v3339 = vadd.f32 0.0, %v3338
        %v3340 = vpop.f32.mrb[0].mxu0
        %3341 = vmatprep.mubr.bf16.mxu0 0
        %3342 = vmatmul.mubr.bf16.gmra.mrb[0].mxu0 %v3299
        %v3343 = vpop.f32.mrb[0].mxu0
        %v3344 = vadd.f32 0.0, %v3343
        %v3345 = vpop.f32.mrb[0].mxu0
        %v3346 = vpop.f32.mrb[0].mxu0
        %v3347 = vadd.f32 0.0, %v3346
        %v3348 = vpop.f32.mrb[0].mxu0
        %3349 = vdwg.mxu0
        %v3350 = vadd.f32 %v3282, %v3336
        %v3351 = vadd.f32 %v3283, %v3339
        %v3352 = vadd.f32 %v3284, %v3344
        %v3353 = vadd.f32 %v3285, %v3347
        %s3354 = scalar_lea.vmem %s5, 144
        %v3355 = vld [vmem:[%s3354] sm:$0xf]
        %v3356 = vld [vmem:[%s3354 + $0x4] sm:$0xf]
        %v3359 = vunpack.c.l.b16 %v3355
        %v3360 = vunpack.c.l.b16 %v3356
        %v3361 = vpack.c.b16 %v3360, %v3359
        %v3364 = vsel %vm2149, %v2124, 0
        %v3367 = vsel %vm2149, %v2125, 0
        %3369 = vmatprep.subr.bf16.mxu0 0
        %3370 = vmatpush1.bf16.msra.mxu0 %v3361
        %3371 = vmatprep.subr.bf16.mxu0 0
        %3372 = vmatpush1.bf16.msra.mxu0 0
        %3373 = vmatprep.subr.bf16.mxu0 0
        %3374 = vmatpush1.bf16.msra.mxu0 0
        %3375 = vmatprep.subr.bf16.mxu0 0
        %3376 = vmatpush1.bf16.msra.mxu0 0
        %3377 = vmatprep.subr.bf16.mxu0 0
        %3378 = vmatpush1.bf16.msra.mxu0 0
        %3379 = vmatprep.subr.bf16.mxu0 0
        %3380 = vmatpush1.bf16.msra.mxu0 0
        %3381 = vmatprep.subr.bf16.mxu0 0
        %3382 = vmatpush1.bf16.msra.mxu0 0
        %3383 = vmatprep.subr.bf16.mxu0 0
        %3384 = vmatpush1.bf16.msra.mxu0 0
        %3385 = vmatprep.subr.bf16.mxu0 0
        %3386 = vmatpush1.bf16.msra.mxu0 0
        %3387 = vmatprep.subr.bf16.mxu0 0
        %3388 = vmatpush1.bf16.msra.mxu0 0
        %3389 = vmatprep.subr.bf16.mxu0 0
        %3390 = vmatpush1.bf16.msra.mxu0 0
        %3391 = vmatprep.subr.bf16.mxu0 0
        %3392 = vmatpush1.bf16.msra.mxu0 0
        %3393 = vmatprep.subr.bf16.mxu0 0
        %3394 = vmatpush1.bf16.msra.mxu0 0
        %3395 = vmatprep.subr.bf16.mxu0 0
        %3396 = vmatpush1.bf16.msra.mxu0 0
        %3397 = vmatprep.subr.bf16.mxu0 0
        %3398 = vmatpush1.bf16.msra.mxu0 0
        %3399 = vmatprep.subr.bf16.mxu0 0
        %3400 = vmatpush1.bf16.msra.mxu0 0
        %3401 = vmatprep.mubr.bf16.mxu0 0
        %3402 = vmatmul.mubr.bf16.gmra.mrb[0].mxu0 %v3364
        %v3403 = vpop.f32.mrb[0].mxu0
        %v3404 = vadd.f32 0.0, %v3403
        %v3405 = vpop.f32.mrb[0].mxu0
        %v3406 = vpop.f32.mrb[0].mxu0
        %v3407 = vadd.f32 0.0, %v3406
        %v3408 = vpop.f32.mrb[0].mxu0
        %3409 = vmatprep.mubr.bf16.mxu0 0
        %3410 = vmatmul.mubr.bf16.gmra.mrb[0].mxu0 %v3367
        %v3411 = vpop.f32.mrb[0].mxu0
        %v3412 = vadd.f32 0.0, %v3411
        %v3413 = vpop.f32.mrb[0].mxu0
        %v3414 = vpop.f32.mrb[0].mxu0
        %v3415 = vadd.f32 0.0, %v3414
        %v3416 = vpop.f32.mrb[0].mxu0
        %3417 = vdwg.mxu0
        %v3418 = vadd.f32 %v3350, %v3404
        %v3419 = vadd.f32 %v3351, %v3407
        %v3420 = vadd.f32 %v3352, %v3412
        %v3421 = vadd.f32 %v3353, %v3415
        %s3422 = scalar_lea.vmem %s5, 152
        %v3423 = vld [vmem:[%s3422] sm:$0xf]
        %v3424 = vld [vmem:[%s3422 + $0x4] sm:$0xf]
        %v3427 = vunpack.c.l.b16 %v3423
        %v3428 = vunpack.c.l.b16 %v3424
        %v3429 = vpack.c.b16 %v3428, %v3427
        %v3432 = vsel %vm2149, %v2126, 0
        %v3435 = vsel %vm2149, %v2127, 0
        %3437 = vmatprep.subr.bf16.mxu0 0
        %3438 = vmatpush1.bf16.msra.mxu0 %v3429
        %3439 = vmatprep.subr.bf16.mxu0 0
        %3440 = vmatpush1.bf16.msra.mxu0 0
        %3441 = vmatprep.subr.bf16.mxu0 0
        %3442 = vmatpush1.bf16.msra.mxu0 0
        %3443 = vmatprep.subr.bf16.mxu0 0
        %3444 = vmatpush1.bf16.msra.mxu0 0
        %3445 = vmatprep.subr.bf16.mxu0 0
        %3446 = vmatpush1.bf16.msra.mxu0 0
        %3447 = vmatprep.subr.bf16.mxu0 0
        %3448 = vmatpush1.bf16.msra.mxu0 0
        %3449 = vmatprep.subr.bf16.mxu0 0
        %3450 = vmatpush1.bf16.msra.mxu0 0
        %3451 = vmatprep.subr.bf16.mxu0 0
        %3452 = vmatpush1.bf16.msra.mxu0 0
        %3453 = vmatprep.subr.bf16.mxu0 0
        %3454 = vmatpush1.bf16.msra.mxu0 0
        %3455 = vmatprep.subr.bf16.mxu0 0
        %3456 = vmatpush1.bf16.msra.mxu0 0
        %3457 = vmatprep.subr.bf16.mxu0 0
        %3458 = vmatpush1.bf16.msra.mxu0 0
        %3459 = vmatprep.subr.bf16.mxu0 0
        %3460 = vmatpush1.bf16.msra.mxu0 0
        %3461 = vmatprep.subr.bf16.mxu0 0
        %3462 = vmatpush1.bf16.msra.mxu0 0
        %3463 = vmatprep.subr.bf16.mxu0 0
        %3464 = vmatpush1.bf16.msra.mxu0 0
        %3465 = vmatprep.subr.bf16.mxu0 0
        %3466 = vmatpush1.bf16.msra.mxu0 0
        %3467 = vmatprep.subr.bf16.mxu0 0
        %3468 = vmatpush1.bf16.msra.mxu0 0
        %3469 = vmatprep.mubr.bf16.mxu0 0
        %3470 = vmatmul.mubr.bf16.gmra.mrb[0].mxu0 %v3432
        %v3471 = vpop.f32.mrb[0].mxu0
        %v3472 = vadd.f32 0.0, %v3471
        %v3473 = vpop.f32.mrb[0].mxu0
        %v3474 = vpop.f32.mrb[0].mxu0
        %v3475 = vadd.f32 0.0, %v3474
        %v3476 = vpop.f32.mrb[0].mxu0
        %3477 = vmatprep.mubr.bf16.mxu0 0
        %3478 = vmatmul.mubr.bf16.gmra.mrb[0].mxu0 %v3435
        %v3479 = vpop.f32.mrb[0].mxu0
        %v3480 = vadd.f32 0.0, %v3479
        %v3481 = vpop.f32.mrb[0].mxu0
        %v3482 = vpop.f32.mrb[0].mxu0
        %v3483 = vadd.f32 0.0, %v3482
        %v3484 = vpop.f32.mrb[0].mxu0
        %3485 = vdwg.mxu0
        %v3486 = vadd.f32 %v3418, %v3472
        %v3487 = vadd.f32 %v3419, %v3475
        %v3488 = vadd.f32 %v3420, %v3480
        %v3489 = vadd.f32 %v3421, %v3483
        %s3490 = scalar_lea.vmem %s5, 160
        %v3491 = vld [vmem:[%s3490] sm:$0xf]
        %v3492 = vld [vmem:[%s3490 + $0x4] sm:$0xf]
        %v3495 = vunpack.c.l.b16 %v3491
        %v3496 = vunpack.c.l.b16 %v3492
        %v3497 = vpack.c.b16 %v3496, %v3495
        %v3500 = vsel %vm2149, %v2128, 0
        %v3503 = vsel %vm2149, %v2129, 0
        %3505 = vmatprep.subr.bf16.mxu0 0
        %3506 = vmatpush1.bf16.msra.mxu0 %v3497
        %3507 = vmatprep.subr.bf16.mxu0 0
        %3508 = vmatpush1.bf16.msra.mxu0 0
        %3509 = vmatprep.subr.bf16.mxu0 0
        %3510 = vmatpush1.bf16.msra.mxu0 0
        %3511 = vmatprep.subr.bf16.mxu0 0
        %3512 = vmatpush1.bf16.msra.mxu0 0
        %3513 = vmatprep.subr.bf16.mxu0 0
        %3514 = vmatpush1.bf16.msra.mxu0 0
        %3515 = vmatprep.subr.bf16.mxu0 0
        %3516 = vmatpush1.bf16.msra.mxu0 0
        %3517 = vmatprep.subr.bf16.mxu0 0
        %3518 = vmatpush1.bf16.msra.mxu0 0
        %3519 = vmatprep.subr.bf16.mxu0 0
        %3520 = vmatpush1.bf16.msra.mxu0 0
        %3521 = vmatprep.subr.bf16.mxu0 0
        %3522 = vmatpush1.bf16.msra.mxu0 0
        %3523 = vmatprep.subr.bf16.mxu0 0
        %3524 = vmatpush1.bf16.msra.mxu0 0
        %3525 = vmatprep.subr.bf16.mxu0 0
        %3526 = vmatpush1.bf16.msra.mxu0 0
        %3527 = vmatprep.subr.bf16.mxu0 0
        %3528 = vmatpush1.bf16.msra.mxu0 0
        %3529 = vmatprep.subr.bf16.mxu0 0
        %3530 = vmatpush1.bf16.msra.mxu0 0
        %3531 = vmatprep.subr.bf16.mxu0 0
        %3532 = vmatpush1.bf16.msra.mxu0 0
        %3533 = vmatprep.subr.bf16.mxu0 0
        %3534 = vmatpush1.bf16.msra.mxu0 0
        %3535 = vmatprep.subr.bf16.mxu0 0
        %3536 = vmatpush1.bf16.msra.mxu0 0
        %3537 = vmatprep.mubr.bf16.mxu0 0
        %3538 = vmatmul.mubr.bf16.gmra.mrb[0].mxu0 %v3500
        %v3539 = vpop.f32.mrb[0].mxu0
        %v3540 = vadd.f32 0.0, %v3539
        %v3541 = vpop.f32.mrb[0].mxu0
        %v3542 = vpop.f32.mrb[0].mxu0
        %v3543 = vadd.f32 0.0, %v3542
        %v3544 = vpop.f32.mrb[0].mxu0
        %3545 = vmatprep.mubr.bf16.mxu0 0
        %3546 = vmatmul.mubr.bf16.gmra.mrb[0].mxu0 %v3503
        %v3547 = vpop.f32.mrb[0].mxu0
        %v3548 = vadd.f32 0.0, %v3547
        %v3549 = vpop.f32.mrb[0].mxu0
        %v3550 = vpop.f32.mrb[0].mxu0
        %v3551 = vadd.f32 0.0, %v3550
        %v3552 = vpop.f32.mrb[0].mxu0
        %3553 = vdwg.mxu0
        %v3554 = vadd.f32 %v3486, %v3540
        %v3555 = vadd.f32 %v3487, %v3543
        %v3556 = vadd.f32 %v3488, %v3548
        %v3557 = vadd.f32 %v3489, %v3551
        %s3558 = scalar_lea.vmem %s5, 168
        %v3559 = vld [vmem:[%s3558] sm:$0xf]
        %v3560 = vld [vmem:[%s3558 + $0x4] sm:$0xf]
        %v3563 = vunpack.c.l.b16 %v3559
        %v3564 = vunpack.c.l.b16 %v3560
        %v3565 = vpack.c.b16 %v3564, %v3563
        %v3568 = vsel %vm2149, %v2130, 0
        %v3571 = vsel %vm2149, %v2131, 0
        %3573 = vmatprep.subr.bf16.mxu0 0
        %3574 = vmatpush1.bf16.msra.mxu0 %v3565
        %3575 = vmatprep.subr.bf16.mxu0 0
        %3576 = vmatpush1.bf16.msra.mxu0 0
        %3577 = vmatprep.subr.bf16.mxu0 0
        %3578 = vmatpush1.bf16.msra.mxu0 0
        %3579 = vmatprep.subr.bf16.mxu0 0
        %3580 = vmatpush1.bf16.msra.mxu0 0
        %3581 = vmatprep.subr.bf16.mxu0 0
        %3582 = vmatpush1.bf16.msra.mxu0 0
        %3583 = vmatprep.subr.bf16.mxu0 0
        %3584 = vmatpush1.bf16.msra.mxu0 0
        %3585 = vmatprep.subr.bf16.mxu0 0
        %3586 = vmatpush1.bf16.msra.mxu0 0
        %3587 = vmatprep.subr.bf16.mxu0 0
        %3588 = vmatpush1.bf16.msra.mxu0 0
        %3589 = vmatprep.subr.bf16.mxu0 0
        %3590 = vmatpush1.bf16.msra.mxu0 0
        %3591 = vmatprep.subr.bf16.mxu0 0
        %3592 = vmatpush1.bf16.msra.mxu0 0
        %3593 = vmatprep.subr.bf16.mxu0 0
        %3594 = vmatpush1.bf16.msra.mxu0 0
        %3595 = vmatprep.subr.bf16.mxu0 0
        %3596 = vmatpush1.bf16.msra.mxu0 0
        %3597 = vmatprep.subr.bf16.mxu0 0
        %3598 = vmatpush1.bf16.msra.mxu0 0
        %3599 = vmatprep.subr.bf16.mxu0 0
        %3600 = vmatpush1.bf16.msra.mxu0 0
        %3601 = vmatprep.subr.bf16.mxu0 0
        %3602 = vmatpush1.bf16.msra.mxu0 0
        %3603 = vmatprep.subr.bf16.mxu0 0
        %3604 = vmatpush1.bf16.msra.mxu0 0
        %3605 = vmatprep.mubr.bf16.mxu0 0
        %3606 = vmatmul.mubr.bf16.gmra.mrb[0].mxu0 %v3568
        %v3607 = vpop.f32.mrb[0].mxu0
        %v3608 = vadd.f32 0.0, %v3607
        %v3609 = vpop.f32.mrb[0].mxu0
        %v3610 = vpop.f32.mrb[0].mxu0
        %v3611 = vadd.f32 0.0, %v3610
        %v3612 = vpop.f32.mrb[0].mxu0
        %3613 = vmatprep.mubr.bf16.mxu0 0
        %3614 = vmatmul.mubr.bf16.gmra.mrb[0].mxu0 %v3571
        %v3615 = vpop.f32.mrb[0].mxu0
        %v3616 = vadd.f32 0.0, %v3615
        %v3617 = vpop.f32.mrb[0].mxu0
        %v3618 = vpop.f32.mrb[0].mxu0
        %v3619 = vadd.f32 0.0, %v3618
        %v3620 = vpop.f32.mrb[0].mxu0
        %3621 = vdwg.mxu0
        %v3622 = vadd.f32 %v3554, %v3608
        %v3623 = vadd.f32 %v3555, %v3611
        %v3624 = vadd.f32 %v3556, %v3616
        %v3625 = vadd.f32 %v3557, %v3619
        %s3626 = scalar_lea.vmem %s5, 176
        %v3627 = vld [vmem:[%s3626] sm:$0xf]
        %v3628 = vld [vmem:[%s3626 + $0x4] sm:$0xf]
        %v3631 = vunpack.c.l.b16 %v3627
        %v3632 = vunpack.c.l.b16 %v3628
        %v3633 = vpack.c.b16 %v3632, %v3631
        %v3636 = vsel %vm2149, %v2132, 0
        %v3639 = vsel %vm2149, %v2133, 0
        %3641 = vmatprep.subr.bf16.mxu0 0
        %3642 = vmatpush1.bf16.msra.mxu0 %v3633
        %3643 = vmatprep.subr.bf16.mxu0 0
        %3644 = vmatpush1.bf16.msra.mxu0 0
        %3645 = vmatprep.subr.bf16.mxu0 0
        %3646 = vmatpush1.bf16.msra.mxu0 0
        %3647 = vmatprep.subr.bf16.mxu0 0
        %3648 = vmatpush1.bf16.msra.mxu0 0
        %3649 = vmatprep.subr.bf16.mxu0 0
        %3650 = vmatpush1.bf16.msra.mxu0 0
        %3651 = vmatprep.subr.bf16.mxu0 0
        %3652 = vmatpush1.bf16.msra.mxu0 0
        %3653 = vmatprep.subr.bf16.mxu0 0
        %3654 = vmatpush1.bf16.msra.mxu0 0
        %3655 = vmatprep.subr.bf16.mxu0 0
        %3656 = vmatpush1.bf16.msra.mxu0 0
        %3657 = vmatprep.subr.bf16.mxu0 0
        %3658 = vmatpush1.bf16.msra.mxu0 0
        %3659 = vmatprep.subr.bf16.mxu0 0
        %3660 = vmatpush1.bf16.msra.mxu0 0
        %3661 = vmatprep.subr.bf16.mxu0 0
        %3662 = vmatpush1.bf16.msra.mxu0 0
        %3663 = vmatprep.subr.bf16.mxu0 0
        %3664 = vmatpush1.bf16.msra.mxu0 0
        %3665 = vmatprep.subr.bf16.mxu0 0
        %3666 = vmatpush1.bf16.msra.mxu0 0
        %3667 = vmatprep.subr.bf16.mxu0 0
        %3668 = vmatpush1.bf16.msra.mxu0 0
        %3669 = vmatprep.subr.bf16.mxu0 0
        %3670 = vmatpush1.bf16.msra.mxu0 0
        %3671 = vmatprep.subr.bf16.mxu0 0
        %3672 = vmatpush1.bf16.msra.mxu0 0
        %3673 = vmatprep.mubr.bf16.mxu0 0
        %3674 = vmatmul.mubr.bf16.gmra.mrb[0].mxu0 %v3636
        %v3675 = vpop.f32.mrb[0].mxu0
        %v3676 = vadd.f32 0.0, %v3675
        %v3677 = vpop.f32.mrb[0].mxu0
        %v3678 = vpop.f32.mrb[0].mxu0
        %v3679 = vadd.f32 0.0, %v3678
        %v3680 = vpop.f32.mrb[0].mxu0
        %3681 = vmatprep.mubr.bf16.mxu0 0
        %3682 = vmatmul.mubr.bf16.gmra.mrb[0].mxu0 %v3639
        %v3683 = vpop.f32.mrb[0].mxu0
        %v3684 = vadd.f32 0.0, %v3683
        %v3685 = vpop.f32.mrb[0].mxu0
        %v3686 = vpop.f32.mrb[0].mxu0
        %v3687 = vadd.f32 0.0, %v3686
        %v3688 = vpop.f32.mrb[0].mxu0
        %3689 = vdwg.mxu0
        %v3690 = vadd.f32 %v3622, %v3676
        %v3691 = vadd.f32 %v3623, %v3679
        %v3692 = vadd.f32 %v3624, %v3684
        %v3693 = vadd.f32 %v3625, %v3687
        %s3694 = scalar_lea.vmem %s5, 184
        %v3695 = vld [vmem:[%s3694] sm:$0xf]
        %v3696 = vld [vmem:[%s3694 + $0x4] sm:$0xf]
        %v3699 = vunpack.c.l.b16 %v3695
        %v3700 = vunpack.c.l.b16 %v3696
        %v3701 = vpack.c.b16 %v3700, %v3699
        %v3704 = vsel %vm2149, %v2134, 0
        %v3707 = vsel %vm2149, %v2135, 0
        %3709 = vmatprep.subr.bf16.mxu0 0
        %3710 = vmatpush1.bf16.msra.mxu0 %v3701
        %3711 = vmatprep.subr.bf16.mxu0 0
        %3712 = vmatpush1.bf16.msra.mxu0 0
        %3713 = vmatprep.subr.bf16.mxu0 0
        %3714 = vmatpush1.bf16.msra.mxu0 0
        %3715 = vmatprep.subr.bf16.mxu0 0
        %3716 = vmatpush1.bf16.msra.mxu0 0
        %3717 = vmatprep.subr.bf16.mxu0 0
        %3718 = vmatpush1.bf16.msra.mxu0 0
        %3719 = vmatprep.subr.bf16.mxu0 0
        %3720 = vmatpush1.bf16.msra.mxu0 0
        %3721 = vmatprep.subr.bf16.mxu0 0
        %3722 = vmatpush1.bf16.msra.mxu0 0
        %3723 = vmatprep.subr.bf16.mxu0 0
        %3724 = vmatpush1.bf16.msra.mxu0 0
        %3725 = vmatprep.subr.bf16.mxu0 0
        %3726 = vmatpush1.bf16.msra.mxu0 0
        %3727 = vmatprep.subr.bf16.mxu0 0
        %3728 = vmatpush1.bf16.msra.mxu0 0
        %3729 = vmatprep.subr.bf16.mxu0 0
        %3730 = vmatpush1.bf16.msra.mxu0 0
        %3731 = vmatprep.subr.bf16.mxu0 0
        %3732 = vmatpush1.bf16.msra.mxu0 0
        %3733 = vmatprep.subr.bf16.mxu0 0
        %3734 = vmatpush1.bf16.msra.mxu0 0
        %3735 = vmatprep.subr.bf16.mxu0 0
        %3736 = vmatpush1.bf16.msra.mxu0 0
        %3737 = vmatprep.subr.bf16.mxu0 0
        %3738 = vmatpush1.bf16.msra.mxu0 0
        %3739 = vmatprep.subr.bf16.mxu0 0
        %3740 = vmatpush1.bf16.msra.mxu0 0
        %3741 = vmatprep.mubr.bf16.mxu0 0
        %3742 = vmatmul.mubr.bf16.gmra.mrb[0].mxu0 %v3704
        %v3743 = vpop.f32.mrb[0].mxu0
        %v3744 = vadd.f32 0.0, %v3743
        %v3745 = vpop.f32.mrb[0].mxu0
        %v3746 = vpop.f32.mrb[0].mxu0
        %v3747 = vadd.f32 0.0, %v3746
        %v3748 = vpop.f32.mrb[0].mxu0
        %3749 = vmatprep.mubr.bf16.mxu0 0
        %3750 = vmatmul.mubr.bf16.gmra.mrb[0].mxu0 %v3707
        %v3751 = vpop.f32.mrb[0].mxu0
        %v3752 = vadd.f32 0.0, %v3751
        %v3753 = vpop.f32.mrb[0].mxu0
        %v3754 = vpop.f32.mrb[0].mxu0
        %v3755 = vadd.f32 0.0, %v3754
        %v3756 = vpop.f32.mrb[0].mxu0
        %3757 = vdwg.mxu0
        %v3758 = vadd.f32 %v3690, %v3744
        %v3759 = vadd.f32 %v3691, %v3747
        %v3760 = vadd.f32 %v3692, %v3752
        %v3761 = vadd.f32 %v3693, %v3755
        %s3762 = scalar_lea.vmem %s5, 192
        %v3763 = vld [vmem:[%s3762] sm:$0xf]
        %v3764 = vld [vmem:[%s3762 + $0x4] sm:$0xf]
        %v3767 = vunpack.c.l.b16 %v3763
        %v3768 = vunpack.c.l.b16 %v3764
        %v3769 = vpack.c.b16 %v3768, %v3767
        %v3772 = vsel %vm2149, %v2136, 0
        %v3775 = vsel %vm2149, %v2137, 0
        %3777 = vmatprep.subr.bf16.mxu0 0
        %3778 = vmatpush1.bf16.msra.mxu0 %v3769
        %3779 = vmatprep.subr.bf16.mxu0 0
        %3780 = vmatpush1.bf16.msra.mxu0 0
        %3781 = vmatprep.subr.bf16.mxu0 0
        %3782 = vmatpush1.bf16.msra.mxu0 0
        %3783 = vmatprep.subr.bf16.mxu0 0
        %3784 = vmatpush1.bf16.msra.mxu0 0
        %3785 = vmatprep.subr.bf16.mxu0 0
        %3786 = vmatpush1.bf16.msra.mxu0 0
        %3787 = vmatprep.subr.bf16.mxu0 0
        %3788 = vmatpush1.bf16.msra.mxu0 0
        %3789 = vmatprep.subr.bf16.mxu0 0
        %3790 = vmatpush1.bf16.msra.mxu0 0
        %3791 = vmatprep.subr.bf16.mxu0 0
        %3792 = vmatpush1.bf16.msra.mxu0 0
        %3793 = vmatprep.subr.bf16.mxu0 0
        %3794 = vmatpush1.bf16.msra.mxu0 0
        %3795 = vmatprep.subr.bf16.mxu0 0
        %3796 = vmatpush1.bf16.msra.mxu0 0
        %3797 = vmatprep.subr.bf16.mxu0 0
        %3798 = vmatpush1.bf16.msra.mxu0 0
        %3799 = vmatprep.subr.bf16.mxu0 0
        %3800 = vmatpush1.bf16.msra.mxu0 0
        %3801 = vmatprep.subr.bf16.mxu0 0
        %3802 = vmatpush1.bf16.msra.mxu0 0
        %3803 = vmatprep.subr.bf16.mxu0 0
        %3804 = vmatpush1.bf16.msra.mxu0 0
        %3805 = vmatprep.subr.bf16.mxu0 0
        %3806 = vmatpush1.bf16.msra.mxu0 0
        %3807 = vmatprep.subr.bf16.mxu0 0
        %3808 = vmatpush1.bf16.msra.mxu0 0
        %3809 = vmatprep.mubr.bf16.mxu0 0
        %3810 = vmatmul.mubr.bf16.gmra.mrb[0].mxu0 %v3772
        %v3811 = vpop.f32.mrb[0].mxu0
        %v3812 = vadd.f32 0.0, %v3811
        %v3813 = vpop.f32.mrb[0].mxu0
        %v3814 = vpop.f32.mrb[0].mxu0
        %v3815 = vadd.f32 0.0, %v3814
        %v3816 = vpop.f32.mrb[0].mxu0
        %3817 = vmatprep.mubr.bf16.mxu0 0
        %3818 = vmatmul.mubr.bf16.gmra.mrb[0].mxu0 %v3775
        %v3819 = vpop.f32.mrb[0].mxu0
        %v3820 = vadd.f32 0.0, %v3819
        %v3821 = vpop.f32.mrb[0].mxu0
        %v3822 = vpop.f32.mrb[0].mxu0
        %v3823 = vadd.f32 0.0, %v3822
        %v3824 = vpop.f32.mrb[0].mxu0
        %3825 = vdwg.mxu0
        %v3826 = vadd.f32 %v3758, %v3812
        %v3827 = vadd.f32 %v3759, %v3815
        %v3828 = vadd.f32 %v3760, %v3820
        %v3829 = vadd.f32 %v3761, %v3823
        %v3830 = vld [vmem:[%s6] sm:$0x1]
        %v3832 = vlaneseq
        %v3833 = vshrl.u32 %v3832, 7
        %v3834 = vsub.s32 0, %v3833
        %v3835 = vrot.slane %v3830, %v3834
        %v3837 = vmul.f32 %v3826, %v3835
        %v3838 = vmul.f32 %v3827, %v3835
        %v3839 = vmul.f32 %v3828, %v3835
        %v3840 = vmul.f32 %v3829, %v3835
        %v3841 = vld [vmem:[%s7] sm:$0x1]
        %v3843 = vlaneseq
        %v3844 = vshrl.u32 %v3843, 7
        %v3845 = vsub.s32 0, %v3844
        %v3846 = vrot.slane %v3841, %v3845
        %v3848 = vadd.f32 %v3837, %v3846
        %v3849 = vadd.f32 %v3838, %v3846
        %v3850 = vadd.f32 %v3839, %v3846
        %v3851 = vadd.f32 %v3840, %v3846
        %v3852 = vmax.f32 %v3848, 0.0
        %v3853 = vmax.f32 %v3849, 0.0
        %v3854 = vmax.f32 %v3850, 0.0
        %v3855 = vmax.f32 %v3851, 0.0
        %v3856 = vpack.c.bf16 %v3853, %v3852
        %v3857 = vpack.c.bf16 %v3855, %v3854
        %v3858 = vld [vmem:[%s8] sm:$0xff]
        %v3859 = vld [vmem:[%s8 + $0x8] sm:$0xff]
        %v3860 = vld [vmem:[%s8 + $0x10] sm:$0xff]
        %v3861 = vld [vmem:[%s8 + $0x18] sm:$0xf]
        %v3862 = vld [vmem:[%s8 + $0x1c] sm:$0xff]
        %v3863 = vld [vmem:[%s8 + $0x24] sm:$0xff]
        %v3864 = vld [vmem:[%s8 + $0x2c] sm:$0xff]
        %v3865 = vld [vmem:[%s8 + $0x34] sm:$0xf]
        %v3866 = vld [vmem:[%s8 + $0x38] sm:$0xff]
        %v3867 = vld [vmem:[%s8 + $0x40] sm:$0xff]
        %v3868 = vld [vmem:[%s8 + $0x48] sm:$0xff]
        %v3869 = vld [vmem:[%s8 + $0x50] sm:$0xf]
        %v3870 = vld [vmem:[%s8 + $0x54] sm:$0xff]
        %v3871 = vld [vmem:[%s8 + $0x5c] sm:$0xff]
        %v3872 = vld [vmem:[%s8 + $0x64] sm:$0xff]
        %v3873 = vld [vmem:[%s8 + $0x6c] sm:$0xf]
        %v3890 = vunpack.c.l.b16 %v3858
        %v3891 = vunpack.c.h.b16 %v3858
        %v3892 = vunpack.c.l.b16 %v3859
        %v3893 = vunpack.c.h.b16 %v3859
        %v3894 = vunpack.c.l.b16 %v3860
        %v3895 = vunpack.c.h.b16 %v3860
        %v3896 = vunpack.c.l.b16 %v3861
        %v3897 = vunpack.c.l.b16 %v3862
        %v3898 = vunpack.c.h.b16 %v3862
        %v3899 = vunpack.c.l.b16 %v3863
        %v3900 = vunpack.c.h.b16 %v3863
        %v3901 = vunpack.c.l.b16 %v3864
        %v3902 = vunpack.c.h.b16 %v3864
        %v3903 = vunpack.c.l.b16 %v3865
        %v3904 = vunpack.c.l.b16 %v3866
        %v3905 = vunpack.c.h.b16 %v3866
        %v3906 = vunpack.c.l.b16 %v3867
        %v3907 = vunpack.c.h.b16 %v3867
        %v3908 = vunpack.c.l.b16 %v3868
        %v3909 = vunpack.c.h.b16 %v3868
        %v3910 = vunpack.c.l.b16 %v3869
        %v3911 = vunpack.c.l.b16 %v3870
        %v3912 = vunpack.c.h.b16 %v3870
        %v3913 = vunpack.c.l.b16 %v3871
        %v3914 = vunpack.c.h.b16 %v3871
        %v3915 = vunpack.c.l.b16 %v3872
        %v3916 = vunpack.c.h.b16 %v3872
        %v3917 = vunpack.c.l.b16 %v3873
        %v3918 = vpack.c.b16 %v3897, %v3890
        %v3919 = vpack.c.b16 %v3898, %v3891
        %v3920 = vpack.c.b16 %v3899, %v3892
        %v3921 = vpack.c.b16 %v3900, %v3893
        %v3922 = vpack.c.b16 %v3901, %v3894
        %v3923 = vpack.c.b16 %v3902, %v3895
        %v3924 = vpack.c.b16 %v3903, %v3896
        %v3925 = vpack.c.b16 %v3911, %v3904
        %v3926 = vpack.c.b16 %v3912, %v3905
        %v3927 = vpack.c.b16 %v3913, %v3906
        %v3928 = vpack.c.b16 %v3914, %v3907
        %v3929 = vpack.c.b16 %v3915, %v3908
        %v3930 = vpack.c.b16 %v3916, %v3909
        %v3931 = vpack.c.b16 %v3917, %v3910
        %vm3946 = vcmask 261120
        %v3948 = vsel %vm3946, %v3856, 0
        %v3951 = vsel %vm3946, %v3857, 0
        %3953 = vmatprep.subr.bf16.mxu0 %v3919
        %3954 = vmatpush1.bf16.msra.mxu0 %v3918
        %3955 = vmatprep.subr.bf16.mxu0 %v3926
        %3956 = vmatpush1.bf16.msra.mxu0 %v3925
        %3957 = vmatprep.subr.bf16.mxu0 0
        %3958 = vmatpush1.bf16.msra.mxu0 0
        %3959 = vmatprep.subr.bf16.mxu0 0
        %3960 = vmatpush1.bf16.msra.mxu0 0
        %3961 = vmatprep.subr.bf16.mxu0 0
        %3962 = vmatpush1.bf16.msra.mxu0 0
        %3963 = vmatprep.subr.bf16.mxu0 0
        %3964 = vmatpush1.bf16.msra.mxu0 0
        %3965 = vmatprep.subr.bf16.mxu0 0
        %3966 = vmatpush1.bf16.msra.mxu0 0
        %3967 = vmatprep.subr.bf16.mxu0 0
        %3968 = vmatpush1.bf16.msra.mxu0 0
        %3969 = vmatprep.subr.bf16.mxu0 0
        %3970 = vmatpush1.bf16.msra.mxu0 0
        %3971 = vmatprep.subr.bf16.mxu0 0
        %3972 = vmatpush1.bf16.msra.mxu0 0
        %3973 = vmatprep.subr.bf16.mxu0 0
        %3974 = vmatpush1.bf16.msra.mxu0 0
        %3975 = vmatprep.subr.bf16.mxu0 0
        %3976 = vmatpush1.bf16.msra.mxu0 0
        %3977 = vmatprep.subr.bf16.mxu0 0
        %3978 = vmatpush1.bf16.msra.mxu0 0
        %3979 = vmatprep.subr.bf16.mxu0 0
        %3980 = vmatpush1.bf16.msra.mxu0 0
        %3981 = vmatprep.subr.bf16.mxu0 0
        %3982 = vmatpush1.bf16.msra.mxu0 0
        %3983 = vmatprep.subr.bf16.mxu0 0
        %3984 = vmatpush1.bf16.msra.mxu0 0
        %3985 = vmatprep.mubr.bf16.mxu0 0
        %3986 = vmatmul.mubr.bf16.gmra.mrb[0].mxu0 %v3948
        %v3987 = vpop.f32.mrb[0].mxu0
        %v3988 = vadd.f32 0.0, %v3987
        %v3989 = vpop.f32.mrb[0].mxu0
        %v3990 = vadd.f32 0.0, %v3989
        %v3991 = vpop.f32.mrb[0].mxu0
        %v3992 = vadd.f32 0.0, %v3991
        %v3993 = vpop.f32.mrb[0].mxu0
        %v3994 = vadd.f32 0.0, %v3993
        %3995 = vmatprep.mubr.bf16.mxu0 0
        %3996 = vmatmul.mubr.bf16.gmra.mrb[0].mxu0 %v3951
        %v3997 = vpop.f32.mrb[0].mxu0
        %v3998 = vadd.f32 0.0, %v3997
        %v3999 = vpop.f32.mrb[0].mxu0
        %v4000 = vadd.f32 0.0, %v3999
        %v4001 = vpop.f32.mrb[0].mxu0
        %v4002 = vadd.f32 0.0, %v4001
        %v4003 = vpop.f32.mrb[0].mxu0
        %v4004 = vadd.f32 0.0, %v4003
        %4005 = vdwg.mxu0
        %4006 = vmatprep.subr.bf16.mxu0 %v3921
        %4007 = vmatpush1.bf16.msra.mxu0 %v3920
        %4008 = vmatprep.subr.bf16.mxu0 %v3928
        %4009 = vmatpush1.bf16.msra.mxu0 %v3927
        %4010 = vmatprep.subr.bf16.mxu0 0
        %4011 = vmatpush1.bf16.msra.mxu0 0
        %4012 = vmatprep.subr.bf16.mxu0 0
        %4013 = vmatpush1.bf16.msra.mxu0 0
        %4014 = vmatprep.subr.bf16.mxu0 0
        %4015 = vmatpush1.bf16.msra.mxu0 0
        %4016 = vmatprep.subr.bf16.mxu0 0
        %4017 = vmatpush1.bf16.msra.mxu0 0
        %4018 = vmatprep.subr.bf16.mxu0 0
        %4019 = vmatpush1.bf16.msra.mxu0 0
        %4020 = vmatprep.subr.bf16.mxu0 0
        %4021 = vmatpush1.bf16.msra.mxu0 0
        %4022 = vmatprep.subr.bf16.mxu0 0
        %4023 = vmatpush1.bf16.msra.mxu0 0
        %4024 = vmatprep.subr.bf16.mxu0 0
        %4025 = vmatpush1.bf16.msra.mxu0 0
        %4026 = vmatprep.subr.bf16.mxu0 0
        %4027 = vmatpush1.bf16.msra.mxu0 0
        %4028 = vmatprep.subr.bf16.mxu0 0
        %4029 = vmatpush1.bf16.msra.mxu0 0
        %4030 = vmatprep.subr.bf16.mxu0 0
        %4031 = vmatpush1.bf16.msra.mxu0 0
        %4032 = vmatprep.subr.bf16.mxu0 0
        %4033 = vmatpush1.bf16.msra.mxu0 0
        %4034 = vmatprep.subr.bf16.mxu0 0
        %4035 = vmatpush1.bf16.msra.mxu0 0
        %4036 = vmatprep.subr.bf16.mxu0 0
        %4037 = vmatpush1.bf16.msra.mxu0 0
        %4038 = vmatprep.mubr.bf16.mxu0 0
        %4039 = vmatmul.mubr.bf16.gmra.mrb[0].mxu0 %v3948
        %v4040 = vpop.f32.mrb[0].mxu0
        %v4041 = vadd.f32 0.0, %v4040
        %v4042 = vpop.f32.mrb[0].mxu0
        %v4043 = vadd.f32 0.0, %v4042
        %v4044 = vpop.f32.mrb[0].mxu0
        %v4045 = vadd.f32 0.0, %v4044
        %v4046 = vpop.f32.mrb[0].mxu0
        %v4047 = vadd.f32 0.0, %v4046
        %4048 = vmatprep.mubr.bf16.mxu0 0
        %4049 = vmatmul.mubr.bf16.gmra.mrb[0].mxu0 %v3951
        %v4050 = vpop.f32.mrb[0].mxu0
        %v4051 = vadd.f32 0.0, %v4050
        %v4052 = vpop.f32.mrb[0].mxu0
        %v4053 = vadd.f32 0.0, %v4052
        %v4054 = vpop.f32.mrb[0].mxu0
        %v4055 = vadd.f32 0.0, %v4054
        %v4056 = vpop.f32.mrb[0].mxu0
        %v4057 = vadd.f32 0.0, %v4056
        %4058 = vdwg.mxu0
        %4059 = vmatprep.subr.bf16.mxu0 %v3923
        %4060 = vmatpush1.bf16.msra.mxu0 %v3922
        %4061 = vmatprep.subr.bf16.mxu0 %v3930
        %4062 = vmatpush1.bf16.msra.mxu0 %v3929
        %4063 = vmatprep.subr.bf16.mxu0 0
        %4064 = vmatpush1.bf16.msra.mxu0 0
        %4065 = vmatprep.subr.bf16.mxu0 0
        %4066 = vmatpush1.bf16.msra.mxu0 0
        %4067 = vmatprep.subr.bf16.mxu0 0
        %4068 = vmatpush1.bf16.msra.mxu0 0
        %4069 = vmatprep.subr.bf16.mxu0 0
        %4070 = vmatpush1.bf16.msra.mxu0 0
        %4071 = vmatprep.subr.bf16.mxu0 0
        %4072 = vmatpush1.bf16.msra.mxu0 0
        %4073 = vmatprep.subr.bf16.mxu0 0
        %4074 = vmatpush1.bf16.msra.mxu0 0
        %4075 = vmatprep.subr.bf16.mxu0 0
        %4076 = vmatpush1.bf16.msra.mxu0 0
        %4077 = vmatprep.subr.bf16.mxu0 0
        %4078 = vmatpush1.bf16.msra.mxu0 0
        %4079 = vmatprep.subr.bf16.mxu0 0
        %4080 = vmatpush1.bf16.msra.mxu0 0
        %4081 = vmatprep.subr.bf16.mxu0 0
        %4082 = vmatpush1.bf16.msra.mxu0 0
        %4083 = vmatprep.subr.bf16.mxu0 0
        %4084 = vmatpush1.bf16.msra.mxu0 0
        %4085 = vmatprep.subr.bf16.mxu0 0
        %4086 = vmatpush1.bf16.msra.mxu0 0
        %4087 = vmatprep.subr.bf16.mxu0 0
        %4088 = vmatpush1.bf16.msra.mxu0 0
        %4089 = vmatprep.subr.bf16.mxu0 0
        %4090 = vmatpush1.bf16.msra.mxu0 0
        %4091 = vmatprep.mubr.bf16.mxu0 0
        %4092 = vmatmul.mubr.bf16.gmra.mrb[0].mxu0 %v3948
        %v4093 = vpop.f32.mrb[0].mxu0
        %v4094 = vadd.f32 0.0, %v4093
        %v4095 = vpop.f32.mrb[0].mxu0
        %v4096 = vadd.f32 0.0, %v4095
        %v4097 = vpop.f32.mrb[0].mxu0
        %v4098 = vadd.f32 0.0, %v4097
        %v4099 = vpop.f32.mrb[0].mxu0
        %v4100 = vadd.f32 0.0, %v4099
        %4101 = vmatprep.mubr.bf16.mxu0 0
        %4102 = vmatmul.mubr.bf16.gmra.mrb[0].mxu0 %v3951
        %v4103 = vpop.f32.mrb[0].mxu0
        %v4104 = vadd.f32 0.0, %v4103
        %v4105 = vpop.f32.mrb[0].mxu0
        %v4106 = vadd.f32 0.0, %v4105
        %v4107 = vpop.f32.mrb[0].mxu0
        %v4108 = vadd.f32 0.0, %v4107
        %v4109 = vpop.f32.mrb[0].mxu0
        %v4110 = vadd.f32 0.0, %v4109
        %4111 = vdwg.mxu0
        %4112 = vmatprep.subr.bf16.mxu0 0
        %4113 = vmatpush1.bf16.msra.mxu0 %v3924
        %4114 = vmatprep.subr.bf16.mxu0 0
        %4115 = vmatpush1.bf16.msra.mxu0 %v3931
        %4116 = vmatprep.subr.bf16.mxu0 0
        %4117 = vmatpush1.bf16.msra.mxu0 0
        %4118 = vmatprep.subr.bf16.mxu0 0
        %4119 = vmatpush1.bf16.msra.mxu0 0
        %4120 = vmatprep.subr.bf16.mxu0 0
        %4121 = vmatpush1.bf16.msra.mxu0 0
        %4122 = vmatprep.subr.bf16.mxu0 0
        %4123 = vmatpush1.bf16.msra.mxu0 0
        %4124 = vmatprep.subr.bf16.mxu0 0
        %4125 = vmatpush1.bf16.msra.mxu0 0
        %4126 = vmatprep.subr.bf16.mxu0 0
        %4127 = vmatpush1.bf16.msra.mxu0 0
        %4128 = vmatprep.subr.bf16.mxu0 0
        %4129 = vmatpush1.bf16.msra.mxu0 0
        %4130 = vmatprep.subr.bf16.mxu0 0
        %4131 = vmatpush1.bf16.msra.mxu0 0
        %4132 = vmatprep.subr.bf16.mxu0 0
        %4133 = vmatpush1.bf16.msra.mxu0 0
        %4134 = vmatprep.subr.bf16.mxu0 0
        %4135 = vmatpush1.bf16.msra.mxu0 0
        %4136 = vmatprep.subr.bf16.mxu0 0
        %4137 = vmatpush1.bf16.msra.mxu0 0
        %4138 = vmatprep.subr.bf16.mxu0 0
        %4139 = vmatpush1.bf16.msra.mxu0 0
        %4140 = vmatprep.subr.bf16.mxu0 0
        %4141 = vmatpush1.bf16.msra.mxu0 0
        %4142 = vmatprep.subr.bf16.mxu0 0
        %4143 = vmatpush1.bf16.msra.mxu0 0
        %4144 = vmatprep.mubr.bf16.mxu0 0
        %4145 = vmatmul.mubr.bf16.gmra.mrb[0].mxu0 %v3948
        %v4146 = vpop.f32.mrb[0].mxu0
        %v4147 = vadd.f32 0.0, %v4146
        %v4148 = vpop.f32.mrb[0].mxu0
        %v4149 = vpop.f32.mrb[0].mxu0
        %v4150 = vadd.f32 0.0, %v4149
        %v4151 = vpop.f32.mrb[0].mxu0
        %4152 = vmatprep.mubr.bf16.mxu0 0
        %4153 = vmatmul.mubr.bf16.gmra.mrb[0].mxu0 %v3951
        %v4154 = vpop.f32.mrb[0].mxu0
        %v4155 = vadd.f32 0.0, %v4154
        %v4156 = vpop.f32.mrb[0].mxu0
        %v4157 = vpop.f32.mrb[0].mxu0
        %v4158 = vadd.f32 0.0, %v4157
        %v4159 = vpop.f32.mrb[0].mxu0
        %4160 = vdwg.mxu0
        %v4161 = vld [vmem:[%s9] sm:$0xff]
        %v4162 = vld [vmem:[%s9 + $0x8] sm:$0xff]
        %v4163 = vld [vmem:[%s9 + $0x10] sm:$0xff]
        %v4164 = vld [vmem:[%s9 + $0x18] sm:$0xff]
        %v4165 = vld [vmem:[%s9 + $0x20] sm:$0xff]
        %v4166 = vld [vmem:[%s9 + $0x28] sm:$0xff]
        %v4167 = vld [vmem:[%s9 + $0x30] sm:$0xff]
        %v4168 = vld [vmem:[%s9 + $0x38] sm:$0xff]
        %v4169 = vld [vmem:[%s9 + $0x40] sm:$0xff]
        %v4170 = vld [vmem:[%s9 + $0x48] sm:$0xff]
        %v4171 = vld [vmem:[%s9 + $0x50] sm:$0xff]
        %v4172 = vld [vmem:[%s9 + $0x58] sm:$0xff]
        %v4173 = vld [vmem:[%s9 + $0x60] sm:$0xff]
        %v4174 = vld [vmem:[%s9 + $0x68] sm:$0xff]
        %v4175 = vld [vmem:[%s9 + $0x70] sm:$0xff]
        %v4176 = vld [vmem:[%s9 + $0x78] sm:$0xff]
        %v4177 = vld [vmem:[%s9 + $0x80] sm:$0xff]
        %v4178 = vld [vmem:[%s9 + $0x88] sm:$0xff]
        %v4179 = vld [vmem:[%s9 + $0x90] sm:$0xff]
        %v4180 = vld [vmem:[%s9 + $0x98] sm:$0xff]
        %v4181 = vld [vmem:[%s9 + $0xa0] sm:$0xff]
        %v4182 = vld [vmem:[%s9 + $0xa8] sm:$0xff]
        %v4183 = vld [vmem:[%s9 + $0xb0] sm:$0xff]
        %v4184 = vld [vmem:[%s9 + $0xb8] sm:$0xff]
        %v4185 = vld [vmem:[%s9 + $0xc0] sm:$0xff]
        %v4186 = vld [vmem:[%s9 + $0xc8] sm:$0xff]
        %v4187 = vld [vmem:[%s9 + $0xd0] sm:$0xff]
        %v4188 = vld [vmem:[%s9 + $0xd8] sm:$0xff]
        %v4189 = vmul.f32 %v3988, %v4161
        %v4190 = vmul.f32 %v3990, %v4162
        %v4191 = vmul.f32 %v4041, %v4163
        %v4192 = vmul.f32 %v4043, %v4164
        %v4193 = vmul.f32 %v4094, %v4165
        %v4194 = vmul.f32 %v4096, %v4166
        %v4195 = vmul.f32 %v4147, %v4167
        %v4196 = vmul.f32 %v3992, %v4168
        %v4197 = vmul.f32 %v3994, %v4169
        %v4198 = vmul.f32 %v4045, %v4170
        %v4199 = vmul.f32 %v4047, %v4171
        %v4200 = vmul.f32 %v4098, %v4172
        %v4201 = vmul.f32 %v4100, %v4173
        %v4202 = vmul.f32 %v4150, %v4174
        %v4203 = vmul.f32 %v3998, %v4175
        %v4204 = vmul.f32 %v4000, %v4176
        %v4205 = vmul.f32 %v4051, %v4177
        %v4206 = vmul.f32 %v4053, %v4178
        %v4207 = vmul.f32 %v4104, %v4179
        %v4208 = vmul.f32 %v4106, %v4180
        %v4209 = vmul.f32 %v4155, %v4181
        %v4210 = vmul.f32 %v4002, %v4182
        %v4211 = vmul.f32 %v4004, %v4183
        %v4212 = vmul.f32 %v4055, %v4184
        %v4213 = vmul.f32 %v4057, %v4185
        %v4214 = vmul.f32 %v4108, %v4186
        %v4215 = vmul.f32 %v4110, %v4187
        %v4216 = vmul.f32 %v4158, %v4188
        %v4217 = vadd.f32 %v4189, %v4196
        %v4218 = vadd.f32 %v4217, %v4203
        %v4219 = vadd.f32 %v4218, %v4210
        %v4220 = vrot.slane %v4219, 4
        %v4221 = vadd.f32 %v4219, %v4220
        %v4222 = vrot.slane %v4221, 2
        %v4223 = vadd.f32 %v4221, %v4222
        %v4224 = vrot.slane %v4223, 1
        %v4225 = vadd.f32 %v4223, %v4224
        %v4226 = vadd.f32 %v4190, %v4197
        %v4227 = vadd.f32 %v4226, %v4204
        %v4228 = vadd.f32 %v4227, %v4211
        %v4229 = vrot.slane %v4228, 4
        %v4230 = vadd.f32 %v4228, %v4229
        %v4231 = vrot.slane %v4230, 2
        %v4232 = vadd.f32 %v4230, %v4231
        %v4233 = vrot.slane %v4232, 1
        %v4234 = vadd.f32 %v4232, %v4233
        %v4235 = vadd.f32 %v4191, %v4198
        %v4236 = vadd.f32 %v4235, %v4205
        %v4237 = vadd.f32 %v4236, %v4212
        %v4238 = vrot.slane %v4237, 4
        %v4239 = vadd.f32 %v4237, %v4238
        %v4240 = vrot.slane %v4239, 2
        %v4241 = vadd.f32 %v4239, %v4240
        %v4242 = vrot.slane %v4241, 1
        %v4243 = vadd.f32 %v4241, %v4242
        %v4244 = vadd.f32 %v4192, %v4199
        %v4245 = vadd.f32 %v4244, %v4206
        %v4246 = vadd.f32 %v4245, %v4213
        %v4247 = vrot.slane %v4246, 4
        %v4248 = vadd.f32 %v4246, %v4247
        %v4249 = vrot.slane %v4248, 2
        %v4250 = vadd.f32 %v4248, %v4249
        %v4251 = vrot.slane %v4250, 1
        %v4252 = vadd.f32 %v4250, %v4251
        %v4253 = vadd.f32 %v4193, %v4200
        %v4254 = vadd.f32 %v4253, %v4207
        %v4255 = vadd.f32 %v4254, %v4214
        %v4256 = vrot.slane %v4255, 4
        %v4257 = vadd.f32 %v4255, %v4256
        %v4258 = vrot.slane %v4257, 2
        %v4259 = vadd.f32 %v4257, %v4258
        %v4260 = vrot.slane %v4259, 1
        %v4261 = vadd.f32 %v4259, %v4260
        %v4262 = vadd.f32 %v4194, %v4201
        %v4263 = vadd.f32 %v4262, %v4208
        %v4264 = vadd.f32 %v4263, %v4215
        %v4265 = vrot.slane %v4264, 4
        %v4266 = vadd.f32 %v4264, %v4265
        %v4267 = vrot.slane %v4266, 2
        %v4268 = vadd.f32 %v4266, %v4267
        %v4269 = vrot.slane %v4268, 1
        %v4270 = vadd.f32 %v4268, %v4269
        %v4271 = vsel %vm3946, %v4195, 0.0
        %v4272 = vsel %vm3946, %v4202, 0.0
        %v4273 = vadd.f32 %v4271, %v4272
        %v4274 = vsel %vm3946, %v4209, 0.0
        %v4275 = vadd.f32 %v4273, %v4274
        %v4276 = vsel %vm3946, %v4216, 0.0
        %v4277 = vadd.f32 %v4275, %v4276
        %v4278 = vrot.slane %v4277, 4
        %v4279 = vadd.f32 %v4277, %v4278
        %v4280 = vrot.slane %v4279, 2
        %v4281 = vadd.f32 %v4279, %v4280
        %v4282 = vrot.slane %v4281, 1
        %v4283 = vadd.f32 %v4281, %v4282
        %v4284 = vpack.c.bf16 %v4225, %v4225
        %v4285 = vpack.c.bf16 %v4234, %v4234
        %v4286 = vpack.c.bf16 %v4243, %v4243
        %v4287 = vpack.c.bf16 %v4252, %v4252
        %v4288 = vpack.c.bf16 %v4261, %v4261
        %v4289 = vpack.c.bf16 %v4270, %v4270
        %v4290 = vpack.c.bf16 %v4283, %v4283
        %v4291 = vld [vmem:[%s10] sm:$0xf]
        %v4292 = vld [vmem:[%s10 + $0x4] sm:$0xf]
        %v4293 = vld [vmem:[%s10 + $0x8] sm:$0xf]
        %v4294 = vld [vmem:[%s10 + $0xc] sm:$0xf]
        %v4295 = vld [vmem:[%s10 + $0x10] sm:$0xf]
        %v4296 = vld [vmem:[%s10 + $0x14] sm:$0xf]
        %v4297 = vld [vmem:[%s10 + $0x18] sm:$0xf]
        %v4298 = vld [vmem:[%s10 + $0x1c] sm:$0xf]
        %v4299 = vld [vmem:[%s10 + $0x20] sm:$0xf]
        %v4300 = vld [vmem:[%s10 + $0x24] sm:$0xf]
        %v4301 = vld [vmem:[%s10 + $0x28] sm:$0xf]
        %v4302 = vld [vmem:[%s10 + $0x2c] sm:$0xf]
        %v4303 = vld [vmem:[%s10 + $0x30] sm:$0xf]
        %v4304 = vld [vmem:[%s10 + $0x34] sm:$0xf]
        %v4305 = vld [vmem:[%s10 + $0x38] sm:$0xf]
        %v4306 = vld [vmem:[%s10 + $0x3c] sm:$0xf]
        %v4307 = vld [vmem:[%s10 + $0x40] sm:$0xf]
        %v4308 = vld [vmem:[%s10 + $0x44] sm:$0xf]
        %v4309 = vld [vmem:[%s10 + $0x48] sm:$0xf]
        %v4310 = vld [vmem:[%s10 + $0x4c] sm:$0xf]
        %v4311 = vld [vmem:[%s10 + $0x50] sm:$0xf]
        %v4312 = vld [vmem:[%s10 + $0x54] sm:$0xf]
        %v4313 = vld [vmem:[%s10 + $0x58] sm:$0xf]
        %v4314 = vld [vmem:[%s10 + $0x5c] sm:$0xf]
        %v4315 = vld [vmem:[%s10 + $0x60] sm:$0xf]
        %v4316 = vld [vmem:[%s10 + $0x64] sm:$0xf]
        %v4317 = vld [vmem:[%s10 + $0x68] sm:$0xf]
        %v4318 = vld [vmem:[%s10 + $0x6c] sm:$0xf]
        %v4319 = vld [vmem:[%s10 + $0x70] sm:$0xf]
        %v4320 = vld [vmem:[%s10 + $0x74] sm:$0xf]
        %v4321 = vld [vmem:[%s10 + $0x78] sm:$0xf]
        %v4322 = vld [vmem:[%s10 + $0x7c] sm:$0xf]
        %v4323 = vld [vmem:[%s10 + $0x80] sm:$0xf]
        %v4324 = vld [vmem:[%s10 + $0x84] sm:$0xf]
        %v4325 = vld [vmem:[%s10 + $0x88] sm:$0xf]
        %v4326 = vld [vmem:[%s10 + $0x8c] sm:$0xf]
        %v4327 = vld [vmem:[%s10 + $0x90] sm:$0xf]
        %v4328 = vld [vmem:[%s10 + $0x94] sm:$0xf]
        %v4329 = vld [vmem:[%s10 + $0x98] sm:$0xf]
        %v4330 = vld [vmem:[%s10 + $0x9c] sm:$0xf]
        %v4331 = vld [vmem:[%s10 + $0xa0] sm:$0xf]
        %v4332 = vld [vmem:[%s10 + $0xa4] sm:$0xf]
        %v4333 = vld [vmem:[%s10 + $0xa8] sm:$0xf]
        %v4334 = vld [vmem:[%s10 + $0xac] sm:$0xf]
        %v4335 = vld [vmem:[%s10 + $0xb0] sm:$0xf]
        %v4336 = vld [vmem:[%s10 + $0xb4] sm:$0xf]
        %v4337 = vld [vmem:[%s10 + $0xb8] sm:$0xf]
        %v4338 = vld [vmem:[%s10 + $0xbc] sm:$0xf]
        %v4339 = vld [vmem:[%s10 + $0xc0] sm:$0xf]
        %v4340 = vld [vmem:[%s10 + $0xc4] sm:$0xf]
        %v4341 = vld [vmem:[%s10 + $0xc8] sm:$0xf]
        %v4342 = vld [vmem:[%s10 + $0xcc] sm:$0xf]
        %v4343 = vld [vmem:[%s10 + $0xd0] sm:$0xf]
        %v4344 = vld [vmem:[%s10 + $0xd4] sm:$0xf]
        %v4345 = vld [vmem:[%s10 + $0xd8] sm:$0xf]
        %v4346 = vld [vmem:[%s10 + $0xdc] sm:$0xf]
        %v4347 = vld [vmem:[%s10 + $0xe0] sm:$0xf]
        %v4348 = vld [vmem:[%s10 + $0xe4] sm:$0xf]
        %v4349 = vld [vmem:[%s10 + $0xe8] sm:$0xf]
        %v4350 = vld [vmem:[%s10 + $0xec] sm:$0xf]
        %v4351 = vld [vmem:[%s10 + $0xf0] sm:$0xf]
        %v4352 = vld [vmem:[%s10 + $0xf4] sm:$0xf]
        %v4353 = vld [vmem:[%s10 + $0xf8] sm:$0xf]
        %v4354 = vld [vmem:[%s10 + $0xfc] sm:$0xf]
        %v4355 = vld [vmem:[%s10 + $0x100] sm:$0xf]
        %v4356 = vld [vmem:[%s10 + $0x104] sm:$0xf]
        %v4357 = vld [vmem:[%s10 + $0x108] sm:$0xf]
        %v4358 = vld [vmem:[%s10 + $0x10c] sm:$0xf]
        %v4359 = vld [vmem:[%s10 + $0x110] sm:$0xf]
        %v4360 = vld [vmem:[%s10 + $0x114] sm:$0xf]
        %v4361 = vld [vmem:[%s10 + $0x118] sm:$0xf]
        %v4362 = vld [vmem:[%s10 + $0x11c] sm:$0xf]
        %v4363 = vld [vmem:[%s10 + $0x120] sm:$0xf]
        %v4364 = vld [vmem:[%s10 + $0x124] sm:$0xf]
        %v4365 = vld [vmem:[%s10 + $0x128] sm:$0xf]
        %v4366 = vld [vmem:[%s10 + $0x12c] sm:$0xf]
        %v4367 = vld [vmem:[%s10 + $0x130] sm:$0xf]
        %v4368 = vld [vmem:[%s10 + $0x134] sm:$0xf]
        %v4369 = vld [vmem:[%s10 + $0x138] sm:$0xf]
        %v4370 = vld [vmem:[%s10 + $0x13c] sm:$0xf]
        %v4371 = vld [vmem:[%s10 + $0x140] sm:$0xf]
        %v4372 = vld [vmem:[%s10 + $0x144] sm:$0xf]
        %v4373 = vld [vmem:[%s10 + $0x148] sm:$0xf]
        %v4374 = vld [vmem:[%s10 + $0x14c] sm:$0xf]
        %v4375 = vld [vmem:[%s10 + $0x150] sm:$0xf]
        %v4376 = vld [vmem:[%s10 + $0x154] sm:$0xf]
        %v4377 = vld [vmem:[%s10 + $0x158] sm:$0xf]
        %v4378 = vld [vmem:[%s10 + $0x15c] sm:$0xf]
        %v4379 = vld [vmem:[%s10 + $0x160] sm:$0xf]
        %v4380 = vld [vmem:[%s10 + $0x164] sm:$0xf]
        %v4381 = vld [vmem:[%s10 + $0x168] sm:$0xf]
        %v4382 = vld [vmem:[%s10 + $0x16c] sm:$0xf]
        %v4383 = vld [vmem:[%s10 + $0x170] sm:$0xf]
        %v4384 = vld [vmem:[%s10 + $0x174] sm:$0xf]
        %v4385 = vld [vmem:[%s10 + $0x178] sm:$0xf]
        %v4386 = vld [vmem:[%s10 + $0x17c] sm:$0xf]
        %v4387 = vld [vmem:[%s10 + $0x180] sm:$0xf]
        %v4388 = vld [vmem:[%s10 + $0x184] sm:$0xf]
        %v4389 = vld [vmem:[%s10 + $0x188] sm:$0xf]
        %v4390 = vld [vmem:[%s10 + $0x18c] sm:$0xf]
        %v4491 = vunpack.c.l.b16 %v4291
        %v4492 = vunpack.c.l.b16 %v4292
        %v4493 = vunpack.c.l.b16 %v4293
        %v4494 = vunpack.c.l.b16 %v4294
        %v4495 = vunpack.c.l.b16 %v4295
        %v4496 = vunpack.c.l.b16 %v4296
        %v4497 = vunpack.c.l.b16 %v4297
        %v4498 = vunpack.c.l.b16 %v4298
        %v4499 = vunpack.c.l.b16 %v4299
        %v4500 = vunpack.c.l.b16 %v4300
        %v4501 = vunpack.c.l.b16 %v4301
        %v4502 = vunpack.c.l.b16 %v4302
        %v4503 = vunpack.c.l.b16 %v4303
        %v4504 = vunpack.c.l.b16 %v4304
        %v4505 = vunpack.c.l.b16 %v4305
        %v4506 = vunpack.c.l.b16 %v4306
        %v4507 = vunpack.c.l.b16 %v4307
        %v4508 = vunpack.c.l.b16 %v4308
        %v4509 = vunpack.c.l.b16 %v4309
        %v4510 = vunpack.c.l.b16 %v4310
        %v4511 = vunpack.c.l.b16 %v4311
        %v4512 = vunpack.c.l.b16 %v4312
        %v4513 = vunpack.c.l.b16 %v4313
        %v4514 = vunpack.c.l.b16 %v4314
        %v4515 = vunpack.c.l.b16 %v4315
        %v4516 = vunpack.c.l.b16 %v4316
        %v4517 = vunpack.c.l.b16 %v4317
        %v4518 = vunpack.c.l.b16 %v4318
        %v4519 = vunpack.c.l.b16 %v4319
        %v4520 = vunpack.c.l.b16 %v4320
        %v4521 = vunpack.c.l.b16 %v4321
        %v4522 = vunpack.c.l.b16 %v4322
        %v4523 = vunpack.c.l.b16 %v4323
        %v4524 = vunpack.c.l.b16 %v4324
        %v4525 = vunpack.c.l.b16 %v4325
        %v4526 = vunpack.c.l.b16 %v4326
        %v4527 = vunpack.c.l.b16 %v4327
        %v4528 = vunpack.c.l.b16 %v4328
        %v4529 = vunpack.c.l.b16 %v4329
        %v4530 = vunpack.c.l.b16 %v4330
        %v4531 = vunpack.c.l.b16 %v4331
        %v4532 = vunpack.c.l.b16 %v4332
        %v4533 = vunpack.c.l.b16 %v4333
        %v4534 = vunpack.c.l.b16 %v4334
        %v4535 = vunpack.c.l.b16 %v4335
        %v4536 = vunpack.c.l.b16 %v4336
        %v4537 = vunpack.c.l.b16 %v4337
        %v4538 = vunpack.c.l.b16 %v4338
        %v4539 = vunpack.c.l.b16 %v4339
        %v4540 = vunpack.c.l.b16 %v4340
        %v4541 = vunpack.c.l.b16 %v4341
        %v4542 = vunpack.c.l.b16 %v4342
        %v4543 = vunpack.c.l.b16 %v4343
        %v4544 = vunpack.c.l.b16 %v4344
        %v4545 = vunpack.c.l.b16 %v4345
        %v4546 = vunpack.c.l.b16 %v4346
        %v4547 = vunpack.c.l.b16 %v4347
        %v4548 = vunpack.c.l.b16 %v4348
        %v4549 = vunpack.c.l.b16 %v4349
        %v4550 = vunpack.c.l.b16 %v4350
        %v4551 = vunpack.c.l.b16 %v4351
        %v4552 = vunpack.c.l.b16 %v4352
        %v4553 = vunpack.c.l.b16 %v4353
        %v4554 = vunpack.c.l.b16 %v4354
        %v4555 = vunpack.c.l.b16 %v4355
        %v4556 = vunpack.c.l.b16 %v4356
        %v4557 = vunpack.c.l.b16 %v4357
        %v4558 = vunpack.c.l.b16 %v4358
        %v4559 = vunpack.c.l.b16 %v4359
        %v4560 = vunpack.c.l.b16 %v4360
        %v4561 = vunpack.c.l.b16 %v4361
        %v4562 = vunpack.c.l.b16 %v4362
        %v4563 = vunpack.c.l.b16 %v4363
        %v4564 = vunpack.c.l.b16 %v4364
        %v4565 = vunpack.c.l.b16 %v4365
        %v4566 = vunpack.c.l.b16 %v4366
        %v4567 = vunpack.c.l.b16 %v4367
        %v4568 = vunpack.c.l.b16 %v4368
        %v4569 = vunpack.c.l.b16 %v4369
        %v4570 = vunpack.c.l.b16 %v4370
        %v4571 = vunpack.c.l.b16 %v4371
        %v4572 = vunpack.c.l.b16 %v4372
        %v4573 = vunpack.c.l.b16 %v4373
        %v4574 = vunpack.c.l.b16 %v4374
        %v4575 = vunpack.c.l.b16 %v4375
        %v4576 = vunpack.c.l.b16 %v4376
        %v4577 = vunpack.c.l.b16 %v4377
        %v4578 = vunpack.c.l.b16 %v4378
        %v4579 = vunpack.c.l.b16 %v4379
        %v4580 = vunpack.c.l.b16 %v4380
        %v4581 = vunpack.c.l.b16 %v4381
        %v4582 = vunpack.c.l.b16 %v4382
        %v4583 = vunpack.c.l.b16 %v4383
        %v4584 = vunpack.c.l.b16 %v4384
        %v4585 = vunpack.c.l.b16 %v4385
        %v4586 = vunpack.c.l.b16 %v4386
        %v4587 = vunpack.c.l.b16 %v4387
        %v4588 = vunpack.c.l.b16 %v4388
        %v4589 = vunpack.c.l.b16 %v4389
        %v4590 = vunpack.c.l.b16 %v4390
        %v4591 = vpack.c.b16 %v4492, %v4491
        %v4592 = vpack.c.b16 %v4494, %v4493
        %v4593 = vpack.c.b16 %v4496, %v4495
        %v4594 = vpack.c.b16 %v4498, %v4497
        %v4595 = vpack.c.b16 %v4500, %v4499
        %v4596 = vpack.c.b16 %v4502, %v4501
        %v4597 = vpack.c.b16 %v4504, %v4503
        %v4598 = vpack.c.b16 %v4506, %v4505
        %v4599 = vpack.c.b16 %v4508, %v4507
        %v4600 = vpack.c.b16 %v4510, %v4509
        %v4601 = vpack.c.b16 %v4512, %v4511
        %v4602 = vpack.c.b16 %v4514, %v4513
        %v4603 = vpack.c.b16 %v4516, %v4515
        %v4604 = vpack.c.b16 %v4518, %v4517
        %v4605 = vpack.c.b16 %v4520, %v4519
        %v4606 = vpack.c.b16 %v4522, %v4521
        %v4607 = vpack.c.b16 %v4524, %v4523
        %v4608 = vpack.c.b16 %v4526, %v4525
        %v4609 = vpack.c.b16 %v4528, %v4527
        %v4610 = vpack.c.b16 %v4530, %v4529
        %v4611 = vpack.c.b16 %v4532, %v4531
        %v4612 = vpack.c.b16 %v4534, %v4533
        %v4613 = vpack.c.b16 %v4536, %v4535
        %v4614 = vpack.c.b16 %v4538, %v4537
        %v4615 = vpack.c.b16 %v4540, %v4539
        %v4616 = vpack.c.b16 %v4542, %v4541
        %v4617 = vpack.c.b16 %v4544, %v4543
        %v4618 = vpack.c.b16 %v4546, %v4545
        %v4619 = vpack.c.b16 %v4548, %v4547
        %v4620 = vpack.c.b16 %v4550, %v4549
        %v4621 = vpack.c.b16 %v4552, %v4551
        %v4622 = vpack.c.b16 %v4554, %v4553
        %v4623 = vpack.c.b16 %v4556, %v4555
        %v4624 = vpack.c.b16 %v4558, %v4557
        %v4625 = vpack.c.b16 %v4560, %v4559
        %v4626 = vpack.c.b16 %v4562, %v4561
        %v4627 = vpack.c.b16 %v4564, %v4563
        %v4628 = vpack.c.b16 %v4566, %v4565
        %v4629 = vpack.c.b16 %v4568, %v4567
        %v4630 = vpack.c.b16 %v4570, %v4569
        %v4631 = vpack.c.b16 %v4572, %v4571
        %v4632 = vpack.c.b16 %v4574, %v4573
        %v4633 = vpack.c.b16 %v4576, %v4575
        %v4634 = vpack.c.b16 %v4578, %v4577
        %v4635 = vpack.c.b16 %v4580, %v4579
        %v4636 = vpack.c.b16 %v4582, %v4581
        %v4637 = vpack.c.b16 %v4584, %v4583
        %v4638 = vpack.c.b16 %v4586, %v4585
        %v4639 = vpack.c.b16 %v4588, %v4587
        %v4640 = vpack.c.b16 %v4590, %v4589
        %v4692 = vsel %vm3946, %v4290, 0
        %4694 = vmatprep.subr.bf16.mxu0 0
        %4695 = vmatpush1.bf16.msra.mxu0 %v4591
        %4696 = vmatprep.subr.bf16.mxu0 0
        %4697 = vmatpush1.bf16.msra.mxu0 %v4592
        %4698 = vmatprep.subr.bf16.mxu0 0
        %4699 = vmatpush1.bf16.msra.mxu0 %v4593
        %4700 = vmatprep.subr.bf16.mxu0 0
        %4701 = vmatpush1.bf16.msra.mxu0 %v4594
        %4702 = vmatprep.subr.bf16.mxu0 0
        %4703 = vmatpush1.bf16.msra.mxu0 %v4595
        %4704 = vmatprep.subr.bf16.mxu0 0
        %4705 = vmatpush1.bf16.msra.mxu0 %v4596
        %4706 = vmatprep.subr.bf16.mxu0 0
        %4707 = vmatpush1.bf16.msra.mxu0 %v4597
        %4708 = vmatprep.subr.bf16.mxu0 0
        %4709 = vmatpush1.bf16.msra.mxu0 %v4598
        %4710 = vmatprep.subr.bf16.mxu0 0
        %4711 = vmatpush1.bf16.msra.mxu0 %v4599
        %4712 = vmatprep.subr.bf16.mxu0 0
        %4713 = vmatpush1.bf16.msra.mxu0 %v4600
        %4714 = vmatprep.subr.bf16.mxu0 0
        %4715 = vmatpush1.bf16.msra.mxu0 %v4601
        %4716 = vmatprep.subr.bf16.mxu0 0
        %4717 = vmatpush1.bf16.msra.mxu0 %v4602
        %4718 = vmatprep.subr.bf16.mxu0 0
        %4719 = vmatpush1.bf16.msra.mxu0 %v4603
        %4720 = vmatprep.subr.bf16.mxu0 0
        %4721 = vmatpush1.bf16.msra.mxu0 %v4604
        %4722 = vmatprep.subr.bf16.mxu0 0
        %4723 = vmatpush1.bf16.msra.mxu0 %v4605
        %4724 = vmatprep.subr.bf16.mxu0 0
        %4725 = vmatpush1.bf16.msra.mxu0 %v4606
        %4726 = vmatprep.mubr.bf16.mxu0 %v4285
        %4727 = vmatmul.mubr.bf16.gmra.mrb[0].mxu0 %v4284
        %v4728 = vpop.f32.mrb[0].mxu0
        %v4729 = vadd.f32 0.0, %v4728
        %v4730 = vpop.f32.mrb[0].mxu0
        %v4731 = vpop.f32.mrb[0].mxu0
        %v4732 = vpop.f32.mrb[0].mxu0
        %4733 = vdwg.mxu0
        %4734 = vmatprep.subr.bf16.mxu0 0
        %4735 = vmatpush1.bf16.msra.mxu0 %v4607
        %4736 = vmatprep.subr.bf16.mxu0 0
        %4737 = vmatpush1.bf16.msra.mxu0 %v4608
        %4738 = vmatprep.subr.bf16.mxu0 0
        %4739 = vmatpush1.bf16.msra.mxu0 %v4609
        %4740 = vmatprep.subr.bf16.mxu0 0
        %4741 = vmatpush1.bf16.msra.mxu0 %v4610
        %4742 = vmatprep.subr.bf16.mxu0 0
        %4743 = vmatpush1.bf16.msra.mxu0 %v4611
        %4744 = vmatprep.subr.bf16.mxu0 0
        %4745 = vmatpush1.bf16.msra.mxu0 %v4612
        %4746 = vmatprep.subr.bf16.mxu0 0
        %4747 = vmatpush1.bf16.msra.mxu0 %v4613
        %4748 = vmatprep.subr.bf16.mxu0 0
        %4749 = vmatpush1.bf16.msra.mxu0 %v4614
        %4750 = vmatprep.subr.bf16.mxu0 0
        %4751 = vmatpush1.bf16.msra.mxu0 %v4615
        %4752 = vmatprep.subr.bf16.mxu0 0
        %4753 = vmatpush1.bf16.msra.mxu0 %v4616
        %4754 = vmatprep.subr.bf16.mxu0 0
        %4755 = vmatpush1.bf16.msra.mxu0 %v4617
        %4756 = vmatprep.subr.bf16.mxu0 0
        %4757 = vmatpush1.bf16.msra.mxu0 %v4618
        %4758 = vmatprep.subr.bf16.mxu0 0
        %4759 = vmatpush1.bf16.msra.mxu0 %v4619
        %4760 = vmatprep.subr.bf16.mxu0 0
        %4761 = vmatpush1.bf16.msra.mxu0 %v4620
        %4762 = vmatprep.subr.bf16.mxu0 0
        %4763 = vmatpush1.bf16.msra.mxu0 %v4621
        %4764 = vmatprep.subr.bf16.mxu0 0
        %4765 = vmatpush1.bf16.msra.mxu0 %v4622
        %4766 = vmatprep.mubr.bf16.mxu0 %v4287
        %4767 = vmatmul.mubr.bf16.gmra.mrb[0].mxu0 %v4286
        %v4768 = vpop.f32.mrb[0].mxu0
        %v4769 = vadd.f32 %v4729, %v4768
        %v4770 = vpop.f32.mrb[0].mxu0
        %v4771 = vpop.f32.mrb[0].mxu0
        %v4772 = vpop.f32.mrb[0].mxu0
        %4773 = vdwg.mxu0
        %4774 = vmatprep.subr.bf16.mxu0 0
        %4775 = vmatpush1.bf16.msra.mxu0 %v4623
        %4776 = vmatprep.subr.bf16.mxu0 0
        %4777 = vmatpush1.bf16.msra.mxu0 %v4624
        %4778 = vmatprep.subr.bf16.mxu0 0
        %4779 = vmatpush1.bf16.msra.mxu0 %v4625
        %4780 = vmatprep.subr.bf16.mxu0 0
        %4781 = vmatpush1.bf16.msra.mxu0 %v4626
        %4782 = vmatprep.subr.bf16.mxu0 0
        %4783 = vmatpush1.bf16.msra.mxu0 %v4627
        %4784 = vmatprep.subr.bf16.mxu0 0
        %4785 = vmatpush1.bf16.msra.mxu0 %v4628
        %4786 = vmatprep.subr.bf16.mxu0 0
        %4787 = vmatpush1.bf16.msra.mxu0 %v4629
        %4788 = vmatprep.subr.bf16.mxu0 0
        %4789 = vmatpush1.bf16.msra.mxu0 %v4630
        %4790 = vmatprep.subr.bf16.mxu0 0
        %4791 = vmatpush1.bf16.msra.mxu0 %v4631
        %4792 = vmatprep.subr.bf16.mxu0 0
        %4793 = vmatpush1.bf16.msra.mxu0 %v4632
        %4794 = vmatprep.subr.bf16.mxu0 0
        %4795 = vmatpush1.bf16.msra.mxu0 %v4633
        %4796 = vmatprep.subr.bf16.mxu0 0
        %4797 = vmatpush1.bf16.msra.mxu0 %v4634
        %4798 = vmatprep.subr.bf16.mxu0 0
        %4799 = vmatpush1.bf16.msra.mxu0 %v4635
        %4800 = vmatprep.subr.bf16.mxu0 0
        %4801 = vmatpush1.bf16.msra.mxu0 %v4636
        %4802 = vmatprep.subr.bf16.mxu0 0
        %4803 = vmatpush1.bf16.msra.mxu0 %v4637
        %4804 = vmatprep.subr.bf16.mxu0 0
        %4805 = vmatpush1.bf16.msra.mxu0 %v4638
        %4806 = vmatprep.mubr.bf16.mxu0 %v4289
        %4807 = vmatmul.mubr.bf16.gmra.mrb[0].mxu0 %v4288
        %v4808 = vpop.f32.mrb[0].mxu0
        %v4809 = vadd.f32 %v4769, %v4808
        %v4810 = vpop.f32.mrb[0].mxu0
        %v4811 = vpop.f32.mrb[0].mxu0
        %v4812 = vpop.f32.mrb[0].mxu0
        %4813 = vdwg.mxu0
        %4814 = vmatprep.subr.bf16.mxu0 0
        %4815 = vmatpush1.bf16.msra.mxu0 %v4639
        %4816 = vmatprep.subr.bf16.mxu0 0
        %4817 = vmatpush1.bf16.msra.mxu0 %v4640
        %4818 = vmatprep.subr.bf16.mxu0 0
        %4819 = vmatpush1.bf16.msra.mxu0 0
        %4820 = vmatprep.subr.bf16.mxu0 0
        %4821 = vmatpush1.bf16.msra.mxu0 0
        %4822 = vmatprep.subr.bf16.mxu0 0
        %4823 = vmatpush1.bf16.msra.mxu0 0
        %4824 = vmatprep.subr.bf16.mxu0 0
        %4825 = vmatpush1.bf16.msra.mxu0 0
        %4826 = vmatprep.subr.bf16.mxu0 0
        %4827 = vmatpush1.bf16.msra.mxu0 0
        %4828 = vmatprep.subr.bf16.mxu0 0
        %4829 = vmatpush1.bf16.msra.mxu0 0
        %4830 = vmatprep.subr.bf16.mxu0 0
        %4831 = vmatpush1.bf16.msra.mxu0 0
        %4832 = vmatprep.subr.bf16.mxu0 0
        %4833 = vmatpush1.bf16.msra.mxu0 0
        %4834 = vmatprep.subr.bf16.mxu0 0
        %4835 = vmatpush1.bf16.msra.mxu0 0
        %4836 = vmatprep.subr.bf16.mxu0 0
        %4837 = vmatpush1.bf16.msra.mxu0 0
        %4838 = vmatprep.subr.bf16.mxu0 0
        %4839 = vmatpush1.bf16.msra.mxu0 0
        %4840 = vmatprep.subr.bf16.mxu0 0
        %4841 = vmatpush1.bf16.msra.mxu0 0
        %4842 = vmatprep.subr.bf16.mxu0 0
        %4843 = vmatpush1.bf16.msra.mxu0 0
        %4844 = vmatprep.subr.bf16.mxu0 0
        %4845 = vmatpush1.bf16.msra.mxu0 0
        %4846 = vmatprep.mubr.bf16.mxu0 0
        %4847 = vmatmul.mubr.bf16.gmra.mrb[0].mxu0 %v4692
        %v4848 = vpop.f32.mrb[0].mxu0
        %v4849 = vadd.f32 %v4809, %v4848
        %v4850 = vpop.f32.mrb[0].mxu0
        %v4851 = vpop.f32.mrb[0].mxu0
        %v4852 = vpop.f32.mrb[0].mxu0
        %4853 = vdwg.mxu0
        %v4854 = vld [vmem:[%s11] sm:$0x1]
        %v4855 = vmul.f32 %v4849, %v4854
        %v4856 = vld [vmem:[%s12] sm:$0x1]
        %v4857 = vadd.f32 %v4855, %v4856
        %v4858 = vmax.f32 %v4857, 0.0
        %v4859 = vpack.c.bf16 %v4858, %v4858
        %v4860 = vld [vmem:[%s13] sm:$0xf]
        %v4861 = vld [vmem:[%s13 + $0x4] sm:$0xf]
        %v4862 = vld [vmem:[%s13 + $0x8] sm:$0xf]
        %v4863 = vld [vmem:[%s13 + $0xc] sm:$0xf]
        %v4864 = vld [vmem:[%s14] sm:$0x1]
        %v4869 = vunpack.c.l.b16 %v4860
        %v4870 = vunpack.c.l.b16 %v4861
        %v4871 = vunpack.c.l.b16 %v4862
        %v4872 = vunpack.c.l.b16 %v4863
        %v4873 = vpack.c.b16 %v4870, %v4869
        %v4874 = vpack.c.b16 %v4872, %v4871
        %v4878 = vsel %vm3946, %v4859, 0
        %4880 = vmatprep.subr.bf16.mxu0 0
        %4881 = vmatpush1.bf16.msra.mxu0 %v4873
        %4882 = vmatprep.subr.bf16.mxu0 0
        %4883 = vmatpush1.bf16.msra.mxu0 %v4874
        %4884 = vmatprep.subr.bf16.mxu0 0
        %4885 = vmatpush1.bf16.msra.mxu0 0
        %4886 = vmatprep.subr.bf16.mxu0 0
        %4887 = vmatpush1.bf16.msra.mxu0 0
        %4888 = vmatprep.subr.bf16.mxu0 0
        %4889 = vmatpush1.bf16.msra.mxu0 0
        %4890 = vmatprep.subr.bf16.mxu0 0
        %4891 = vmatpush1.bf16.msra.mxu0 0
        %4892 = vmatprep.subr.bf16.mxu0 0
        %4893 = vmatpush1.bf16.msra.mxu0 0
        %4894 = vmatprep.subr.bf16.mxu0 0
        %4895 = vmatpush1.bf16.msra.mxu0 0
        %4896 = vmatprep.subr.bf16.mxu0 0
        %4897 = vmatpush1.bf16.msra.mxu0 0
        %4898 = vmatprep.subr.bf16.mxu0 0
        %4899 = vmatpush1.bf16.msra.mxu0 0
        %4900 = vmatprep.subr.bf16.mxu0 0
        %4901 = vmatpush1.bf16.msra.mxu0 0
        %4902 = vmatprep.subr.bf16.mxu0 0
        %4903 = vmatpush1.bf16.msra.mxu0 0
        %4904 = vmatprep.subr.bf16.mxu0 0
        %4905 = vmatpush1.bf16.msra.mxu0 0
        %4906 = vmatprep.subr.bf16.mxu0 0
        %4907 = vmatpush1.bf16.msra.mxu0 0
        %4908 = vmatprep.subr.bf16.mxu0 0
        %4909 = vmatpush1.bf16.msra.mxu0 0
        %4910 = vmatprep.subr.bf16.mxu0 0
        %4911 = vmatpush1.bf16.msra.mxu0 0
        %4912 = vmatprep.mubr.bf16.mxu0 0
        %4913 = vmatmul.mubr.bf16.gmra.mrb[0].mxu0 %v4878
        %v4914 = vpop.f32.mrb[0].mxu0
        %v4915 = vadd.f32 %v4864, %v4914
        %v4916 = vpop.f32.mrb[0].mxu0
        %v4917 = vpop.f32.mrb[0].mxu0
        %v4918 = vpop.f32.mrb[0].mxu0
        %4919 = vdwg.mxu0
        %v4920 = vpack.c.bf16 %v4915, %v4915
        %v4921 = vld [vmem:[%s15] sm:$0xf]
        %v4922 = vld [vmem:[%s16] sm:$0x1]
        %vm4923 = vcmask 64512
        %v4925 = vsel %vm4923, %v4920, 0
        %vm4927 = vcmask 1043456
        %v4929 = vsel %vm4927, %v4921, 0
        %4931 = vmatprep.subr.bf16.mxu0 0
        %4932 = vmatpush1.bf16.msra.mxu0 %v4929
        %4933 = vmatprep.subr.bf16.mxu0 0
        %4934 = vmatpush1.bf16.msra.mxu0 0
        %4935 = vmatprep.subr.bf16.mxu0 0
        %4936 = vmatpush1.bf16.msra.mxu0 0
        %4937 = vmatprep.subr.bf16.mxu0 0
        %4938 = vmatpush1.bf16.msra.mxu0 0
        %4939 = vmatprep.subr.bf16.mxu0 0
        %4940 = vmatpush1.bf16.msra.mxu0 0
        %4941 = vmatprep.subr.bf16.mxu0 0
        %4942 = vmatpush1.bf16.msra.mxu0 0
        %4943 = vmatprep.subr.bf16.mxu0 0
        %4944 = vmatpush1.bf16.msra.mxu0 0
        %4945 = vmatprep.subr.bf16.mxu0 0
        %4946 = vmatpush1.bf16.msra.mxu0 0
        %4947 = vmatprep.subr.bf16.mxu0 0
        %4948 = vmatpush1.bf16.msra.mxu0 0
        %4949 = vmatprep.subr.bf16.mxu0 0
        %4950 = vmatpush1.bf16.msra.mxu0 0
        %4951 = vmatprep.subr.bf16.mxu0 0
        %4952 = vmatpush1.bf16.msra.mxu0 0
        %4953 = vmatprep.subr.bf16.mxu0 0
        %4954 = vmatpush1.bf16.msra.mxu0 0
        %4955 = vmatprep.subr.bf16.mxu0 0
        %4956 = vmatpush1.bf16.msra.mxu0 0
        %4957 = vmatprep.subr.bf16.mxu0 0
        %4958 = vmatpush1.bf16.msra.mxu0 0
        %4959 = vmatprep.subr.bf16.mxu0 0
        %4960 = vmatpush1.bf16.msra.mxu0 0
        %4961 = vmatprep.subr.bf16.mxu0 0
        %4962 = vmatpush1.bf16.msra.mxu0 0
        %4963 = vmatprep.mubr.bf16.mxu0 0
        %4964 = vmatmul.mubr.bf16.gmra.mrb[0].mxu0 %v4925
        %v4965 = vpop.f32.mrb[0].mxu0
        %v4966 = vadd.f32 %v4922, %v4965
        %v4967 = vpop.f32.mrb[0].mxu0
        %v4968 = vpop.f32.mrb[0].mxu0
        %v4969 = vpop.f32.mrb[0].mxu0
        %4970 = vdwg.mxu0
        %vm4971 = vcmask 24576
        %v4972 = vsel %vm4971, %v4966, -inf
        %4973 = vmax.xlane.f32.xlu0 %v4972
        %v4974 = vpop.xlane.xlu0 %4973
        %v4975 = vsub.f32 %v4966, %v4974
        %v4976 = vmul.f32 %v4975, 1.442695
        %v4977 = vpow.pop %v4976
        %v4978 = vsel %vm4971, %v4977, 0.0
        %4979 = vadd.xlane.f32.xlu0 %v4978
        %v4980 = vpop.xlane.xlu0 %4979
        %v4981 = vrcp.pop %v4980
        %v4982 = vmul.f32 %v4977, %v4981
        %4983 = vst.msk [vmem:[%s540] sm:$0x1] %vm4971, %v4982
        %s4984 = sand.u32 %s401, 1
        %s4985 = scalar_lea.sflag [#allocation3], %s4984
        %s4986 = sand.u32 %s401, 1
        %s4987 = scalar_lea.vmem [#allocation2], %s4986
        // Predicated region
        $region89: #{policy_net_forward.1} parent=87 // pred_check
          %p4988 = pneg %p411
        $region90: #{policy_net_forward.1} parent=87 // pred_check_branch
          %4990 = sbr.rel (%p4988) target = $region92
        $region91: #{policy_net_forward.1} parent=87 // pred_region
          %s4992 = ssub.s32 16, 16
          %4993 = vsyncadd %s4985, %s4992
          %s4994 = smul.addr %s31, 16
          %s4995 = scalar_lea.hbm %s17, %s4994
          %s4997 = sshll.u32 %s4987, 4
          %s4998 = int_to_ptr.vmem [resolvable:$true] %s4997
          %5000 = dma.vmem_to_hbm [thread:$0]  %s4998, 16, %s4995, %s4985
        $region92: #{policy_net_forward.1} parent=87 // pred_fallthru
          _
      $region88: #{policy_net_forward.1} parent=5 // pred_fallthru
        _
      %p5001 = scmp.le.s32.totalorder 2, %s26
      // Predicated region
      $region93: #{policy_net_forward.1} parent=5 // pred_check
        %p5002 = pneg %p5001
      $region94: #{policy_net_forward.1} parent=5 // pred_check_branch
        %5004 = sbr.rel (%p5002) target = $region96
      $region95: #{policy_net_forward.1} parent=5 // pred_region
        %s5005 = ssub.s32 %s26, 2
        // Predicated region
        $region97: #{policy_net_forward.1} parent=95 // pred_check
          %p5006 = pneg %p417
        $region98: #{policy_net_forward.1} parent=95 // pred_check_branch
          %5008 = sbr.rel (%p5006) target = $region100
        $region99: #{policy_net_forward.1} parent=95 // pred_region
          %s5009 = sand.u32 %s402, 1
          %s5010 = scalar_lea.sflag [#allocation3], %s5009
          %s5011 = sand.u32 %s402, 1
          %s5012 = scalar_lea.vmem [#allocation2], %s5011
          %5013 = dma.done %s5010, 16
        $region100: #{policy_net_forward.1} parent=95 // pred_fallthru
          _
      $region96: #{policy_net_forward.1} parent=5 // pred_fallthru
        _
    $region6: #{policy_net_forward.1} parent=1 // loop_footer
      %s30 = sadd.s32 1, %s26
    $region7: #{policy_net_forward.1} parent=1 // loop_footer_branch
      %25 = sbr.rel target = $region3
    $region8: #{policy_net_forward.1} parent=1 // loop_exit
      _
    %5014 = vsyncpa [#allocation3], 1
    %s5015 = scalar_lea.sflag [#allocation3], 1
    %5016 = vsyncpa %s5015, 1

</llo_original>
